<compile_context>
chip_gen: v7x
topology: tpu7x:2x2x1
jax: 0.10.0
libtpu: 0.0.40
codegen_flags: <defaults>
</compile_context>

<pallas_src>
import functools

import jax
import jax.numpy as jnp
import numpy as np
from jax.experimental import pallas as pl
from jax.experimental.pallas import tpu as pltpu


def _round_up(x, m):
    return (x + m - 1) // m * m


_COMPILER_PARAMS = pltpu.CompilerParams(
    dimension_semantics=("parallel",),       # shard grid across TCs on v7x
    vmem_limit_bytes=32 * 1024 * 1024,
)


# ----------------------------- Pallas kernels ------------------------------ #

def _conv_relu_pool_kernel(x_ref, w_ref, b_ref, o_ref, *, hp, ws, cout):
    """Fused 3x3 valid conv + bias + relu + 2x2/2 max-pool for ONE image.

    x_ref : ((hs+1)*ws, 4*cin) bf16 -- space-to-depth packed image: flat row
            r*ws+s, channel block (pr*2+pc)*cin holds pixel (2r+pr, 2s+pc)
            (one extra zero row appended so shifted windows never go OOB).
    w_ref : (4, 4*cin, 4*cout) bf16 -- for shift group g=(qr,qc), column block
            q=(di,dj) of w_ref[g] carries conv tap (ti,tj)=(2qr+pr-di, 2qc+pc-dj)
            scattered over the input-parity channel blocks (zeros elsewhere).
    b_ref : (1, cout) f32 bias.
    o_ref : (hp*ws, cout) bf16 -- pooled output on an (hp, ws) *virtual* grid;
            columns s >= wp are over-compute and dropped by the caller.

    Uses relu(max_q(conv_q) + b) == maxpool(relu(conv + b)) (shared bias,
    monotone relu).  Per grid step: 4 MXU dots + lane-sliced 4-way max.
    """
    m = hp * ws
    y4 = None                                    # (m, 4*cout) f32 accumulator
    for qr in range(2):
        for qc in range(2):
            start = qr * ws + qc
            part = jnp.dot(x_ref[start:start + m, :], w_ref[qr * 2 + qc],
                           preferred_element_type=jnp.float32)
            y4 = part if y4 is None else y4 + part
    y = jnp.maximum(
        jnp.maximum(y4[:, 0 * cout:1 * cout], y4[:, 1 * cout:2 * cout]),
        jnp.maximum(y4[:, 2 * cout:3 * cout], y4[:, 3 * cout:4 * cout]))
    o_ref[...] = jnp.maximum(y + b_ref[...], 0.0).astype(o_ref.dtype)


def _fc_fused_kernel(x_ref, w1_ref, b1_ref, w2_ref, b2_ref, w3_ref, b3_ref,
                     h2_ref, out_ref):
    """fc1+relu -> fc2+relu -> fc3, fused: h1/h2 stay in VMEM/vregs."""
    h1 = jnp.dot(x_ref[...], w1_ref[...], preferred_element_type=jnp.float32)
    h1 = jnp.maximum(h1 + b1_ref[...], 0.0)          # (tile_m, 128) lane-dense
    h2 = jnp.dot(h1, w2_ref[...], preferred_element_type=jnp.float32)
    h2 = jnp.maximum(h2 + b2_ref[...], 0.0)          # (tile_m, 84)
    out = jnp.dot(h2, w3_ref[...], preferred_element_type=jnp.float32) + b3_ref[...]
    h2_ref[...] = h2
    out_ref[...] = out


def _mapping_kernel(z_ref, w3_ref, b3_ref, z3_ref, logp_ref):
    """SVHNCNN.mapping path: fc3 + log_softmax fused."""
    z3 = jnp.dot(z_ref[...], w3_ref[...], preferred_element_type=jnp.float32)
    z3 = z3 + b3_ref[...]
    mx = jnp.max(z3, axis=-1, keepdims=True)
    lse = jnp.log(jnp.sum(jnp.exp(z3 - mx), axis=-1, keepdims=True)) + mx
    z3_ref[...] = z3
    logp_ref[...] = z3 - lse


# ------------------------------- JAX glue ---------------------------------- #

def _space_to_depth_flat(x_nhwc):
    """(N,H,W,C) -> (N, (hs+1)*ws, 4C) with channel block (pr*2+pc)*C holding
    pixel (2r+pr, 2s+pc); +1 zero row so in-kernel shifted slices stay in-bounds."""
    n, h, w, c = x_nhwc.shape
    hs, ws = (h + 1) // 2, (w + 1) // 2
    x = jnp.pad(x_nhwc, ((0, 0), (0, 2 * hs - h), (0, 2 * ws - w), (0, 0)))
    x = x.reshape(n, hs, 2, ws, 2, c)
    x = x.transpose(0, 1, 3, 2, 4, 5).reshape(n, hs, ws, 4 * c)
    x = jnp.pad(x, ((0, 0), (0, 1), (0, 0), (0, 0)))
    return x.reshape(n, (hs + 1) * ws, 4 * c), ws


def _conv_relu_pool(x_stack, ws, w_grouped, b_row, *, hp, cout):
    n, rows, c4 = x_stack.shape
    m = hp * ws
    return pl.pallas_call(
        functools.partial(_conv_relu_pool_kernel, hp=hp, ws=ws, cout=cout),
        out_shape=jax.ShapeDtypeStruct((n, m, cout), jnp.bfloat16),
        grid=(n,),
        in_specs=[
            pl.BlockSpec((None, rows, c4), lambda i: (i, 0, 0)),
            pl.BlockSpec(w_grouped.shape, lambda i: (0, 0, 0)),
            pl.BlockSpec((1, cout), lambda i: (0, 0)),
        ],
        out_specs=pl.BlockSpec((None, m, cout), lambda i: (i, 0, 0)),
        compiler_params=_COMPILER_PARAMS,
    )(x_stack, w_grouped, b_row)


def _conv_block(x_nhwc, w_grouped, b_row):
    n, h, w, _ = x_nhwc.shape
    cout = b_row.shape[1]
    hp, wp = (h - 2) // 2, (w - 2) // 2
    x_stack, ws = _space_to_depth_flat(x_nhwc)
    y = _conv_relu_pool(x_stack, ws, w_grouped, b_row, hp=hp, cout=cout)
    return y.reshape(n, hp, ws, cout)[:, :, :wp, :]   # drop over-compute columns


def _fc_stack(flat, params):
    n = flat.shape[0]
    tile_m = 128 if n >= 128 else _round_up(n, 8)
    n_pad = _round_up(n, tile_m)
    x = jnp.pad(flat, ((0, n_pad - n), (0, 0)))
    h2, out = pl.pallas_call(
        _fc_fused_kernel,
        out_shape=(jax.ShapeDtypeStruct((n_pad, 84), jnp.float32),
                   jax.ShapeDtypeStruct((n_pad, 10), jnp.float32)),
        grid=(n_pad // tile_m,),
        in_specs=[
            pl.BlockSpec((tile_m, 2304), lambda i: (i, 0)),
            pl.BlockSpec((2304, 128), lambda i: (0, 0)),
            pl.BlockSpec((1, 128), lambda i: (0, 0)),
            pl.BlockSpec((128, 84), lambda i: (0, 0)),
            pl.BlockSpec((1, 84), lambda i: (0, 0)),
            pl.BlockSpec((84, 10), lambda i: (0, 0)),
            pl.BlockSpec((1, 10), lambda i: (0, 0)),
        ],
        out_specs=(pl.BlockSpec((tile_m, 84), lambda i: (i, 0)),
                   pl.BlockSpec((tile_m, 10), lambda i: (i, 0))),
        compiler_params=_COMPILER_PARAMS,
    )(x, params["fc1_wm"], params["fc1_b"], params["fc2_wm"], params["fc2_b"],
      params["fc3_wm"], params["fc3_b"])
    return h2[:n], out[:n]


def svhn_cnn_forward(params, x_nchw):
    """Equivalent of SVHNCNN.forward(x, start_layer_idx=0) -> (h2, logits)."""
    n = x_nchw.shape[0]
    x = jnp.transpose(x_nchw, (0, 2, 3, 1)).astype(jnp.bfloat16)   # NCHW -> NHWC
    y1 = _conv_block(x, params["conv1_wg"], params["conv1_b"])     # (n,15,15,32)
    y2 = _conv_block(y1, params["conv2_wg"], params["conv2_b"])    # (n, 6, 6,64)
    flat = y2.reshape(n, -1)          # NHWC flatten; fc1_wm is pre-permuted to match
    return _fc_stack(flat, params)


def svhn_cnn_mapping(params, z):
    """Equivalent of SVHNCNN.mapping(z) -> (fc3(z), log_softmax(fc3(z)))."""
    n = z.shape[0]
    tile_m = 128 if n >= 128 else _round_up(n, 8)
    n_pad = _round_up(n, tile_m)
    zp = jnp.pad(z.astype(jnp.float32), ((0, n_pad - n), (0, 0)))
    z3, logp = pl.pallas_call(
        _mapping_kernel,
        out_shape=(jax.ShapeDtypeStruct((n_pad, 10), jnp.float32),
                   jax.ShapeDtypeStruct((n_pad, 10), jnp.float32)),
        grid=(n_pad // tile_m,),
        in_specs=[
            pl.BlockSpec((tile_m, 84), lambda i: (i, 0)),
            pl.BlockSpec((84, 10), lambda i: (0, 0)),
            pl.BlockSpec((1, 10), lambda i: (0, 0)),
        ],
        out_specs=(pl.BlockSpec((tile_m, 10), lambda i: (i, 0)),
                   pl.BlockSpec((tile_m, 10), lambda i: (i, 0))),
        compiler_params=_COMPILER_PARAMS,
    )(zp, params["fc3_wm"], params["fc3_b"])
    return z3[:n], logp[:n]


# ----------------------------- parameters ---------------------------------- #

def init_params(key):
    """Random parameters in the PyTorch module's native layouts."""
    ks = jax.random.split(key, 10)

    def t(shape, k, scale):
        return scale * jax.random.normal(k, shape, jnp.float32)

    return {
        "conv1_w": t((32, 3, 3, 3), ks[0], 0.15),  "conv1_b": t((32,), ks[1], 0.15),
        "conv2_w": t((64, 32, 3, 3), ks[2], 0.06), "conv2_b": t((64,), ks[3], 0.06),
        "fc1_w": t((120, 2304), ks[4], 0.05),      "fc1_b": t((120,), ks[5], 0.05),
        "fc2_w": t((84, 120), ks[6], 0.10),        "fc2_b": t((84,), ks[7], 0.10),
        "fc3_w": t((10, 84), ks[8], 0.20),         "fc3_b": t((10,), ks[9], 0.20),
    }


def _conv_w_grouped(w_pt):
    """PyTorch (Cout,Cin,3,3) -> (4, 4*Cin, 4*Cout) shift-group weights.

    w[g=(qr,qc)][(pr*2+pc)*Cin + c, (di*2+dj)*Cout + o] = w_pt[o, c, ti, tj]
    with ti = 2*qr+pr-di, tj = 2*qc+pc-dj (zero when outside [0,3)).
    """
    w_np = np.asarray(w_pt, np.float32)
    cout, cin = w_np.shape[:2]
    wg = np.zeros((2, 2, 2, 2, cin, 2, 2, cout), np.float32)
    #              qr qc pr pc  cin di dj  cout
    for di in range(2):
        for dj in range(2):
            for ti in range(3):
                for tj in range(3):
                    a, b = di + ti, dj + tj
                    wg[a // 2, b // 2, a % 2, b % 2, :, di, dj, :] = \
                        w_np[:, :, ti, tj].T
    return jnp.asarray(wg.reshape(4, 4 * cin, 4 * cout))


def prepare_params(raw):
    """One-time layout/dtype transforms so the forward does no weight reshuffling."""
    # fc1: PyTorch flatten is NCHW (c*36 + h*6 + w); permute its input dim to the
    # NHWC flatten our conv output uses, then pad 120 -> 128 output lanes.
    fc1 = raw["fc1_w"].reshape(120, 64, 6, 6)
    fc1 = jnp.transpose(fc1, (2, 3, 1, 0)).reshape(2304, 120)
    fc1 = jnp.pad(fc1, ((0, 0), (0, 8)))
    return {
        "conv1_wg": _conv_w_grouped(raw["conv1_w"]).astype(jnp.bfloat16),
        "conv1_b": raw["conv1_b"].reshape(1, -1),
        "conv2_wg": _conv_w_grouped(raw["conv2_w"]).astype(jnp.bfloat16),
        "conv2_b": raw["conv2_b"].reshape(1, -1),
        "fc1_wm": fc1.astype(jnp.bfloat16),                  # (2304, 128) bf16
        "fc1_b": jnp.pad(raw["fc1_b"], (0, 8)).reshape(1, 128),
        "fc2_wm": jnp.pad(raw["fc2_w"].T, ((0, 8), (0, 0))), # (128, 84) f32
        "fc2_b": raw["fc2_b"].reshape(1, -1),
        "fc3_wm": raw["fc3_w"].T,                            # (84, 10) f32
        "fc3_b": raw["fc3_b"].reshape(1, -1),
    }


# ------------------------- pure-jnp f32 reference --------------------------- #

def reference_forward(raw, x_nchw):
    """Exact PyTorch semantics (relu -> pool, NCHW flatten), full f32."""
    n = x_nchw.shape[0]
    x = jnp.transpose(x_nchw, (0, 2, 3, 1))

    def conv_relu_pool_ref(xin, w_pt, b_pt):
        _, h, w, c = xin.shape
        ho, wo = h - 2, w - 2
        cols = [xin[:, i:i + ho, j:j + wo, :] for i in range(3) for j in range(3)]
        patches = jnp.concatenate(cols, axis=-1)
        wm = jnp.transpose(w_pt, (2, 3, 1, 0)).reshape(9 * c, -1)
        y = jnp.maximum(jnp.einsum("nhwk,ko->nhwo", patches, wm) + b_pt, 0.0)
        hp, wp = ho // 2, wo // 2
        y = y[:, :hp * 2, :wp * 2, :]
        return y.reshape(y.shape[0], hp, 2, wp, 2, -1).max(axis=(2, 4))

    y1 = conv_relu_pool_ref(x, raw["conv1_w"], raw["conv1_b"])
    y2 = conv_relu_pool_ref(y1, raw["conv2_w"], raw["conv2_b"])
    flat = jnp.transpose(y2, (0, 3, 1, 2)).reshape(n, -1)     # NCHW .view()
    h1 = jnp.maximum(flat @ raw["fc1_w"].T + raw["fc1_b"], 0.0)
    h2 = jnp.maximum(h1 @ raw["fc2_w"].T + raw["fc2_b"], 0.0)
    out = h2 @ raw["fc3_w"].T + raw["fc3_b"]
    return h2, out


def _norm_max_err(a, b):
    return float(jnp.max(jnp.abs(a - b))) / (float(jnp.max(jnp.abs(b))) + 1e-6)


if __name__ == "__main__":
    key = jax.random.PRNGKey(0)
    pkey, xkey, zkey = jax.random.split(key, 3)
    raw = init_params(pkey)
    params = prepare_params(raw)

    # fc1 expects 2304 = 64*6*6 features -> the input must be (N, 3, 32, 32).
    x = jax.random.normal(xkey, (2, 3, 32, 32), jnp.float32)

    fwd = jax.jit(svhn_cnn_forward)
    h2, out = jax.block_until_ready(fwd(params, x))
    assert h2.shape == (2, 84) and out.shape == (2, 10)

    rh2, rout = reference_forward(raw, x)
    # Pallas path uses bf16 operands with f32 accumulation -> small mixed-precision diff.
    assert _norm_max_err(h2, rh2) < 5e-2, _norm_max_err(h2, rh2)
    assert _norm_max_err(out, rout) < 5e-2, _norm_max_err(out, rout)

    # mapping path (start_layer_idx < 0): fc3 + log_softmax, pure f32.
    z = jax.random.normal(zkey, (2, 84), jnp.float32)
    z3, logp = jax.block_until_ready(jax.jit(svhn_cnn_mapping)(params, z))
    rz3 = z @ raw["fc3_w"].T + raw["fc3_b"]
    rlogp = jax.nn.log_softmax(rz3, axis=-1)
    assert z3.shape == (2, 10) and logp.shape == (2, 10)
    assert jnp.allclose(z3, rz3, rtol=1e-4, atol=1e-5)
    assert jnp.allclose(logp, rlogp, rtol=1e-4, atol=1e-5)

    print("KERNEL_OK")
</pallas_src>

<mosaic_0001>
module attributes {stable_mosaic.version = 11 : i64} {
  func.func @_conv_relu_pool_kernel(%arg0: i32, %arg1: memref<1x272x12xbf16, #tpu.memory_space<vmem>>, %arg2: memref<4x12x128xbf16, #tpu.memory_space<vmem>>, %arg3: memref<1x32xf32, #tpu.memory_space<vmem>>, %arg4: memref<1x240x32xbf16, #tpu.memory_space<vmem>>) attributes {dimension_semantics = [#tpu.dimension_semantics<parallel>], iteration_bounds = array<i64: 2>, scalar_prefetch = 0 : i64, scratch_operands = 0 : i64, tpu.core_type = #tpu.core_type<tc>, window_params = [{transform_indices = @transform_0, window_bounds = array<i64: 1, 272, 12>}, {pipeline_mode = #tpu.pipeline_mode<synchronous>, transform_indices = @transform_1, window_bounds = array<i64: 4, 12, 128>}, {pipeline_mode = #tpu.pipeline_mode<synchronous>, transform_indices = @transform_2, window_bounds = array<i64: 1, 32>}, {transform_indices = @transform_3, window_bounds = array<i64: 1, 240, 32>}]} {
    %c0 = arith.constant 0 : index
    %c0_0 = arith.constant 0 : index
    %c0_1 = arith.constant 0 : index
    %0 = vector.load %arg1[%c0, %c0_0, %c0_1] : memref<1x272x12xbf16, #tpu.memory_space<vmem>>, vector<1x240x12xbf16>
    %1 = vector.shape_cast %0 : vector<1x240x12xbf16> to vector<240x12xbf16>
    %c0_2 = arith.constant 0 : index
    %c0_3 = arith.constant 0 : index
    %c0_4 = arith.constant 0 : index
    %2 = vector.load %arg2[%c0_2, %c0_3, %c0_4] : memref<4x12x128xbf16, #tpu.memory_space<vmem>>, vector<1x12x128xbf16>
    %3 = vector.shape_cast %2 : vector<1x12x128xbf16> to vector<12x128xbf16>
    %cst = arith.constant dense<0.000000e+00> : vector<240x128xf32>
    %4 = tpu.matmul %1, %3, %cst {dimension_numbers = #tpu.dot_dimension_numbers<[1], [0], [0], [1], [0, 0, 1, 1], [], []>} : vector<240x12xbf16>, vector<12x128xbf16>, vector<240x128xf32> -> vector<240x128xf32>
    %c0_5 = arith.constant 0 : index
    %c1 = arith.constant 1 : index
    %c0_6 = arith.constant 0 : index
    %5 = vector.load %arg1[%c0_5, %c1, %c0_6] : memref<1x272x12xbf16, #tpu.memory_space<vmem>>, vector<1x240x12xbf16>
    %6 = vector.shape_cast %5 : vector<1x240x12xbf16> to vector<240x12xbf16>
    %c1_7 = arith.constant 1 : index
    %c0_8 = arith.constant 0 : index
    %c0_9 = arith.constant 0 : index
    %7 = vector.load %arg2[%c1_7, %c0_8, %c0_9] : memref<4x12x128xbf16, #tpu.memory_space<vmem>>, vector<1x12x128xbf16>
    %8 = vector.shape_cast %7 : vector<1x12x128xbf16> to vector<12x128xbf16>
    %cst_10 = arith.constant dense<0.000000e+00> : vector<240x128xf32>
    %9 = tpu.matmul %6, %8, %cst_10 {dimension_numbers = #tpu.dot_dimension_numbers<[1], [0], [0], [1], [0, 0, 1, 1], [], []>} : vector<240x12xbf16>, vector<12x128xbf16>, vector<240x128xf32> -> vector<240x128xf32>
    %10 = arith.addf %4, %9 : vector<240x128xf32>
    %c0_11 = arith.constant 0 : index
    %c16 = arith.constant 16 : index
    %c0_12 = arith.constant 0 : index
    %11 = vector.load %arg1[%c0_11, %c16, %c0_12] : memref<1x272x12xbf16, #tpu.memory_space<vmem>>, vector<1x240x12xbf16>
    %12 = vector.shape_cast %11 : vector<1x240x12xbf16> to vector<240x12xbf16>
    %c2 = arith.constant 2 : index
    %c0_13 = arith.constant 0 : index
    %c0_14 = arith.constant 0 : index
    %13 = vector.load %arg2[%c2, %c0_13, %c0_14] : memref<4x12x128xbf16, #tpu.memory_space<vmem>>, vector<1x12x128xbf16>
    %14 = vector.shape_cast %13 : vector<1x12x128xbf16> to vector<12x128xbf16>
    %cst_15 = arith.constant dense<0.000000e+00> : vector<240x128xf32>
    %15 = tpu.matmul %12, %14, %cst_15 {dimension_numbers = #tpu.dot_dimension_numbers<[1], [0], [0], [1], [0, 0, 1, 1], [], []>} : vector<240x12xbf16>, vector<12x128xbf16>, vector<240x128xf32> -> vector<240x128xf32>
    %16 = arith.addf %10, %15 : vector<240x128xf32>
    %c0_16 = arith.constant 0 : index
    %c17 = arith.constant 17 : index
    %c0_17 = arith.constant 0 : index
    %17 = vector.load %arg1[%c0_16, %c17, %c0_17] : memref<1x272x12xbf16, #tpu.memory_space<vmem>>, vector<1x240x12xbf16>
    %18 = vector.shape_cast %17 : vector<1x240x12xbf16> to vector<240x12xbf16>
    %c3 = arith.constant 3 : index
    %c0_18 = arith.constant 0 : index
    %c0_19 = arith.constant 0 : index
    %19 = vector.load %arg2[%c3, %c0_18, %c0_19] : memref<4x12x128xbf16, #tpu.memory_space<vmem>>, vector<1x12x128xbf16>
    %20 = vector.shape_cast %19 : vector<1x12x128xbf16> to vector<12x128xbf16>
    %cst_20 = arith.constant dense<0.000000e+00> : vector<240x128xf32>
    %21 = tpu.matmul %18, %20, %cst_20 {dimension_numbers = #tpu.dot_dimension_numbers<[1], [0], [0], [1], [0, 0, 1, 1], [], []>} : vector<240x12xbf16>, vector<12x128xbf16>, vector<240x128xf32> -> vector<240x128xf32>
    %22 = arith.addf %16, %21 : vector<240x128xf32>
    %23 = vector.extract_strided_slice %22 {offsets = [0, 0], sizes = [240, 32], strides = [1, 1]} : vector<240x128xf32> to vector<240x32xf32>
    %24 = vector.extract_strided_slice %22 {offsets = [0, 32], sizes = [240, 32], strides = [1, 1]} : vector<240x128xf32> to vector<240x32xf32>
    %25 = arith.maximumf %23, %24 : vector<240x32xf32>
    %26 = vector.extract_strided_slice %22 {offsets = [0, 64], sizes = [240, 32], strides = [1, 1]} : vector<240x128xf32> to vector<240x32xf32>
    %27 = vector.extract_strided_slice %22 {offsets = [0, 96], sizes = [240, 32], strides = [1, 1]} : vector<240x128xf32> to vector<240x32xf32>
    %28 = arith.maximumf %26, %27 : vector<240x32xf32>
    %29 = arith.maximumf %25, %28 : vector<240x32xf32>
    %c0_21 = arith.constant 0 : index
    %c0_22 = arith.constant 0 : index
    %30 = vector.load %arg3[%c0_21, %c0_22] : memref<1x32xf32, #tpu.memory_space<vmem>>, vector<1x32xf32>
    %31 = vector.broadcast %30 : vector<1x32xf32> to vector<240x32xf32>
    %32 = arith.addf %29, %31 : vector<240x32xf32>
    %cst_23 = arith.constant 0.000000e+00 : f32
    %33 = vector.broadcast %cst_23 : f32 to vector<240x32xf32>
    %34 = arith.maximumf %32, %33 : vector<240x32xf32>
    %35 = arith.truncf %34 : vector<240x32xf32> to vector<240x32xbf16>
    %c0_24 = arith.constant 0 : index
    %c0_25 = arith.constant 0 : index
    %c0_26 = arith.constant 0 : index
    %36 = vector.load %arg4[%c0_24, %c0_25, %c0_26] : memref<1x240x32xbf16, #tpu.memory_space<vmem>>, vector<1x240x32xbf16>
    %37 = vector.shape_cast %36 : vector<1x240x32xbf16> to vector<240x32xbf16>
    %38 = vector.shape_cast %35 : vector<240x32xbf16> to vector<1x240x32xbf16>
    tpu.vector_store %arg4[%c0_24, %c0_25, %c0_26], %38 {strides = array<i32>} : memref<1x240x32xbf16, #tpu.memory_space<vmem>>, vector<1x240x32xbf16>,
    return
  }
  func.func @transform_0(%arg0: i32) -> (i32, i32, i32) {
    %c0_i32 = arith.constant 0 : i32
    %c0_i32_0 = arith.constant 0 : i32
    %c0_i32_1 = arith.constant 0 : i32
    return %arg0, %c0_i32, %c0_i32_0 : i32, i32, i32
  }
  func.func @transform_1(%arg0: i32) -> (i32, i32, i32) {
    %c0_i32 = arith.constant 0 : i32
    %c0_i32_0 = arith.constant 0 : i32
    %c0_i32_1 = arith.constant 0 : i32
    %c0_i32_2 = arith.constant 0 : i32
    return %c0_i32, %c0_i32_0, %c0_i32_1 : i32, i32, i32
  }
  func.func @transform_2(%arg0: i32) -> (i32, i32) {
    %c0_i32 = arith.constant 0 : i32
    %c0_i32_0 = arith.constant 0 : i32
    %c0_i32_1 = arith.constant 0 : i32
    return %c0_i32, %c0_i32_0 : i32, i32
  }
  func.func @transform_3(%arg0: i32) -> (i32, i32, i32) {
    %c0_i32 = arith.constant 0 : i32
    %c0_i32_0 = arith.constant 0 : i32
    %c0_i32_1 = arith.constant 0 : i32
    return %arg0, %c0_i32, %c0_i32_0 : i32, i32, i32
  }
}

module attributes {stable_mosaic.version = 11 : i64} {
  func.func @_conv_relu_pool_kernel(%arg0: i32, %arg1: memref<1x72x128xbf16, #tpu.memory_space<vmem>>, %arg2: memref<4x128x256xbf16, #tpu.memory_space<vmem>>, %arg3: memref<1x64xf32, #tpu.memory_space<vmem>>, %arg4: memref<1x48x64xbf16, #tpu.memory_space<vmem>>) attributes {dimension_semantics = [#tpu.dimension_semantics<parallel>], iteration_bounds = array<i64: 2>, scalar_prefetch = 0 : i64, scratch_operands = 0 : i64, tpu.core_type = #tpu.core_type<tc>, window_params = [{transform_indices = @transform_0, window_bounds = array<i64: 1, 72, 128>}, {pipeline_mode = #tpu.pipeline_mode<synchronous>, transform_indices = @transform_1, window_bounds = array<i64: 4, 128, 256>}, {pipeline_mode = #tpu.pipeline_mode<synchronous>, transform_indices = @transform_2, window_bounds = array<i64: 1, 64>}, {transform_indices = @transform_3, window_bounds = array<i64: 1, 48, 64>}]} {
    %c0 = arith.constant 0 : index
    %c0_0 = arith.constant 0 : index
    %c0_1 = arith.constant 0 : index
    %0 = vector.load %arg1[%c0, %c0_0, %c0_1] : memref<1x72x128xbf16, #tpu.memory_space<vmem>>, vector<1x48x128xbf16>
    %1 = vector.shape_cast %0 : vector<1x48x128xbf16> to vector<48x128xbf16>
    %c0_2 = arith.constant 0 : index
    %c0_3 = arith.constant 0 : index
    %c0_4 = arith.constant 0 : index
    %2 = vector.load %arg2[%c0_2, %c0_3, %c0_4] : memref<4x128x256xbf16, #tpu.memory_space<vmem>>, vector<1x128x256xbf16>
    %3 = vector.shape_cast %2 : vector<1x128x256xbf16> to vector<128x256xbf16>
    %cst = arith.constant dense<0.000000e+00> : vector<48x256xf32>
    %4 = tpu.matmul %1, %3, %cst {dimension_numbers = #tpu.dot_dimension_numbers<[1], [0], [0], [1], [0, 0, 1, 1], [], []>} : vector<48x128xbf16>, vector<128x256xbf16>, vector<48x256xf32> -> vector<48x256xf32>
    %c0_5 = arith.constant 0 : index
    %c1 = arith.constant 1 : index
    %c0_6 = arith.constant 0 : index
    %5 = vector.load %arg1[%c0_5, %c1, %c0_6] : memref<1x72x128xbf16, #tpu.memory_space<vmem>>, vector<1x48x128xbf16>
    %6 = vector.shape_cast %5 : vector<1x48x128xbf16> to vector<48x128xbf16>
    %c1_7 = arith.constant 1 : index
    %c0_8 = arith.constant 0 : index
    %c0_9 = arith.constant 0 : index
    %7 = vector.load %arg2[%c1_7, %c0_8, %c0_9] : memref<4x128x256xbf16, #tpu.memory_space<vmem>>, vector<1x128x256xbf16>
    %8 = vector.shape_cast %7 : vector<1x128x256xbf16> to vector<128x256xbf16>
    %cst_10 = arith.constant dense<0.000000e+00> : vector<48x256xf32>
    %9 = tpu.matmul %6, %8, %cst_10 {dimension_numbers = #tpu.dot_dimension_numbers<[1], [0], [0], [1], [0, 0, 1, 1], [], []>} : vector<48x128xbf16>, vector<128x256xbf16>, vector<48x256xf32> -> vector<48x256xf32>
    %10 = arith.addf %4, %9 : vector<48x256xf32>
    %c0_11 = arith.constant 0 : index
    %c8 = arith.constant 8 : index
    %c0_12 = arith.constant 0 : index
    %11 = vector.load %arg1[%c0_11, %c8, %c0_12] : memref<1x72x128xbf16, #tpu.memory_space<vmem>>, vector<1x48x128xbf16>
    %12 = vector.shape_cast %11 : vector<1x48x128xbf16> to vector<48x128xbf16>
    %c2 = arith.constant 2 : index
    %c0_13 = arith.constant 0 : index
    %c0_14 = arith.constant 0 : index
    %13 = vector.load %arg2[%c2, %c0_13, %c0_14] : memref<4x128x256xbf16, #tpu.memory_space<vmem>>, vector<1x128x256xbf16>
    %14 = vector.shape_cast %13 : vector<1x128x256xbf16> to vector<128x256xbf16>
    %cst_15 = arith.constant dense<0.000000e+00> : vector<48x256xf32>
    %15 = tpu.matmul %12, %14, %cst_15 {dimension_numbers = #tpu.dot_dimension_numbers<[1], [0], [0], [1], [0, 0, 1, 1], [], []>} : vector<48x128xbf16>, vector<128x256xbf16>, vector<48x256xf32> -> vector<48x256xf32>
    %16 = arith.addf %10, %15 : vector<48x256xf32>
    %c0_16 = arith.constant 0 : index
    %c9 = arith.constant 9 : index
    %c0_17 = arith.constant 0 : index
    %17 = vector.load %arg1[%c0_16, %c9, %c0_17] : memref<1x72x128xbf16, #tpu.memory_space<vmem>>, vector<1x48x128xbf16>
    %18 = vector.shape_cast %17 : vector<1x48x128xbf16> to vector<48x128xbf16>
    %c3 = arith.constant 3 : index
    %c0_18 = arith.constant 0 : index
    %c0_19 = arith.constant 0 : index
    %19 = vector.load %arg2[%c3, %c0_18, %c0_19] : memref<4x128x256xbf16, #tpu.memory_space<vmem>>, vector<1x128x256xbf16>
    %20 = vector.shape_cast %19 : vector<1x128x256xbf16> to vector<128x256xbf16>
    %cst_20 = arith.constant dense<0.000000e+00> : vector<48x256xf32>
    %21 = tpu.matmul %18, %20, %cst_20 {dimension_numbers = #tpu.dot_dimension_numbers<[1], [0], [0], [1], [0, 0, 1, 1], [], []>} : vector<48x128xbf16>, vector<128x256xbf16>, vector<48x256xf32> -> vector<48x256xf32>
    %22 = arith.addf %16, %21 : vector<48x256xf32>
    %23 = vector.extract_strided_slice %22 {offsets = [0, 0], sizes = [48, 64], strides = [1, 1]} : vector<48x256xf32> to vector<48x64xf32>
    %24 = vector.extract_strided_slice %22 {offsets = [0, 64], sizes = [48, 64], strides = [1, 1]} : vector<48x256xf32> to vector<48x64xf32>
    %25 = arith.maximumf %23, %24 : vector<48x64xf32>
    %26 = vector.extract_strided_slice %22 {offsets = [0, 128], sizes = [48, 64], strides = [1, 1]} : vector<48x256xf32> to vector<48x64xf32>
    %27 = vector.extract_strided_slice %22 {offsets = [0, 192], sizes = [48, 64], strides = [1, 1]} : vector<48x256xf32> to vector<48x64xf32>
    %28 = arith.maximumf %26, %27 : vector<48x64xf32>
    %29 = arith.maximumf %25, %28 : vector<48x64xf32>
    %c0_21 = arith.constant 0 : index
    %c0_22 = arith.constant 0 : index
    %30 = vector.load %arg3[%c0_21, %c0_22] : memref<1x64xf32, #tpu.memory_space<vmem>>, vector<1x64xf32>
    %31 = vector.broadcast %30 : vector<1x64xf32> to vector<48x64xf32>
    %32 = arith.addf %29, %31 : vector<48x64xf32>
    %cst_23 = arith.constant 0.000000e+00 : f32
    %33 = vector.broadcast %cst_23 : f32 to vector<48x64xf32>
    %34 = arith.maximumf %32, %33 : vector<48x64xf32>
    %35 = arith.truncf %34 : vector<48x64xf32> to vector<48x64xbf16>
    %c0_24 = arith.constant 0 : index
    %c0_25 = arith.constant 0 : index
    %c0_26 = arith.constant 0 : index
    %36 = vector.load %arg4[%c0_24, %c0_25, %c0_26] : memref<1x48x64xbf16, #tpu.memory_space<vmem>>, vector<1x48x64xbf16>
    %37 = vector.shape_cast %36 : vector<1x48x64xbf16> to vector<48x64xbf16>
    %38 = vector.shape_cast %35 : vector<48x64xbf16> to vector<1x48x64xbf16>
    tpu.vector_store %arg4[%c0_24, %c0_25, %c0_26], %38 {strides = array<i32>} : memref<1x48x64xbf16, #tpu.memory_space<vmem>>, vector<1x48x64xbf16>,
    return
  }
  func.func @transform_0(%arg0: i32) -> (i32, i32, i32) {
    %c0_i32 = arith.constant 0 : i32
    %c0_i32_0 = arith.constant 0 : i32
    %c0_i32_1 = arith.constant 0 : i32
    return %arg0, %c0_i32, %c0_i32_0 : i32, i32, i32
  }
  func.func @transform_1(%arg0: i32) -> (i32, i32, i32) {
    %c0_i32 = arith.constant 0 : i32
    %c0_i32_0 = arith.constant 0 : i32
    %c0_i32_1 = arith.constant 0 : i32
    %c0_i32_2 = arith.constant 0 : i32
    return %c0_i32, %c0_i32_0, %c0_i32_1 : i32, i32, i32
  }
  func.func @transform_2(%arg0: i32) -> (i32, i32) {
    %c0_i32 = arith.constant 0 : i32
    %c0_i32_0 = arith.constant 0 : i32
    %c0_i32_1 = arith.constant 0 : i32
    return %c0_i32, %c0_i32_0 : i32, i32
  }
  func.func @transform_3(%arg0: i32) -> (i32, i32, i32) {
    %c0_i32 = arith.constant 0 : i32
    %c0_i32_0 = arith.constant 0 : i32
    %c0_i32_1 = arith.constant 0 : i32
    return %arg0, %c0_i32, %c0_i32_0 : i32, i32, i32
  }
}

module attributes {stable_mosaic.version = 11 : i64} {
  func.func @_fc_fused_kernel(%arg0: i32, %arg1: memref<8x2304xbf16, #tpu.memory_space<vmem>>, %arg2: memref<2304x128xbf16, #tpu.memory_space<vmem>>, %arg3: memref<1x128xf32, #tpu.memory_space<vmem>>, %arg4: memref<128x84xf32, #tpu.memory_space<vmem>>, %arg5: memref<1x84xf32, #tpu.memory_space<vmem>>, %arg6: memref<84x10xf32, #tpu.memory_space<vmem>>, %arg7: memref<1x10xf32, #tpu.memory_space<vmem>>, %arg8: memref<8x84xf32, #tpu.memory_space<vmem>>, %arg9: memref<8x10xf32, #tpu.memory_space<vmem>>) attributes {dimension_semantics = [#tpu.dimension_semantics<parallel>], iteration_bounds = array<i64: 1>, scalar_prefetch = 0 : i64, scratch_operands = 0 : i64, tpu.core_type = #tpu.core_type<tc>, window_params = [{transform_indices = @transform_0, window_bounds = array<i64: 8, 2304>}, {pipeline_mode = #tpu.pipeline_mode<synchronous>, transform_indices = @transform_1, window_bounds = array<i64: 2304, 128>}, {pipeline_mode = #tpu.pipeline_mode<synchronous>, transform_indices = @transform_2, window_bounds = array<i64: 1, 128>}, {pipeline_mode = #tpu.pipeline_mode<synchronous>, transform_indices = @transform_3, window_bounds = array<i64: 128, 84>}, {pipeline_mode = #tpu.pipeline_mode<synchronous>, transform_indices = @transform_4, window_bounds = array<i64: 1, 84>}, {pipeline_mode = #tpu.pipeline_mode<synchronous>, transform_indices = @transform_5, window_bounds = array<i64: 84, 10>}, {pipeline_mode = #tpu.pipeline_mode<synchronous>, transform_indices = @transform_6, window_bounds = array<i64: 1, 10>}, {transform_indices = @transform_7, window_bounds = array<i64: 8, 84>}, {transform_indices = @transform_8, window_bounds = array<i64: 8, 10>}]} {
    %c0 = arith.constant 0 : index
    %c0_0 = arith.constant 0 : index
    %0 = vector.load %arg1[%c0, %c0_0] : memref<8x2304xbf16, #tpu.memory_space<vmem>>, vector<8x2304xbf16>
    %c0_1 = arith.constant 0 : index
    %c0_2 = arith.constant 0 : index
    %1 = vector.load %arg2[%c0_1, %c0_2] : memref<2304x128xbf16, #tpu.memory_space<vmem>>, vector<2304x128xbf16>
    %cst = arith.constant dense<0.000000e+00> : vector<8x128xf32>
    %2 = tpu.matmul %0, %1, %cst {dimension_numbers = #tpu.dot_dimension_numbers<[1], [0], [0], [1], [0, 0, 1, 1], [], []>} : vector<8x2304xbf16>, vector<2304x128xbf16>, vector<8x128xf32> -> vector<8x128xf32>
    %c0_3 = arith.constant 0 : index
    %c0_4 = arith.constant 0 : index
    %3 = vector.load %arg3[%c0_3, %c0_4] : memref<1x128xf32, #tpu.memory_space<vmem>>, vector<1x128xf32>
    %4 = vector.broadcast %3 : vector<1x128xf32> to vector<8x128xf32>
    %5 = arith.addf %2, %4 : vector<8x128xf32>
    %cst_5 = arith.constant 0.000000e+00 : f32
    %6 = vector.broadcast %cst_5 : f32 to vector<8x128xf32>
    %7 = arith.maximumf %5, %6 : vector<8x128xf32>
    %c0_6 = arith.constant 0 : index
    %c0_7 = arith.constant 0 : index
    %8 = vector.load %arg4[%c0_6, %c0_7] : memref<128x84xf32, #tpu.memory_space<vmem>>, vector<128x84xf32>
    %cst_8 = arith.constant dense<0.000000e+00> : vector<8x84xf32>
    %9 = tpu.matmul %7, %8, %cst_8 {dimension_numbers = #tpu.dot_dimension_numbers<[1], [0], [0], [1], [0, 0, 1, 1], [], []>} : vector<8x128xf32>, vector<128x84xf32>, vector<8x84xf32> -> vector<8x84xf32>
    %c0_9 = arith.constant 0 : index
    %c0_10 = arith.constant 0 : index
    %10 = vector.load %arg5[%c0_9, %c0_10] : memref<1x84xf32, #tpu.memory_space<vmem>>, vector<1x84xf32>
    %11 = vector.broadcast %10 : vector<1x84xf32> to vector<8x84xf32>
    %12 = arith.addf %9, %11 : vector<8x84xf32>
    %cst_11 = arith.constant 0.000000e+00 : f32
    %13 = vector.broadcast %cst_11 : f32 to vector<8x84xf32>
    %14 = arith.maximumf %12, %13 : vector<8x84xf32>
    %c0_12 = arith.constant 0 : index
    %c0_13 = arith.constant 0 : index
    %15 = vector.load %arg6[%c0_12, %c0_13] : memref<84x10xf32, #tpu.memory_space<vmem>>, vector<84x10xf32>
    %cst_14 = arith.constant dense<0.000000e+00> : vector<8x10xf32>
    %16 = tpu.matmul %14, %15, %cst_14 {dimension_numbers = #tpu.dot_dimension_numbers<[1], [0], [0], [1], [0, 0, 1, 1], [], []>} : vector<8x84xf32>, vector<84x10xf32>, vector<8x10xf32> -> vector<8x10xf32>
    %c0_15 = arith.constant 0 : index
    %c0_16 = arith.constant 0 : index
    %17 = vector.load %arg7[%c0_15, %c0_16] : memref<1x10xf32, #tpu.memory_space<vmem>>, vector<1x10xf32>
    %18 = vector.broadcast %17 : vector<1x10xf32> to vector<8x10xf32>
    %19 = arith.addf %16, %18 : vector<8x10xf32>
    %c0_17 = arith.constant 0 : index
    %c0_18 = arith.constant 0 : index
    %20 = vector.load %arg8[%c0_17, %c0_18] : memref<8x84xf32, #tpu.memory_space<vmem>>, vector<8x84xf32>
    tpu.vector_store %arg8[%c0_17, %c0_18], %14 {strides = array<i32>} : memref<8x84xf32, #tpu.memory_space<vmem>>, vector<8x84xf32>,
    %c0_19 = arith.constant 0 : index
    %c0_20 = arith.constant 0 : index
    %21 = vector.load %arg9[%c0_19, %c0_20] : memref<8x10xf32, #tpu.memory_space<vmem>>, vector<8x10xf32>
    tpu.vector_store %arg9[%c0_19, %c0_20], %19 {strides = array<i32>} : memref<8x10xf32, #tpu.memory_space<vmem>>, vector<8x10xf32>,
    return
  }
  func.func @transform_0(%arg0: i32) -> (i32, i32) {
    %c0_i32 = arith.constant 0 : i32
    %c0_i32_0 = arith.constant 0 : i32
    return %arg0, %c0_i32 : i32, i32
  }
  func.func @transform_1(%arg0: i32) -> (i32, i32) {
    %c0_i32 = arith.constant 0 : i32
    %c0_i32_0 = arith.constant 0 : i32
    %c0_i32_1 = arith.constant 0 : i32
    return %c0_i32, %c0_i32_0 : i32, i32
  }
  func.func @transform_2(%arg0: i32) -> (i32, i32) {
    %c0_i32 = arith.constant 0 : i32
    %c0_i32_0 = arith.constant 0 : i32
    %c0_i32_1 = arith.constant 0 : i32
    return %c0_i32, %c0_i32_0 : i32, i32
  }
  func.func @transform_3(%arg0: i32) -> (i32, i32) {
    %c0_i32 = arith.constant 0 : i32
    %c0_i32_0 = arith.constant 0 : i32
    %c0_i32_1 = arith.constant 0 : i32
    return %c0_i32, %c0_i32_0 : i32, i32
  }
  func.func @transform_4(%arg0: i32) -> (i32, i32) {
    %c0_i32 = arith.constant 0 : i32
    %c0_i32_0 = arith.constant 0 : i32
    %c0_i32_1 = arith.constant 0 : i32
    return %c0_i32, %c0_i32_0 : i32, i32
  }
  func.func @transform_5(%arg0: i32) -> (i32, i32) {
    %c0_i32 = arith.constant 0 : i32
    %c0_i32_0 = arith.constant 0 : i32
    %c0_i32_1 = arith.constant 0 : i32
    return %c0_i32, %c0_i32_0 : i32, i32
  }
  func.func @transform_6(%arg0: i32) -> (i32, i32) {
    %c0_i32 = arith.constant 0 : i32
    %c0_i32_0 = arith.constant 0 : i32
    %c0_i32_1 = arith.constant 0 : i32
    return %c0_i32, %c0_i32_0 : i32, i32
  }
  func.func @transform_7(%arg0: i32) -> (i32, i32) {
    %c0_i32 = arith.constant 0 : i32
    %c0_i32_0 = arith.constant 0 : i32
    return %arg0, %c0_i32 : i32, i32
  }
  func.func @transform_8(%arg0: i32) -> (i32, i32) {
    %c0_i32 = arith.constant 0 : i32
    %c0_i32_0 = arith.constant 0 : i32
    return %arg0, %c0_i32 : i32, i32
  }
}

</mosaic_0001>

<llo_original>
// kernel: svhn_cnn_forward.3
$region0: #{svhn_cnn_forward.3}
  #allocation0 [shape = 'u32[]', space=smem, size = 0x4, offset = 0x4, fixed_abs, tag = 'smem constant byte address 0x4 - core index']
  #allocation1 [shape = 'u32[144,128]{1,0:T(1,128)}', space=vmem, size = 0x12000, scoped, tag = 'internal scratch']
  %s0 = inlined_call_operand.vmem [shape: bf16[2,272,12], index: 0, kind: input, shape index: {}]
  %s1 = inlined_call_operand.vmem [shape: bf16[4,12,128], index: 1, kind: input, shape index: {}]
  %s2 = inlined_call_operand.vmem [shape: f32[1,32], index: 2, kind: input, shape index: {}]
  %s3 = inlined_call_operand.vmem [shape: bf16[2,240,32], index: 3, kind: output, shape index: {}]
  %s4 = sld [smem:[#allocation0]]
  $region45: #{svhn_cnn_forward.3} parent=0
    _
  %s6 = ssub.s32 1, %s4
  %s7 = scalar_select 0, %s6, %s4
  loop: start=0, step=1, limit=4
  $region2: #{svhn_cnn_forward.3} parent=0 // loop_pre_header
    _
  $region3: #{svhn_cnn_forward.3} parent=0 // loop_header
    %s9 = sphi 0, %s13
    %p10 = scmp.ge.s32.totalorder %s9, 4
    %s19 = sphi 0, %s21
    %s22 = sphi 0, %s19
    %s23 = sphi 0, %s22
    %s39 = sphi 0, %s23
    %s43 = sphi 0, %s43
    %s45 = sphi 0, %s43
    %s46 = sphi 0, %s45
    %s60 = sphi 0, %s46
    %s64 = sphi 0, %s64
    %s66 = sphi 0, %s64
    %s67 = sphi 0, %s66
    %s81 = sphi 0, %s67
    %s87 = sphi 0, %s89
    %s90 = sphi 0, %s87
    %s91 = sphi 0, %s90
    %s107 = sphi 0, %s91
  $region4: #{svhn_cnn_forward.3} parent=0 // loop_header_branch
    %12 = sbr.rel (%p10) target = $region8
  $region5: #{svhn_cnn_forward.3} parent=0 // loop_body
    %s14 = ssub.s32 %s9, 1
    %s15 = ssub.s32 %s9, 2
    %s16 = sadd.s32 %s9, 1
    %s17 = ssub.s32 %s9, %s16
    %p18 = scmp.eq.s32.totalorder %s17, 0
    %s20 = sadd.s32 %s19, 1
    %s21 = scalar_select %p18, %s19, %s20
    %p24 = pneg %p18
    %p25 = scmp.eq.s32.totalorder %s9, 1
    %p26 = por %p24, %p25
    %p27 = scmp.ne.s32.totalorder %s19, %s22
    %p28 = scmp.eq.s32.totalorder %s9, 0
    %p29 = por %p27, %p28
    %p30 = scmp.ne.s32.totalorder %s19, %s22
    %p31 = scmp.eq.s32.totalorder %s14, 1
    %p32 = por %p30, %p31
    %p33 = scmp.ne.s32.totalorder %s22, %s23
    %p34 = scmp.eq.s32.totalorder %s14, 0
    %p35 = por %p33, %p34
    %p36 = scmp.ne.s32.totalorder %s22, %s23
    %p37 = scmp.eq.s32.totalorder %s15, 1
    %p38 = por %p36, %p37
    %p40 = scmp.ne.s32.totalorder %s23, %s39
    %p41 = scmp.eq.s32.totalorder %s15, 0
    %p42 = por %p40, %p41
    %s44 = sadd.s32 %s43, 1
    %p47 = scmp.eq.s32.totalorder %s9, 1
    %p48 = scmp.ne.s32.totalorder %s43, %s45
    %p49 = scmp.eq.s32.totalorder %s9, 0
    %p50 = por %p48, %p49
    %p51 = scmp.ne.s32.totalorder %s43, %s45
    %p52 = scmp.eq.s32.totalorder %s14, 1
    %p53 = por %p51, %p52
    %p54 = scmp.ne.s32.totalorder %s45, %s46
    %p55 = scmp.eq.s32.totalorder %s14, 0
    %p56 = por %p54, %p55
    %p57 = scmp.ne.s32.totalorder %s45, %s46
    %p58 = scmp.eq.s32.totalorder %s15, 1
    %p59 = por %p57, %p58
    %p61 = scmp.ne.s32.totalorder %s46, %s60
    %p62 = scmp.eq.s32.totalorder %s15, 0
    %p63 = por %p61, %p62
    %s65 = sadd.s32 %s64, 1
    %p68 = scmp.eq.s32.totalorder %s9, 1
    %p69 = scmp.ne.s32.totalorder %s64, %s66
    %p70 = scmp.eq.s32.totalorder %s9, 0
    %p71 = por %p69, %p70
    %p72 = scmp.ne.s32.totalorder %s64, %s66
    %p73 = scmp.eq.s32.totalorder %s14, 1
    %p74 = por %p72, %p73
    %p75 = scmp.ne.s32.totalorder %s66, %s67
    %p76 = scmp.eq.s32.totalorder %s14, 0
    %p77 = por %p75, %p76
    %p78 = scmp.ne.s32.totalorder %s66, %s67
    %p79 = scmp.eq.s32.totalorder %s15, 1
    %p80 = por %p78, %p79
    %p82 = scmp.ne.s32.totalorder %s67, %s81
    %p83 = scmp.eq.s32.totalorder %s15, 0
    %p84 = por %p82, %p83
    %s85 = ssub.s32 %s9, %s16
    %p86 = scmp.eq.s32.totalorder %s85, 0
    %s88 = sadd.s32 %s87, 1
    %s89 = scalar_select %p86, %s87, %s88
    %p92 = pneg %p86
    %p93 = scmp.eq.s32.totalorder %s9, 1
    %p94 = por %p92, %p93
    %p95 = scmp.ne.s32.totalorder %s87, %s90
    %p96 = scmp.eq.s32.totalorder %s9, 0
    %p97 = por %p95, %p96
    %p98 = scmp.ne.s32.totalorder %s87, %s90
    %p99 = scmp.eq.s32.totalorder %s14, 1
    %p100 = por %p98, %p99
    %p101 = scmp.ne.s32.totalorder %s90, %s91
    %p102 = scmp.eq.s32.totalorder %s14, 0
    %p103 = por %p101, %p102
    %p104 = scmp.ne.s32.totalorder %s90, %s91
    %p105 = scmp.eq.s32.totalorder %s15, 1
    %p106 = por %p104, %p105
    %p108 = scmp.ne.s32.totalorder %s91, %s107
    %p109 = scmp.eq.s32.totalorder %s15, 0
    %p110 = por %p108, %p109
    %p111 = scmp.le.s32.totalorder 1, %s9
    %p112 = scmp.lt.s32.totalorder %s9, 3
    %p113 = pnand %p111, %p112
    %p114 = pneg %p113
    // Predicated region
    $region9: #{svhn_cnn_forward.3} parent=5 // pred_check
      _
    $region10: #{svhn_cnn_forward.3} parent=5 // pred_check_branch
      %116 = sbr.rel (%p113) target = $region12
    $region11: #{svhn_cnn_forward.3} parent=5 // pred_region
      %s117 = ssub.s32 %s9, 1
      // Predicated region
      $region13: #{svhn_cnn_forward.3} parent=11 // pred_check
        %p118 = pneg %p56
      $region14: #{svhn_cnn_forward.3} parent=11 // pred_check_branch
        %120 = sbr.rel (%p118) target = $region16
      $region15: #{svhn_cnn_forward.3} parent=11 // pred_region
        _
      $region16: #{svhn_cnn_forward.3} parent=11 // pred_fallthru
        _
      // Predicated region
      $region17: #{svhn_cnn_forward.3} parent=11 // pred_check
        %p121 = pneg %p77
      $region18: #{svhn_cnn_forward.3} parent=11 // pred_check_branch
        %123 = sbr.rel (%p121) target = $region20
      $region19: #{svhn_cnn_forward.3} parent=11 // pred_region
        _
      $region20: #{svhn_cnn_forward.3} parent=11 // pred_fallthru
        _
    $region12: #{svhn_cnn_forward.3} parent=5 // pred_fallthru
      _
    %p124 = scmp.lt.s32.totalorder %s9, 2
    // Predicated region
    $region21: #{svhn_cnn_forward.3} parent=5 // pred_check
      %p125 = pneg %p124
    $region22: #{svhn_cnn_forward.3} parent=5 // pred_check_branch
      %127 = sbr.rel (%p125) target = $region24
    $region23: #{svhn_cnn_forward.3} parent=5 // pred_region
      // Predicated region
      $region25: #{svhn_cnn_forward.3} parent=23 // pred_check
        %p128 = pneg %p29
      $region26: #{svhn_cnn_forward.3} parent=23 // pred_check_branch
        %130 = sbr.rel (%p128) target = $region28
      $region27: #{svhn_cnn_forward.3} parent=23 // pred_region
        %p131 = scmp.lt.s32.totalorder %s9, 1
        %s132 = scalar_select %p131, %s9, 1
        %s133 = smul.addr %s132, 34
        %s134 = smul.addr %s133, 4
        %s135 = scalar_lea.vmem %s0, %s134
      $region28: #{svhn_cnn_forward.3} parent=23 // pred_fallthru
        _
    $region24: #{svhn_cnn_forward.3} parent=5 // pred_fallthru
      _
    %p136 = scmp.le.s32.totalorder 1, %s9
    %p137 = scmp.lt.s32.totalorder %s9, 3
    %p138 = pnand %p136, %p137
    %p139 = pneg %p138
    // Predicated region
    $region29: #{svhn_cnn_forward.3} parent=5 // pred_check
      _
    $region30: #{svhn_cnn_forward.3} parent=5 // pred_check_branch
      %141 = sbr.rel (%p138) target = $region32
    $region31: #{svhn_cnn_forward.3} parent=5 // pred_region
      %s142 = ssub.s32 %s9, 1
      %p143 = scmp.lt.s32.totalorder %s14, 1
      %s144 = scalar_select %p143, %s14, 1
      %s145 = smul.addr %s144, 34
      %s146 = smul.addr %s145, 4
      %s147 = scalar_lea.vmem %s0, %s146
      %p148 = pneg %p35
      %p149 = pneg %p32
      %p150 = pneg %p56
      %p151 = pneg %p53
      %p152 = pneg %p77
      %p153 = pneg %p74
      %p154 = pneg %p103
      %p155 = pneg %p100
      %p156 = scmp.lt.s32.totalorder %s14, 1
      %s157 = scalar_select %p156, %s14, 1
      %s158 = smul.addr %s157, 30
      %s159 = smul.addr %s158, 4
      %s160 = scalar_lea.vmem %s3, %s159
      %p161 = scmp.lt.s32.totalorder %s14, 1
      %s162 = scalar_select %p161, %s14, 1
      %s163 = smul.addr %s162, 34
      %s164 = smul.addr %s163, 4
      %s165 = scalar_lea.vmem %s0, %s164
      %p166 = scmp.lt.s32.totalorder %s14, 1
      %s167 = scalar_select %p166, %s14, 1
      %s168 = smul.addr %s167, 30
      %s169 = smul.addr %s168, 4
      %s170 = scalar_lea.vmem %s3, %s169
      %v172 = vld [vmem:[%s165] sm:$0xf]
      %v173 = vld [vmem:[%s165 + $0x4] sm:$0xf]
      %v174 = vld [vmem:[%s165 + $0x8] sm:$0xf]
      %v175 = vld [vmem:[%s165 + $0xc] sm:$0xf]
      %v176 = vld [vmem:[%s165 + $0x10] sm:$0xf]
      %v177 = vld [vmem:[%s165 + $0x14] sm:$0xf]
      %v178 = vld [vmem:[%s165 + $0x18] sm:$0xf]
      %v179 = vld [vmem:[%s165 + $0x1c] sm:$0xf]
      %v180 = vld [vmem:[%s165 + $0x20] sm:$0xf]
      %v181 = vld [vmem:[%s165 + $0x24] sm:$0xf]
      %v182 = vld [vmem:[%s165 + $0x28] sm:$0xf]
      %v183 = vld [vmem:[%s165 + $0x2c] sm:$0xf]
      %v184 = vld [vmem:[%s165 + $0x30] sm:$0xf]
      %v185 = vld [vmem:[%s165 + $0x34] sm:$0xf]
      %v186 = vld [vmem:[%s165 + $0x38] sm:$0xf]
      %v187 = vld [vmem:[%s165 + $0x3c] sm:$0xf]
      %v188 = vld [vmem:[%s165 + $0x40] sm:$0xf]
      %v189 = vld [vmem:[%s165 + $0x44] sm:$0xf]
      %v190 = vld [vmem:[%s165 + $0x48] sm:$0xf]
      %v191 = vld [vmem:[%s165 + $0x4c] sm:$0xf]
      %v192 = vld [vmem:[%s165 + $0x50] sm:$0xf]
      %v193 = vld [vmem:[%s165 + $0x54] sm:$0xf]
      %v194 = vld [vmem:[%s165 + $0x58] sm:$0xf]
      %v195 = vld [vmem:[%s165 + $0x5c] sm:$0xf]
      %v196 = vld [vmem:[%s165 + $0x60] sm:$0xf]
      %v197 = vld [vmem:[%s165 + $0x64] sm:$0xf]
      %v198 = vld [vmem:[%s165 + $0x68] sm:$0xf]
      %v199 = vld [vmem:[%s165 + $0x6c] sm:$0xf]
      %v200 = vld [vmem:[%s165 + $0x70] sm:$0xf]
      %v201 = vld [vmem:[%s165 + $0x74] sm:$0xf]
      %v202 = vld [vmem:[%s1] sm:$0xf]
      %v203 = vld [vmem:[%s1 + $0x4] sm:$0x3]
      %v204 = vld [vmem:[%s165 + $0x78] sm:$0x1]
      %s205 = scalar_lea.vmem %s1, 8
      %v206 = vld [vmem:[%s205] sm:$0xf]
      %v207 = vld [vmem:[%s205 + $0x4] sm:$0x3]
      %v239 = vunpack.c.l.b16 %v172
      %v240 = vunpack.c.l.b16 %v173
      %v241 = vunpack.c.l.b16 %v174
      %v242 = vunpack.c.l.b16 %v175
      %v243 = vunpack.c.l.b16 %v176
      %v244 = vunpack.c.l.b16 %v177
      %v245 = vunpack.c.l.b16 %v178
      %v246 = vunpack.c.l.b16 %v179
      %v247 = vunpack.c.l.b16 %v180
      %v248 = vunpack.c.l.b16 %v181
      %v249 = vunpack.c.l.b16 %v182
      %v250 = vunpack.c.l.b16 %v183
      %v251 = vunpack.c.l.b16 %v184
      %v252 = vunpack.c.l.b16 %v185
      %v253 = vunpack.c.l.b16 %v186
      %v254 = vunpack.c.l.b16 %v187
      %v255 = vunpack.c.l.b16 %v188
      %v256 = vunpack.c.l.b16 %v189
      %v257 = vunpack.c.l.b16 %v190
      %v258 = vunpack.c.l.b16 %v191
      %v259 = vunpack.c.l.b16 %v192
      %v260 = vunpack.c.l.b16 %v193
      %v261 = vunpack.c.l.b16 %v194
      %v262 = vunpack.c.l.b16 %v195
      %v263 = vunpack.c.l.b16 %v196
      %v264 = vunpack.c.l.b16 %v197
      %v265 = vunpack.c.l.b16 %v198
      %v266 = vunpack.c.l.b16 %v199
      %v267 = vunpack.c.l.b16 %v200
      %v268 = vunpack.c.l.b16 %v201
      %v269 = vunpack.c.l.b16 %v204
      %v270 = vpack.c.b16 %v240, %v239
      %v271 = vpack.c.b16 %v242, %v241
      %v272 = vpack.c.b16 %v244, %v243
      %v273 = vpack.c.b16 %v246, %v245
      %v274 = vpack.c.b16 %v248, %v247
      %v275 = vpack.c.b16 %v250, %v249
      %v276 = vpack.c.b16 %v252, %v251
      %v277 = vpack.c.b16 %v254, %v253
      %v278 = vpack.c.b16 %v256, %v255
      %v279 = vpack.c.b16 %v258, %v257
      %v280 = vpack.c.b16 %v260, %v259
      %v281 = vpack.c.b16 %v262, %v261
      %v282 = vpack.c.b16 %v264, %v263
      %v283 = vpack.c.b16 %v266, %v265
      %v284 = vpack.c.b16 %v268, %v267
      %v285 = vpack.c.b16 %v269, %v269
      %vm286 = vsmask.f32 7424
      %v288 = vshrl.u32 %v270, 16
      %v290 = vshll.u32 %v270, 16
      %v292 = vrot.slane %v290, 1
      %v293 = vor.u32 %v288, %v292
      %v295 = vshll.u32 %v271, 16
      %v297 = vrot.slane %v295, 1
      %v298 = vsel %vm286, %v293, %v297
      %v299 = vshrl.u32 %v271, 16
      %v301 = vor.u32 %v299, %v297
      %v303 = vshll.u32 %v272, 16
      %v305 = vrot.slane %v303, 1
      %v306 = vsel %vm286, %v301, %v305
      %v307 = vshrl.u32 %v272, 16
      %v309 = vor.u32 %v307, %v305
      %v311 = vshll.u32 %v273, 16
      %v313 = vrot.slane %v311, 1
      %v314 = vsel %vm286, %v309, %v313
      %v315 = vshrl.u32 %v273, 16
      %v317 = vor.u32 %v315, %v313
      %v319 = vshll.u32 %v274, 16
      %v321 = vrot.slane %v319, 1
      %v322 = vsel %vm286, %v317, %v321
      %v323 = vshrl.u32 %v274, 16
      %v325 = vor.u32 %v323, %v321
      %v327 = vshll.u32 %v275, 16
      %v329 = vrot.slane %v327, 1
      %v330 = vsel %vm286, %v325, %v329
      %v331 = vshrl.u32 %v275, 16
      %v333 = vor.u32 %v331, %v329
      %v335 = vshll.u32 %v276, 16
      %v337 = vrot.slane %v335, 1
      %v338 = vsel %vm286, %v333, %v337
      %v339 = vshrl.u32 %v276, 16
      %v341 = vor.u32 %v339, %v337
      %v343 = vshll.u32 %v277, 16
      %v345 = vrot.slane %v343, 1
      %v346 = vsel %vm286, %v341, %v345
      %v347 = vshrl.u32 %v277, 16
      %v349 = vor.u32 %v347, %v345
      %v351 = vshll.u32 %v278, 16
      %v353 = vrot.slane %v351, 1
      %v354 = vsel %vm286, %v349, %v353
      %v355 = vshrl.u32 %v278, 16
      %v357 = vor.u32 %v355, %v353
      %v359 = vshll.u32 %v279, 16
      %v361 = vrot.slane %v359, 1
      %v362 = vsel %vm286, %v357, %v361
      %v363 = vshrl.u32 %v279, 16
      %v365 = vor.u32 %v363, %v361
      %v367 = vshll.u32 %v280, 16
      %v369 = vrot.slane %v367, 1
      %v370 = vsel %vm286, %v365, %v369
      %v371 = vshrl.u32 %v280, 16
      %v373 = vor.u32 %v371, %v369
      %v375 = vshll.u32 %v281, 16
      %v377 = vrot.slane %v375, 1
      %v378 = vsel %vm286, %v373, %v377
      %v379 = vshrl.u32 %v281, 16
      %v381 = vor.u32 %v379, %v377
      %v383 = vshll.u32 %v282, 16
      %v385 = vrot.slane %v383, 1
      %v386 = vsel %vm286, %v381, %v385
      %v387 = vshrl.u32 %v282, 16
      %v389 = vor.u32 %v387, %v385
      %v391 = vshll.u32 %v283, 16
      %v393 = vrot.slane %v391, 1
      %v394 = vsel %vm286, %v389, %v393
      %v395 = vshrl.u32 %v283, 16
      %v397 = vor.u32 %v395, %v393
      %v399 = vshll.u32 %v284, 16
      %v401 = vrot.slane %v399, 1
      %v402 = vsel %vm286, %v397, %v401
      %v403 = vshrl.u32 %v284, 16
      %v405 = vor.u32 %v403, %v401
      %v407 = vshll.u32 %v285, 16
      %v409 = vrot.slane %v407, 1
      %v410 = vsel %vm286, %v405, %v409
      %v413 = vunpack.c.l.b16 %v206
      %v414 = vunpack.c.l.b16 %v207
      %v415 = vpack.c.b16 %v414, %v413
      %vm416 = vcmask 97280
      %v418 = vsel %vm416, %v298, 0
      %v421 = vsel %vm416, %v306, 0
      %v424 = vsel %vm416, %v314, 0
      %v427 = vsel %vm416, %v322, 0
      %v430 = vsel %vm416, %v330, 0
      %v433 = vsel %vm416, %v338, 0
      %v436 = vsel %vm416, %v346, 0
      %v439 = vsel %vm416, %v354, 0
      %v442 = vsel %vm416, %v362, 0
      %v445 = vsel %vm416, %v370, 0
      %v448 = vsel %vm416, %v378, 0
      %v451 = vsel %vm416, %v386, 0
      %v454 = vsel %vm416, %v394, 0
      %v457 = vsel %vm416, %v402, 0
      %v460 = vsel %vm416, %v410, 0
      %vm462 = vcmask 1045504
      %v464 = vsel %vm462, %v415, 0
      %466 = vmatprep.subr.bf16.mxu0 0
      %467 = vmatpush1.bf16.msra.mxu0 %v464
      %468 = vmatprep.subr.bf16.mxu0 0
      %469 = vmatpush1.bf16.msra.mxu0 0
      %470 = vmatprep.subr.bf16.mxu0 0
      %471 = vmatpush1.bf16.msra.mxu0 0
      %472 = vmatprep.subr.bf16.mxu0 0
      %473 = vmatpush1.bf16.msra.mxu0 0
      %474 = vmatprep.subr.bf16.mxu0 0
      %475 = vmatpush1.bf16.msra.mxu0 0
      %476 = vmatprep.subr.bf16.mxu0 0
      %477 = vmatpush1.bf16.msra.mxu0 0
      %478 = vmatprep.subr.bf16.mxu0 0
      %479 = vmatpush1.bf16.msra.mxu0 0
      %480 = vmatprep.subr.bf16.mxu0 0
      %481 = vmatpush1.bf16.msra.mxu0 0
      %482 = vmatprep.subr.bf16.mxu0 0
      %483 = vmatpush1.bf16.msra.mxu0 0
      %484 = vmatprep.subr.bf16.mxu0 0
      %485 = vmatpush1.bf16.msra.mxu0 0
      %486 = vmatprep.subr.bf16.mxu0 0
      %487 = vmatpush1.bf16.msra.mxu0 0
      %488 = vmatprep.subr.bf16.mxu0 0
      %489 = vmatpush1.bf16.msra.mxu0 0
      %490 = vmatprep.subr.bf16.mxu0 0
      %491 = vmatpush1.bf16.msra.mxu0 0
      %492 = vmatprep.subr.bf16.mxu0 0
      %493 = vmatpush1.bf16.msra.mxu0 0
      %494 = vmatprep.subr.bf16.mxu0 0
      %495 = vmatpush1.bf16.msra.mxu0 0
      %496 = vmatprep.subr.bf16.mxu0 0
      %497 = vmatpush1.bf16.msra.mxu0 0
      %498 = vmatprep.mubr.bf16.mxu0 0
      %499 = vmatmul.mubr.bf16.gmra.mrb[0].mxu0 %v418
      %v500 = vpop.f32.mrb[0].mxu0
      %v501 = vadd.f32 0.0, %v500
      %v502 = vpop.f32.mrb[0].mxu0
      %v503 = vpop.f32.mrb[0].mxu0
      %v504 = vadd.f32 0.0, %v503
      %v505 = vpop.f32.mrb[0].mxu0
      %506 = vmatprep.mubr.bf16.mxu0 0
      %507 = vmatmul.mubr.bf16.gmra.mrb[0].mxu0 %v421
      %v508 = vpop.f32.mrb[0].mxu0
      %v509 = vadd.f32 0.0, %v508
      %v510 = vpop.f32.mrb[0].mxu0
      %v511 = vpop.f32.mrb[0].mxu0
      %v512 = vadd.f32 0.0, %v511
      %v513 = vpop.f32.mrb[0].mxu0
      %514 = vmatprep.mubr.bf16.mxu0 0
      %515 = vmatmul.mubr.bf16.gmra.mrb[0].mxu0 %v424
      %v516 = vpop.f32.mrb[0].mxu0
      %v517 = vadd.f32 0.0, %v516
      %v518 = vpop.f32.mrb[0].mxu0
      %v519 = vpop.f32.mrb[0].mxu0
      %v520 = vadd.f32 0.0, %v519
      %v521 = vpop.f32.mrb[0].mxu0
      %522 = vmatprep.mubr.bf16.mxu0 0
      %523 = vmatmul.mubr.bf16.gmra.mrb[0].mxu0 %v427
      %v524 = vpop.f32.mrb[0].mxu0
      %v525 = vadd.f32 0.0, %v524
      %v526 = vpop.f32.mrb[0].mxu0
      %v527 = vpop.f32.mrb[0].mxu0
      %v528 = vadd.f32 0.0, %v527
      %v529 = vpop.f32.mrb[0].mxu0
      %530 = vmatprep.mubr.bf16.mxu0 0
      %531 = vmatmul.mubr.bf16.gmra.mrb[0].mxu0 %v430
      %v532 = vpop.f32.mrb[0].mxu0
      %v533 = vadd.f32 0.0, %v532
      %v534 = vpop.f32.mrb[0].mxu0
      %v535 = vpop.f32.mrb[0].mxu0
      %v536 = vadd.f32 0.0, %v535
      %v537 = vpop.f32.mrb[0].mxu0
      %538 = vmatprep.mubr.bf16.mxu0 0
      %539 = vmatmul.mubr.bf16.gmra.mrb[0].mxu0 %v433
      %v540 = vpop.f32.mrb[0].mxu0
      %v541 = vadd.f32 0.0, %v540
      %v542 = vpop.f32.mrb[0].mxu0
      %v543 = vpop.f32.mrb[0].mxu0
      %v544 = vadd.f32 0.0, %v543
      %v545 = vpop.f32.mrb[0].mxu0
      %546 = vmatprep.mubr.bf16.mxu0 0
      %547 = vmatmul.mubr.bf16.gmra.mrb[0].mxu0 %v436
      %v548 = vpop.f32.mrb[0].mxu0
      %v549 = vadd.f32 0.0, %v548
      %v550 = vpop.f32.mrb[0].mxu0
      %v551 = vpop.f32.mrb[0].mxu0
      %v552 = vadd.f32 0.0, %v551
      %v553 = vpop.f32.mrb[0].mxu0
      %554 = vmatprep.mubr.bf16.mxu0 0
      %555 = vmatmul.mubr.bf16.gmra.mrb[0].mxu0 %v439
      %v556 = vpop.f32.mrb[0].mxu0
      %v557 = vadd.f32 0.0, %v556
      %v558 = vpop.f32.mrb[0].mxu0
      %v559 = vpop.f32.mrb[0].mxu0
      %v560 = vadd.f32 0.0, %v559
      %v561 = vpop.f32.mrb[0].mxu0
      %562 = vmatprep.mubr.bf16.mxu0 0
      %563 = vmatmul.mubr.bf16.gmra.mrb[0].mxu0 %v442
      %v564 = vpop.f32.mrb[0].mxu0
      %v565 = vadd.f32 0.0, %v564
      %v566 = vpop.f32.mrb[0].mxu0
      %v567 = vpop.f32.mrb[0].mxu0
      %v568 = vadd.f32 0.0, %v567
      %v569 = vpop.f32.mrb[0].mxu0
      %570 = vmatprep.mubr.bf16.mxu0 0
      %571 = vmatmul.mubr.bf16.gmra.mrb[0].mxu0 %v445
      %v572 = vpop.f32.mrb[0].mxu0
      %v573 = vadd.f32 0.0, %v572
      %v574 = vpop.f32.mrb[0].mxu0
      %v575 = vpop.f32.mrb[0].mxu0
      %v576 = vadd.f32 0.0, %v575
      %v577 = vpop.f32.mrb[0].mxu0
      %578 = vmatprep.mubr.bf16.mxu0 0
      %579 = vmatmul.mubr.bf16.gmra.mrb[0].mxu0 %v448
      %v580 = vpop.f32.mrb[0].mxu0
      %v581 = vadd.f32 0.0, %v580
      %v582 = vpop.f32.mrb[0].mxu0
      %v583 = vpop.f32.mrb[0].mxu0
      %v584 = vadd.f32 0.0, %v583
      %v585 = vpop.f32.mrb[0].mxu0
      %586 = vmatprep.mubr.bf16.mxu0 0
      %587 = vmatmul.mubr.bf16.gmra.mrb[0].mxu0 %v451
      %v588 = vpop.f32.mrb[0].mxu0
      %v589 = vadd.f32 0.0, %v588
      %v590 = vpop.f32.mrb[0].mxu0
      %v591 = vpop.f32.mrb[0].mxu0
      %v592 = vadd.f32 0.0, %v591
      %v593 = vpop.f32.mrb[0].mxu0
      %594 = vmatprep.mubr.bf16.mxu0 0
      %595 = vmatmul.mubr.bf16.gmra.mrb[0].mxu0 %v454
      %v596 = vpop.f32.mrb[0].mxu0
      %v597 = vadd.f32 0.0, %v596
      %v598 = vpop.f32.mrb[0].mxu0
      %v599 = vpop.f32.mrb[0].mxu0
      %v600 = vadd.f32 0.0, %v599
      %v601 = vpop.f32.mrb[0].mxu0
      %602 = vmatprep.mubr.bf16.mxu0 0
      %603 = vmatmul.mubr.bf16.gmra.mrb[0].mxu0 %v457
      %v604 = vpop.f32.mrb[0].mxu0
      %v605 = vadd.f32 0.0, %v604
      %v606 = vpop.f32.mrb[0].mxu0
      %v607 = vpop.f32.mrb[0].mxu0
      %v608 = vadd.f32 0.0, %v607
      %v609 = vpop.f32.mrb[0].mxu0
      %610 = vmatprep.mubr.bf16.mxu0 0
      %611 = vmatmul.mubr.bf16.gmra.mrb[0].mxu0 %v460
      %v612 = vpop.f32.mrb[0].mxu0
      %v613 = vadd.f32 0.0, %v612
      %v614 = vpop.f32.mrb[0].mxu0
      %v615 = vpop.f32.mrb[0].mxu0
      %v616 = vadd.f32 0.0, %v615
      %v617 = vpop.f32.mrb[0].mxu0
      %618 = vdwg.mxu0
      %v621 = vunpack.c.l.b16 %v202
      %v622 = vunpack.c.l.b16 %v203
      %v623 = vpack.c.b16 %v622, %v621
      %v624 = vsel %vm416, %v270, 0
      %v626 = vsel %vm416, %v271, 0
      %v628 = vsel %vm416, %v272, 0
      %v630 = vsel %vm416, %v273, 0
      %v632 = vsel %vm416, %v274, 0
      %v634 = vsel %vm416, %v275, 0
      %v636 = vsel %vm416, %v276, 0
      %v638 = vsel %vm416, %v277, 0
      %v640 = vsel %vm416, %v278, 0
      %v642 = vsel %vm416, %v279, 0
      %v644 = vsel %vm416, %v280, 0
      %v646 = vsel %vm416, %v281, 0
      %v648 = vsel %vm416, %v282, 0
      %v650 = vsel %vm416, %v283, 0
      %v652 = vsel %vm416, %v284, 0
      %v655 = vsel %vm462, %v623, 0
      %657 = vmatprep.subr.bf16.mxu0 0
      %658 = vmatpush1.bf16.msra.mxu0 %v655
      %659 = vmatprep.subr.bf16.mxu0 0
      %660 = vmatpush1.bf16.msra.mxu0 0
      %661 = vmatprep.subr.bf16.mxu0 0
      %662 = vmatpush1.bf16.msra.mxu0 0
      %663 = vmatprep.subr.bf16.mxu0 0
      %664 = vmatpush1.bf16.msra.mxu0 0
      %665 = vmatprep.subr.bf16.mxu0 0
      %666 = vmatpush1.bf16.msra.mxu0 0
      %667 = vmatprep.subr.bf16.mxu0 0
      %668 = vmatpush1.bf16.msra.mxu0 0
      %669 = vmatprep.subr.bf16.mxu0 0
      %670 = vmatpush1.bf16.msra.mxu0 0
      %671 = vmatprep.subr.bf16.mxu0 0
      %672 = vmatpush1.bf16.msra.mxu0 0
      %673 = vmatprep.subr.bf16.mxu0 0
      %674 = vmatpush1.bf16.msra.mxu0 0
      %675 = vmatprep.subr.bf16.mxu0 0
      %676 = vmatpush1.bf16.msra.mxu0 0
      %677 = vmatprep.subr.bf16.mxu0 0
      %678 = vmatpush1.bf16.msra.mxu0 0
      %679 = vmatprep.subr.bf16.mxu0 0
      %680 = vmatpush1.bf16.msra.mxu0 0
      %681 = vmatprep.subr.bf16.mxu0 0
      %682 = vmatpush1.bf16.msra.mxu0 0
      %683 = vmatprep.subr.bf16.mxu0 0
      %684 = vmatpush1.bf16.msra.mxu0 0
      %685 = vmatprep.subr.bf16.mxu0 0
      %686 = vmatpush1.bf16.msra.mxu0 0
      %687 = vmatprep.subr.bf16.mxu0 0
      %688 = vmatpush1.bf16.msra.mxu0 0
      %689 = vmatprep.mubr.bf16.mxu0 0
      %690 = vmatmul.mubr.bf16.gmra.mrb[0].mxu0 %v624
      %v691 = vpop.f32.mrb[0].mxu0
      %v692 = vadd.f32 %v501, %v691
      %v693 = vpop.f32.mrb[0].mxu0
      %v694 = vpop.f32.mrb[0].mxu0
      %v695 = vadd.f32 %v504, %v694
      %v696 = vpop.f32.mrb[0].mxu0
      %697 = vmatprep.mubr.bf16.mxu0 0
      %698 = vmatmul.mubr.bf16.gmra.mrb[0].mxu0 %v626
      %v699 = vpop.f32.mrb[0].mxu0
      %v700 = vadd.f32 %v509, %v699
      %v701 = vpop.f32.mrb[0].mxu0
      %v702 = vpop.f32.mrb[0].mxu0
      %v703 = vadd.f32 %v512, %v702
      %v704 = vpop.f32.mrb[0].mxu0
      %705 = vmatprep.mubr.bf16.mxu0 0
      %706 = vmatmul.mubr.bf16.gmra.mrb[0].mxu0 %v628
      %v707 = vpop.f32.mrb[0].mxu0
      %v708 = vadd.f32 %v517, %v707
      %v709 = vpop.f32.mrb[0].mxu0
      %v710 = vpop.f32.mrb[0].mxu0
      %v711 = vadd.f32 %v520, %v710
      %v712 = vpop.f32.mrb[0].mxu0
      %713 = vmatprep.mubr.bf16.mxu0 0
      %714 = vmatmul.mubr.bf16.gmra.mrb[0].mxu0 %v630
      %v715 = vpop.f32.mrb[0].mxu0
      %v716 = vadd.f32 %v525, %v715
      %v717 = vpop.f32.mrb[0].mxu0
      %v718 = vpop.f32.mrb[0].mxu0
      %v719 = vadd.f32 %v528, %v718
      %v720 = vpop.f32.mrb[0].mxu0
      %721 = vmatprep.mubr.bf16.mxu0 0
      %722 = vmatmul.mubr.bf16.gmra.mrb[0].mxu0 %v632
      %v723 = vpop.f32.mrb[0].mxu0
      %v724 = vadd.f32 %v533, %v723
      %v725 = vpop.f32.mrb[0].mxu0
      %v726 = vpop.f32.mrb[0].mxu0
      %v727 = vadd.f32 %v536, %v726
      %v728 = vpop.f32.mrb[0].mxu0
      %729 = vmatprep.mubr.bf16.mxu0 0
      %730 = vmatmul.mubr.bf16.gmra.mrb[0].mxu0 %v634
      %v731 = vpop.f32.mrb[0].mxu0
      %v732 = vadd.f32 %v541, %v731
      %v733 = vpop.f32.mrb[0].mxu0
      %v734 = vpop.f32.mrb[0].mxu0
      %v735 = vadd.f32 %v544, %v734
      %v736 = vpop.f32.mrb[0].mxu0
      %737 = vmatprep.mubr.bf16.mxu0 0
      %738 = vmatmul.mubr.bf16.gmra.mrb[0].mxu0 %v636
      %v739 = vpop.f32.mrb[0].mxu0
      %v740 = vadd.f32 %v549, %v739
      %v741 = vpop.f32.mrb[0].mxu0
      %v742 = vpop.f32.mrb[0].mxu0
      %v743 = vadd.f32 %v552, %v742
      %v744 = vpop.f32.mrb[0].mxu0
      %745 = vmatprep.mubr.bf16.mxu0 0
      %746 = vmatmul.mubr.bf16.gmra.mrb[0].mxu0 %v638
      %v747 = vpop.f32.mrb[0].mxu0
      %v748 = vadd.f32 %v557, %v747
      %v749 = vpop.f32.mrb[0].mxu0
      %v750 = vpop.f32.mrb[0].mxu0
      %v751 = vadd.f32 %v560, %v750
      %v752 = vpop.f32.mrb[0].mxu0
      %753 = vmatprep.mubr.bf16.mxu0 0
      %754 = vmatmul.mubr.bf16.gmra.mrb[0].mxu0 %v640
      %v755 = vpop.f32.mrb[0].mxu0
      %v756 = vadd.f32 %v565, %v755
      %v757 = vpop.f32.mrb[0].mxu0
      %v758 = vpop.f32.mrb[0].mxu0
      %v759 = vadd.f32 %v568, %v758
      %v760 = vpop.f32.mrb[0].mxu0
      %761 = vmatprep.mubr.bf16.mxu0 0
      %762 = vmatmul.mubr.bf16.gmra.mrb[0].mxu0 %v642
      %v763 = vpop.f32.mrb[0].mxu0
      %v764 = vadd.f32 %v573, %v763
      %v765 = vpop.f32.mrb[0].mxu0
      %v766 = vpop.f32.mrb[0].mxu0
      %v767 = vadd.f32 %v576, %v766
      %v768 = vpop.f32.mrb[0].mxu0
      %769 = vmatprep.mubr.bf16.mxu0 0
      %770 = vmatmul.mubr.bf16.gmra.mrb[0].mxu0 %v644
      %v771 = vpop.f32.mrb[0].mxu0
      %v772 = vadd.f32 %v581, %v771
      %v773 = vpop.f32.mrb[0].mxu0
      %v774 = vpop.f32.mrb[0].mxu0
      %v775 = vadd.f32 %v584, %v774
      %v776 = vpop.f32.mrb[0].mxu0
      %777 = vmatprep.mubr.bf16.mxu0 0
      %778 = vmatmul.mubr.bf16.gmra.mrb[0].mxu0 %v646
      %v779 = vpop.f32.mrb[0].mxu0
      %v780 = vadd.f32 %v589, %v779
      %v781 = vpop.f32.mrb[0].mxu0
      %v782 = vpop.f32.mrb[0].mxu0
      %v783 = vadd.f32 %v592, %v782
      %v784 = vpop.f32.mrb[0].mxu0
      %785 = vmatprep.mubr.bf16.mxu0 0
      %786 = vmatmul.mubr.bf16.gmra.mrb[0].mxu0 %v648
      %v787 = vpop.f32.mrb[0].mxu0
      %v788 = vadd.f32 %v597, %v787
      %v789 = vpop.f32.mrb[0].mxu0
      %v790 = vpop.f32.mrb[0].mxu0
      %v791 = vadd.f32 %v600, %v790
      %v792 = vpop.f32.mrb[0].mxu0
      %793 = vmatprep.mubr.bf16.mxu0 0
      %794 = vmatmul.mubr.bf16.gmra.mrb[0].mxu0 %v650
      %v795 = vpop.f32.mrb[0].mxu0
      %v796 = vadd.f32 %v605, %v795
      %v797 = vpop.f32.mrb[0].mxu0
      %v798 = vpop.f32.mrb[0].mxu0
      %v799 = vadd.f32 %v608, %v798
      %v800 = vpop.f32.mrb[0].mxu0
      %801 = vmatprep.mubr.bf16.mxu0 0
      %802 = vmatmul.mubr.bf16.gmra.mrb[0].mxu0 %v652
      %v803 = vpop.f32.mrb[0].mxu0
      %v804 = vadd.f32 %v613, %v803
      %v805 = vpop.f32.mrb[0].mxu0
      %v806 = vpop.f32.mrb[0].mxu0
      %v807 = vadd.f32 %v616, %v806
      %v808 = vpop.f32.mrb[0].mxu0
      %809 = vdwg.mxu0
      %v810 = vld [vmem:[%s165 + $0x8] sm:$0xf]
      %v811 = vld [vmem:[%s165 + $0xc] sm:$0xf]
      %v812 = vld [vmem:[%s165 + $0x10] sm:$0xf]
      %v813 = vld [vmem:[%s165 + $0x14] sm:$0xf]
      %v814 = vld [vmem:[%s165 + $0x18] sm:$0xf]
      %v815 = vld [vmem:[%s165 + $0x1c] sm:$0xf]
      %v816 = vld [vmem:[%s165 + $0x20] sm:$0xf]
      %v817 = vld [vmem:[%s165 + $0x24] sm:$0xf]
      %v818 = vld [vmem:[%s165 + $0x28] sm:$0xf]
      %v819 = vld [vmem:[%s165 + $0x2c] sm:$0xf]
      %v820 = vld [vmem:[%s165 + $0x30] sm:$0xf]
      %v821 = vld [vmem:[%s165 + $0x34] sm:$0xf]
      %v822 = vld [vmem:[%s165 + $0x38] sm:$0xf]
      %v823 = vld [vmem:[%s165 + $0x3c] sm:$0xf]
      %v824 = vld [vmem:[%s165 + $0x40] sm:$0xf]
      %v825 = vld [vmem:[%s165 + $0x44] sm:$0xf]
      %v826 = vld [vmem:[%s165 + $0x48] sm:$0xf]
      %v827 = vld [vmem:[%s165 + $0x4c] sm:$0xf]
      %v828 = vld [vmem:[%s165 + $0x50] sm:$0xf]
      %v829 = vld [vmem:[%s165 + $0x54] sm:$0xf]
      %v830 = vld [vmem:[%s165 + $0x58] sm:$0xf]
      %v831 = vld [vmem:[%s165 + $0x5c] sm:$0xf]
      %v832 = vld [vmem:[%s165 + $0x60] sm:$0xf]
      %v833 = vld [vmem:[%s165 + $0x64] sm:$0xf]
      %v834 = vld [vmem:[%s165 + $0x68] sm:$0xf]
      %v835 = vld [vmem:[%s165 + $0x6c] sm:$0xf]
      %v836 = vld [vmem:[%s165 + $0x70] sm:$0xf]
      %v837 = vld [vmem:[%s165 + $0x74] sm:$0xf]
      %v838 = vld [vmem:[%s165 + $0x78] sm:$0xf]
      %v839 = vld [vmem:[%s165 + $0x7c] sm:$0xf]
      %s840 = scalar_lea.vmem %s1, 16
      %v841 = vld [vmem:[%s840] sm:$0xf]
      %v842 = vld [vmem:[%s840 + $0x4] sm:$0x3]
      %v873 = vunpack.c.l.b16 %v810
      %v874 = vunpack.c.l.b16 %v811
      %v875 = vunpack.c.l.b16 %v812
      %v876 = vunpack.c.l.b16 %v813
      %v877 = vunpack.c.l.b16 %v814
      %v878 = vunpack.c.l.b16 %v815
      %v879 = vunpack.c.l.b16 %v816
      %v880 = vunpack.c.l.b16 %v817
      %v881 = vunpack.c.l.b16 %v818
      %v882 = vunpack.c.l.b16 %v819
      %v883 = vunpack.c.l.b16 %v820
      %v884 = vunpack.c.l.b16 %v821
      %v885 = vunpack.c.l.b16 %v822
      %v886 = vunpack.c.l.b16 %v823
      %v887 = vunpack.c.l.b16 %v824
      %v888 = vunpack.c.l.b16 %v825
      %v889 = vunpack.c.l.b16 %v826
      %v890 = vunpack.c.l.b16 %v827
      %v891 = vunpack.c.l.b16 %v828
      %v892 = vunpack.c.l.b16 %v829
      %v893 = vunpack.c.l.b16 %v830
      %v894 = vunpack.c.l.b16 %v831
      %v895 = vunpack.c.l.b16 %v832
      %v896 = vunpack.c.l.b16 %v833
      %v897 = vunpack.c.l.b16 %v834
      %v898 = vunpack.c.l.b16 %v835
      %v899 = vunpack.c.l.b16 %v836
      %v900 = vunpack.c.l.b16 %v837
      %v901 = vunpack.c.l.b16 %v838
      %v902 = vunpack.c.l.b16 %v839
      %v903 = vpack.c.b16 %v874, %v873
      %v904 = vpack.c.b16 %v876, %v875
      %v905 = vpack.c.b16 %v878, %v877
      %v906 = vpack.c.b16 %v880, %v879
      %v907 = vpack.c.b16 %v882, %v881
      %v908 = vpack.c.b16 %v884, %v883
      %v909 = vpack.c.b16 %v886, %v885
      %v910 = vpack.c.b16 %v888, %v887
      %v911 = vpack.c.b16 %v890, %v889
      %v912 = vpack.c.b16 %v892, %v891
      %v913 = vpack.c.b16 %v894, %v893
      %v914 = vpack.c.b16 %v896, %v895
      %v915 = vpack.c.b16 %v898, %v897
      %v916 = vpack.c.b16 %v900, %v899
      %v917 = vpack.c.b16 %v902, %v901
      %v920 = vunpack.c.l.b16 %v841
      %v921 = vunpack.c.l.b16 %v842
      %v922 = vpack.c.b16 %v921, %v920
      %v924 = vsel %vm416, %v903, 0
      %v927 = vsel %vm416, %v904, 0
      %v930 = vsel %vm416, %v905, 0
      %v933 = vsel %vm416, %v906, 0
      %v936 = vsel %vm416, %v907, 0
      %v939 = vsel %vm416, %v908, 0
      %v942 = vsel %vm416, %v909, 0
      %v945 = vsel %vm416, %v910, 0
      %v948 = vsel %vm416, %v911, 0
      %v951 = vsel %vm416, %v912, 0
      %v954 = vsel %vm416, %v913, 0
      %v957 = vsel %vm416, %v914, 0
      %v960 = vsel %vm416, %v915, 0
      %v963 = vsel %vm416, %v916, 0
      %v966 = vsel %vm416, %v917, 0
      %v969 = vsel %vm462, %v922, 0
      %971 = vmatprep.subr.bf16.mxu0 0
      %972 = vmatpush1.bf16.msra.mxu0 %v969
      %973 = vmatprep.subr.bf16.mxu0 0
      %974 = vmatpush1.bf16.msra.mxu0 0
      %975 = vmatprep.subr.bf16.mxu0 0
      %976 = vmatpush1.bf16.msra.mxu0 0
      %977 = vmatprep.subr.bf16.mxu0 0
      %978 = vmatpush1.bf16.msra.mxu0 0
      %979 = vmatprep.subr.bf16.mxu0 0
      %980 = vmatpush1.bf16.msra.mxu0 0
      %981 = vmatprep.subr.bf16.mxu0 0
      %982 = vmatpush1.bf16.msra.mxu0 0
      %983 = vmatprep.subr.bf16.mxu0 0
      %984 = vmatpush1.bf16.msra.mxu0 0
      %985 = vmatprep.subr.bf16.mxu0 0
      %986 = vmatpush1.bf16.msra.mxu0 0
      %987 = vmatprep.subr.bf16.mxu0 0
      %988 = vmatpush1.bf16.msra.mxu0 0
      %989 = vmatprep.subr.bf16.mxu0 0
      %990 = vmatpush1.bf16.msra.mxu0 0
      %991 = vmatprep.subr.bf16.mxu0 0
      %992 = vmatpush1.bf16.msra.mxu0 0
      %993 = vmatprep.subr.bf16.mxu0 0
      %994 = vmatpush1.bf16.msra.mxu0 0
      %995 = vmatprep.subr.bf16.mxu0 0
      %996 = vmatpush1.bf16.msra.mxu0 0
      %997 = vmatprep.subr.bf16.mxu0 0
      %998 = vmatpush1.bf16.msra.mxu0 0
      %999 = vmatprep.subr.bf16.mxu0 0
      %1000 = vmatpush1.bf16.msra.mxu0 0
      %1001 = vmatprep.subr.bf16.mxu0 0
      %1002 = vmatpush1.bf16.msra.mxu0 0
      %1003 = vmatprep.mubr.bf16.mxu0 0
      %1004 = vmatmul.mubr.bf16.gmra.mrb[0].mxu0 %v924
      %v1005 = vpop.f32.mrb[0].mxu0
      %v1006 = vadd.f32 0.0, %v1005
      %v1007 = vpop.f32.mrb[0].mxu0
      %v1008 = vpop.f32.mrb[0].mxu0
      %v1009 = vadd.f32 0.0, %v1008
      %v1010 = vpop.f32.mrb[0].mxu0
      %1011 = vmatprep.mubr.bf16.mxu0 0
      %1012 = vmatmul.mubr.bf16.gmra.mrb[0].mxu0 %v927
      %v1013 = vpop.f32.mrb[0].mxu0
      %v1014 = vadd.f32 0.0, %v1013
      %v1015 = vpop.f32.mrb[0].mxu0
      %v1016 = vpop.f32.mrb[0].mxu0
      %v1017 = vadd.f32 0.0, %v1016
      %v1018 = vpop.f32.mrb[0].mxu0
      %1019 = vmatprep.mubr.bf16.mxu0 0
      %1020 = vmatmul.mubr.bf16.gmra.mrb[0].mxu0 %v930
      %v1021 = vpop.f32.mrb[0].mxu0
      %v1022 = vadd.f32 0.0, %v1021
      %v1023 = vpop.f32.mrb[0].mxu0
      %v1024 = vpop.f32.mrb[0].mxu0
      %v1025 = vadd.f32 0.0, %v1024
      %v1026 = vpop.f32.mrb[0].mxu0
      %1027 = vmatprep.mubr.bf16.mxu0 0
      %1028 = vmatmul.mubr.bf16.gmra.mrb[0].mxu0 %v933
      %v1029 = vpop.f32.mrb[0].mxu0
      %v1030 = vadd.f32 0.0, %v1029
      %v1031 = vpop.f32.mrb[0].mxu0
      %v1032 = vpop.f32.mrb[0].mxu0
      %v1033 = vadd.f32 0.0, %v1032
      %v1034 = vpop.f32.mrb[0].mxu0
      %1035 = vmatprep.mubr.bf16.mxu0 0
      %1036 = vmatmul.mubr.bf16.gmra.mrb[0].mxu0 %v936
      %v1037 = vpop.f32.mrb[0].mxu0
      %v1038 = vadd.f32 0.0, %v1037
      %v1039 = vpop.f32.mrb[0].mxu0
      %v1040 = vpop.f32.mrb[0].mxu0
      %v1041 = vadd.f32 0.0, %v1040
      %v1042 = vpop.f32.mrb[0].mxu0
      %1043 = vmatprep.mubr.bf16.mxu0 0
      %1044 = vmatmul.mubr.bf16.gmra.mrb[0].mxu0 %v939
      %v1045 = vpop.f32.mrb[0].mxu0
      %v1046 = vadd.f32 0.0, %v1045
      %v1047 = vpop.f32.mrb[0].mxu0
      %v1048 = vpop.f32.mrb[0].mxu0
      %v1049 = vadd.f32 0.0, %v1048
      %v1050 = vpop.f32.mrb[0].mxu0
      %1051 = vmatprep.mubr.bf16.mxu0 0
      %1052 = vmatmul.mubr.bf16.gmra.mrb[0].mxu0 %v942
      %v1053 = vpop.f32.mrb[0].mxu0
      %v1054 = vadd.f32 0.0, %v1053
      %v1055 = vpop.f32.mrb[0].mxu0
      %v1056 = vpop.f32.mrb[0].mxu0
      %v1057 = vadd.f32 0.0, %v1056
      %v1058 = vpop.f32.mrb[0].mxu0
      %1059 = vmatprep.mubr.bf16.mxu0 0
      %1060 = vmatmul.mubr.bf16.gmra.mrb[0].mxu0 %v945
      %v1061 = vpop.f32.mrb[0].mxu0
      %v1062 = vadd.f32 0.0, %v1061
      %v1063 = vpop.f32.mrb[0].mxu0
      %v1064 = vpop.f32.mrb[0].mxu0
      %v1065 = vadd.f32 0.0, %v1064
      %v1066 = vpop.f32.mrb[0].mxu0
      %1067 = vmatprep.mubr.bf16.mxu0 0
      %1068 = vmatmul.mubr.bf16.gmra.mrb[0].mxu0 %v948
      %v1069 = vpop.f32.mrb[0].mxu0
      %v1070 = vadd.f32 0.0, %v1069
      %v1071 = vpop.f32.mrb[0].mxu0
      %v1072 = vpop.f32.mrb[0].mxu0
      %v1073 = vadd.f32 0.0, %v1072
      %v1074 = vpop.f32.mrb[0].mxu0
      %1075 = vmatprep.mubr.bf16.mxu0 0
      %1076 = vmatmul.mubr.bf16.gmra.mrb[0].mxu0 %v951
      %v1077 = vpop.f32.mrb[0].mxu0
      %v1078 = vadd.f32 0.0, %v1077
      %v1079 = vpop.f32.mrb[0].mxu0
      %v1080 = vpop.f32.mrb[0].mxu0
      %v1081 = vadd.f32 0.0, %v1080
      %v1082 = vpop.f32.mrb[0].mxu0
      %1083 = vmatprep.mubr.bf16.mxu0 0
      %1084 = vmatmul.mubr.bf16.gmra.mrb[0].mxu0 %v954
      %v1085 = vpop.f32.mrb[0].mxu0
      %v1086 = vadd.f32 0.0, %v1085
      %v1087 = vpop.f32.mrb[0].mxu0
      %v1088 = vpop.f32.mrb[0].mxu0
      %v1089 = vadd.f32 0.0, %v1088
      %v1090 = vpop.f32.mrb[0].mxu0
      %1091 = vmatprep.mubr.bf16.mxu0 0
      %1092 = vmatmul.mubr.bf16.gmra.mrb[0].mxu0 %v957
      %v1093 = vpop.f32.mrb[0].mxu0
      %v1094 = vadd.f32 0.0, %v1093
      %v1095 = vpop.f32.mrb[0].mxu0
      %v1096 = vpop.f32.mrb[0].mxu0
      %v1097 = vadd.f32 0.0, %v1096
      %v1098 = vpop.f32.mrb[0].mxu0
      %1099 = vmatprep.mubr.bf16.mxu0 0
      %1100 = vmatmul.mubr.bf16.gmra.mrb[0].mxu0 %v960
      %v1101 = vpop.f32.mrb[0].mxu0
      %v1102 = vadd.f32 0.0, %v1101
      %v1103 = vpop.f32.mrb[0].mxu0
      %v1104 = vpop.f32.mrb[0].mxu0
      %v1105 = vadd.f32 0.0, %v1104
      %v1106 = vpop.f32.mrb[0].mxu0
      %1107 = vmatprep.mubr.bf16.mxu0 0
      %1108 = vmatmul.mubr.bf16.gmra.mrb[0].mxu0 %v963
      %v1109 = vpop.f32.mrb[0].mxu0
      %v1110 = vadd.f32 0.0, %v1109
      %v1111 = vpop.f32.mrb[0].mxu0
      %v1112 = vpop.f32.mrb[0].mxu0
      %v1113 = vadd.f32 0.0, %v1112
      %v1114 = vpop.f32.mrb[0].mxu0
      %1115 = vmatprep.mubr.bf16.mxu0 0
      %1116 = vmatmul.mubr.bf16.gmra.mrb[0].mxu0 %v966
      %v1117 = vpop.f32.mrb[0].mxu0
      %v1118 = vadd.f32 0.0, %v1117
      %v1119 = vpop.f32.mrb[0].mxu0
      %v1120 = vpop.f32.mrb[0].mxu0
      %v1121 = vadd.f32 0.0, %v1120
      %v1122 = vpop.f32.mrb[0].mxu0
      %1123 = vdwg.mxu0
      %v1124 = vadd.f32 %v692, %v1006
      %v1125 = vadd.f32 %v695, %v1009
      %v1126 = vadd.f32 %v700, %v1014
      %v1127 = vadd.f32 %v703, %v1017
      %v1128 = vadd.f32 %v708, %v1022
      %v1129 = vadd.f32 %v711, %v1025
      %v1130 = vadd.f32 %v716, %v1030
      %v1131 = vadd.f32 %v719, %v1033
      %v1132 = vadd.f32 %v724, %v1038
      %v1133 = vadd.f32 %v727, %v1041
      %v1134 = vadd.f32 %v732, %v1046
      %v1135 = vadd.f32 %v735, %v1049
      %v1136 = vadd.f32 %v740, %v1054
      %v1137 = vadd.f32 %v743, %v1057
      %v1138 = vadd.f32 %v748, %v1062
      %v1139 = vadd.f32 %v751, %v1065
      %v1140 = vadd.f32 %v756, %v1070
      %v1141 = vadd.f32 %v759, %v1073
      %v1142 = vadd.f32 %v764, %v1078
      %v1143 = vadd.f32 %v767, %v1081
      %v1144 = vadd.f32 %v772, %v1086
      %v1145 = vadd.f32 %v775, %v1089
      %v1146 = vadd.f32 %v780, %v1094
      %v1147 = vadd.f32 %v783, %v1097
      %v1148 = vadd.f32 %v788, %v1102
      %v1149 = vadd.f32 %v791, %v1105
      %v1150 = vadd.f32 %v796, %v1110
      %v1151 = vadd.f32 %v799, %v1113
      %v1152 = vadd.f32 %v804, %v1118
      %v1153 = vadd.f32 %v807, %v1121
      %v1154 = vld [vmem:[%s165 + $0x8] sm:$0xf]
      %v1155 = vld [vmem:[%s165 + $0xc] sm:$0xf]
      %v1156 = vld [vmem:[%s165 + $0x10] sm:$0xf]
      %v1157 = vld [vmem:[%s165 + $0x14] sm:$0xf]
      %v1158 = vld [vmem:[%s165 + $0x18] sm:$0xf]
      %v1159 = vld [vmem:[%s165 + $0x1c] sm:$0xf]
      %v1160 = vld [vmem:[%s165 + $0x20] sm:$0xf]
      %v1161 = vld [vmem:[%s165 + $0x24] sm:$0xf]
      %v1162 = vld [vmem:[%s165 + $0x28] sm:$0xf]
      %v1163 = vld [vmem:[%s165 + $0x2c] sm:$0xf]
      %v1164 = vld [vmem:[%s165 + $0x30] sm:$0xf]
      %v1165 = vld [vmem:[%s165 + $0x34] sm:$0xf]
      %v1166 = vld [vmem:[%s165 + $0x38] sm:$0xf]
      %v1167 = vld [vmem:[%s165 + $0x3c] sm:$0xf]
      %v1168 = vld [vmem:[%s165 + $0x40] sm:$0xf]
      %v1169 = vld [vmem:[%s165 + $0x44] sm:$0xf]
      %v1170 = vld [vmem:[%s165 + $0x48] sm:$0xf]
      %v1171 = vld [vmem:[%s165 + $0x4c] sm:$0xf]
      %v1172 = vld [vmem:[%s165 + $0x50] sm:$0xf]
      %v1173 = vld [vmem:[%s165 + $0x54] sm:$0xf]
      %v1174 = vld [vmem:[%s165 + $0x58] sm:$0xf]
      %v1175 = vld [vmem:[%s165 + $0x5c] sm:$0xf]
      %v1176 = vld [vmem:[%s165 + $0x60] sm:$0xf]
      %v1177 = vld [vmem:[%s165 + $0x64] sm:$0xf]
      %v1178 = vld [vmem:[%s165 + $0x68] sm:$0xf]
      %v1179 = vld [vmem:[%s165 + $0x6c] sm:$0xf]
      %v1180 = vld [vmem:[%s165 + $0x70] sm:$0xf]
      %v1181 = vld [vmem:[%s165 + $0x74] sm:$0xf]
      %v1182 = vld [vmem:[%s165 + $0x78] sm:$0xf]
      %v1183 = vld [vmem:[%s165 + $0x7c] sm:$0xf]
      %v1184 = vld [vmem:[%s165 + $0x80] sm:$0x1]
      %s1185 = scalar_lea.vmem %s1, 24
      %v1186 = vld [vmem:[%s1185] sm:$0xf]
      %v1187 = vld [vmem:[%s1185 + $0x4] sm:$0x3]
      %v1219 = vunpack.c.l.b16 %v1154
      %v1220 = vunpack.c.l.b16 %v1155
      %v1221 = vunpack.c.l.b16 %v1156
      %v1222 = vunpack.c.l.b16 %v1157
      %v1223 = vunpack.c.l.b16 %v1158
      %v1224 = vunpack.c.l.b16 %v1159
      %v1225 = vunpack.c.l.b16 %v1160
      %v1226 = vunpack.c.l.b16 %v1161
      %v1227 = vunpack.c.l.b16 %v1162
      %v1228 = vunpack.c.l.b16 %v1163
      %v1229 = vunpack.c.l.b16 %v1164
      %v1230 = vunpack.c.l.b16 %v1165
      %v1231 = vunpack.c.l.b16 %v1166
      %v1232 = vunpack.c.l.b16 %v1167
      %v1233 = vunpack.c.l.b16 %v1168
      %v1234 = vunpack.c.l.b16 %v1169
      %v1235 = vunpack.c.l.b16 %v1170
      %v1236 = vunpack.c.l.b16 %v1171
      %v1237 = vunpack.c.l.b16 %v1172
      %v1238 = vunpack.c.l.b16 %v1173
      %v1239 = vunpack.c.l.b16 %v1174
      %v1240 = vunpack.c.l.b16 %v1175
      %v1241 = vunpack.c.l.b16 %v1176
      %v1242 = vunpack.c.l.b16 %v1177
      %v1243 = vunpack.c.l.b16 %v1178
      %v1244 = vunpack.c.l.b16 %v1179
      %v1245 = vunpack.c.l.b16 %v1180
      %v1246 = vunpack.c.l.b16 %v1181
      %v1247 = vunpack.c.l.b16 %v1182
      %v1248 = vunpack.c.l.b16 %v1183
      %v1249 = vunpack.c.l.b16 %v1184
      %v1250 = vpack.c.b16 %v1220, %v1219
      %v1251 = vpack.c.b16 %v1222, %v1221
      %v1252 = vpack.c.b16 %v1224, %v1223
      %v1253 = vpack.c.b16 %v1226, %v1225
      %v1254 = vpack.c.b16 %v1228, %v1227
      %v1255 = vpack.c.b16 %v1230, %v1229
      %v1256 = vpack.c.b16 %v1232, %v1231
      %v1257 = vpack.c.b16 %v1234, %v1233
      %v1258 = vpack.c.b16 %v1236, %v1235
      %v1259 = vpack.c.b16 %v1238, %v1237
      %v1260 = vpack.c.b16 %v1240, %v1239
      %v1261 = vpack.c.b16 %v1242, %v1241
      %v1262 = vpack.c.b16 %v1244, %v1243
      %v1263 = vpack.c.b16 %v1246, %v1245
      %v1264 = vpack.c.b16 %v1248, %v1247
      %v1265 = vpack.c.b16 %v1249, %v1249
      %v1267 = vshrl.u32 %v1250, 16
      %v1269 = vshll.u32 %v1250, 16
      %v1271 = vrot.slane %v1269, 1
      %v1272 = vor.u32 %v1267, %v1271
      %v1274 = vshll.u32 %v1251, 16
      %v1276 = vrot.slane %v1274, 1
      %v1277 = vsel %vm286, %v1272, %v1276
      %v1278 = vshrl.u32 %v1251, 16
      %v1280 = vor.u32 %v1278, %v1276
      %v1282 = vshll.u32 %v1252, 16
      %v1284 = vrot.slane %v1282, 1
      %v1285 = vsel %vm286, %v1280, %v1284
      %v1286 = vshrl.u32 %v1252, 16
      %v1288 = vor.u32 %v1286, %v1284
      %v1290 = vshll.u32 %v1253, 16
      %v1292 = vrot.slane %v1290, 1
      %v1293 = vsel %vm286, %v1288, %v1292
      %v1294 = vshrl.u32 %v1253, 16
      %v1296 = vor.u32 %v1294, %v1292
      %v1298 = vshll.u32 %v1254, 16
      %v1300 = vrot.slane %v1298, 1
      %v1301 = vsel %vm286, %v1296, %v1300
      %v1302 = vshrl.u32 %v1254, 16
      %v1304 = vor.u32 %v1302, %v1300
      %v1306 = vshll.u32 %v1255, 16
      %v1308 = vrot.slane %v1306, 1
      %v1309 = vsel %vm286, %v1304, %v1308
      %v1310 = vshrl.u32 %v1255, 16
      %v1312 = vor.u32 %v1310, %v1308
      %v1314 = vshll.u32 %v1256, 16
      %v1316 = vrot.slane %v1314, 1
      %v1317 = vsel %vm286, %v1312, %v1316
      %v1318 = vshrl.u32 %v1256, 16
      %v1320 = vor.u32 %v1318, %v1316
      %v1322 = vshll.u32 %v1257, 16
      %v1324 = vrot.slane %v1322, 1
      %v1325 = vsel %vm286, %v1320, %v1324
      %v1326 = vshrl.u32 %v1257, 16
      %v1328 = vor.u32 %v1326, %v1324
      %v1330 = vshll.u32 %v1258, 16
      %v1332 = vrot.slane %v1330, 1
      %v1333 = vsel %vm286, %v1328, %v1332
      %v1334 = vshrl.u32 %v1258, 16
      %v1336 = vor.u32 %v1334, %v1332
      %v1338 = vshll.u32 %v1259, 16
      %v1340 = vrot.slane %v1338, 1
      %v1341 = vsel %vm286, %v1336, %v1340
      %v1342 = vshrl.u32 %v1259, 16
      %v1344 = vor.u32 %v1342, %v1340
      %v1346 = vshll.u32 %v1260, 16
      %v1348 = vrot.slane %v1346, 1
      %v1349 = vsel %vm286, %v1344, %v1348
      %v1350 = vshrl.u32 %v1260, 16
      %v1352 = vor.u32 %v1350, %v1348
      %v1354 = vshll.u32 %v1261, 16
      %v1356 = vrot.slane %v1354, 1
      %v1357 = vsel %vm286, %v1352, %v1356
      %v1358 = vshrl.u32 %v1261, 16
      %v1360 = vor.u32 %v1358, %v1356
      %v1362 = vshll.u32 %v1262, 16
      %v1364 = vrot.slane %v1362, 1
      %v1365 = vsel %vm286, %v1360, %v1364
      %v1366 = vshrl.u32 %v1262, 16
      %v1368 = vor.u32 %v1366, %v1364
      %v1370 = vshll.u32 %v1263, 16
      %v1372 = vrot.slane %v1370, 1
      %v1373 = vsel %vm286, %v1368, %v1372
      %v1374 = vshrl.u32 %v1263, 16
      %v1376 = vor.u32 %v1374, %v1372
      %v1378 = vshll.u32 %v1264, 16
      %v1380 = vrot.slane %v1378, 1
      %v1381 = vsel %vm286, %v1376, %v1380
      %v1382 = vshrl.u32 %v1264, 16
      %v1384 = vor.u32 %v1382, %v1380
      %v1386 = vshll.u32 %v1265, 16
      %v1388 = vrot.slane %v1386, 1
      %v1389 = vsel %vm286, %v1384, %v1388
      %v1392 = vunpack.c.l.b16 %v1186
      %v1393 = vunpack.c.l.b16 %v1187
      %v1394 = vpack.c.b16 %v1393, %v1392
      %v1396 = vsel %vm416, %v1277, 0
      %v1399 = vsel %vm416, %v1285, 0
      %v1402 = vsel %vm416, %v1293, 0
      %v1405 = vsel %vm416, %v1301, 0
      %v1408 = vsel %vm416, %v1309, 0
      %v1411 = vsel %vm416, %v1317, 0
      %v1414 = vsel %vm416, %v1325, 0
      %v1417 = vsel %vm416, %v1333, 0
      %v1420 = vsel %vm416, %v1341, 0
      %v1423 = vsel %vm416, %v1349, 0
      %v1426 = vsel %vm416, %v1357, 0
      %v1429 = vsel %vm416, %v1365, 0
      %v1432 = vsel %vm416, %v1373, 0
      %v1435 = vsel %vm416, %v1381, 0
      %v1438 = vsel %vm416, %v1389, 0
      %v1441 = vsel %vm462, %v1394, 0
      %1443 = vmatprep.subr.bf16.mxu0 0
      %1444 = vmatpush1.bf16.msra.mxu0 %v1441
      %1445 = vmatprep.subr.bf16.mxu0 0
      %1446 = vmatpush1.bf16.msra.mxu0 0
      %1447 = vmatprep.subr.bf16.mxu0 0
      %1448 = vmatpush1.bf16.msra.mxu0 0
      %1449 = vmatprep.subr.bf16.mxu0 0
      %1450 = vmatpush1.bf16.msra.mxu0 0
      %1451 = vmatprep.subr.bf16.mxu0 0
      %1452 = vmatpush1.bf16.msra.mxu0 0
      %1453 = vmatprep.subr.bf16.mxu0 0
      %1454 = vmatpush1.bf16.msra.mxu0 0
      %1455 = vmatprep.subr.bf16.mxu0 0
      %1456 = vmatpush1.bf16.msra.mxu0 0
      %1457 = vmatprep.subr.bf16.mxu0 0
      %1458 = vmatpush1.bf16.msra.mxu0 0
      %1459 = vmatprep.subr.bf16.mxu0 0
      %1460 = vmatpush1.bf16.msra.mxu0 0
      %1461 = vmatprep.subr.bf16.mxu0 0
      %1462 = vmatpush1.bf16.msra.mxu0 0
      %1463 = vmatprep.subr.bf16.mxu0 0
      %1464 = vmatpush1.bf16.msra.mxu0 0
      %1465 = vmatprep.subr.bf16.mxu0 0
      %1466 = vmatpush1.bf16.msra.mxu0 0
      %1467 = vmatprep.subr.bf16.mxu0 0
      %1468 = vmatpush1.bf16.msra.mxu0 0
      %1469 = vmatprep.subr.bf16.mxu0 0
      %1470 = vmatpush1.bf16.msra.mxu0 0
      %1471 = vmatprep.subr.bf16.mxu0 0
      %1472 = vmatpush1.bf16.msra.mxu0 0
      %1473 = vmatprep.subr.bf16.mxu0 0
      %1474 = vmatpush1.bf16.msra.mxu0 0
      %1475 = vmatprep.mubr.bf16.mxu0 0
      %1476 = vmatmul.mubr.bf16.gmra.mrb[0].mxu0 %v1396
      %v1477 = vpop.f32.mrb[0].mxu0
      %v1478 = vadd.f32 0.0, %v1477
      %v1479 = vpop.f32.mrb[0].mxu0
      %v1480 = vpop.f32.mrb[0].mxu0
      %v1481 = vadd.f32 0.0, %v1480
      %v1482 = vpop.f32.mrb[0].mxu0
      %1483 = vmatprep.mubr.bf16.mxu0 0
      %1484 = vmatmul.mubr.bf16.gmra.mrb[0].mxu0 %v1399
      %v1485 = vpop.f32.mrb[0].mxu0
      %v1486 = vadd.f32 0.0, %v1485
      %v1487 = vpop.f32.mrb[0].mxu0
      %v1488 = vpop.f32.mrb[0].mxu0
      %v1489 = vadd.f32 0.0, %v1488
      %v1490 = vpop.f32.mrb[0].mxu0
      %1491 = vmatprep.mubr.bf16.mxu0 0
      %1492 = vmatmul.mubr.bf16.gmra.mrb[0].mxu0 %v1402
      %v1493 = vpop.f32.mrb[0].mxu0
      %v1494 = vadd.f32 0.0, %v1493
      %v1495 = vpop.f32.mrb[0].mxu0
      %v1496 = vpop.f32.mrb[0].mxu0
      %v1497 = vadd.f32 0.0, %v1496
      %v1498 = vpop.f32.mrb[0].mxu0
      %1499 = vmatprep.mubr.bf16.mxu0 0
      %1500 = vmatmul.mubr.bf16.gmra.mrb[0].mxu0 %v1405
      %v1501 = vpop.f32.mrb[0].mxu0
      %v1502 = vadd.f32 0.0, %v1501
      %v1503 = vpop.f32.mrb[0].mxu0
      %v1504 = vpop.f32.mrb[0].mxu0
      %v1505 = vadd.f32 0.0, %v1504
      %v1506 = vpop.f32.mrb[0].mxu0
      %1507 = vmatprep.mubr.bf16.mxu0 0
      %1508 = vmatmul.mubr.bf16.gmra.mrb[0].mxu0 %v1408
      %v1509 = vpop.f32.mrb[0].mxu0
      %v1510 = vadd.f32 0.0, %v1509
      %v1511 = vpop.f32.mrb[0].mxu0
      %v1512 = vpop.f32.mrb[0].mxu0
      %v1513 = vadd.f32 0.0, %v1512
      %v1514 = vpop.f32.mrb[0].mxu0
      %1515 = vmatprep.mubr.bf16.mxu0 0
      %1516 = vmatmul.mubr.bf16.gmra.mrb[0].mxu0 %v1411
      %v1517 = vpop.f32.mrb[0].mxu0
      %v1518 = vadd.f32 0.0, %v1517
      %v1519 = vpop.f32.mrb[0].mxu0
      %v1520 = vpop.f32.mrb[0].mxu0
      %v1521 = vadd.f32 0.0, %v1520
      %v1522 = vpop.f32.mrb[0].mxu0
      %1523 = vmatprep.mubr.bf16.mxu0 0
      %1524 = vmatmul.mubr.bf16.gmra.mrb[0].mxu0 %v1414
      %v1525 = vpop.f32.mrb[0].mxu0
      %v1526 = vadd.f32 0.0, %v1525
      %v1527 = vpop.f32.mrb[0].mxu0
      %v1528 = vpop.f32.mrb[0].mxu0
      %v1529 = vadd.f32 0.0, %v1528
      %v1530 = vpop.f32.mrb[0].mxu0
      %1531 = vmatprep.mubr.bf16.mxu0 0
      %1532 = vmatmul.mubr.bf16.gmra.mrb[0].mxu0 %v1417
      %v1533 = vpop.f32.mrb[0].mxu0
      %v1534 = vadd.f32 0.0, %v1533
      %v1535 = vpop.f32.mrb[0].mxu0
      %v1536 = vpop.f32.mrb[0].mxu0
      %v1537 = vadd.f32 0.0, %v1536
      %v1538 = vpop.f32.mrb[0].mxu0
      %1539 = vmatprep.mubr.bf16.mxu0 0
      %1540 = vmatmul.mubr.bf16.gmra.mrb[0].mxu0 %v1420
      %v1541 = vpop.f32.mrb[0].mxu0
      %v1542 = vadd.f32 0.0, %v1541
      %v1543 = vpop.f32.mrb[0].mxu0
      %v1544 = vpop.f32.mrb[0].mxu0
      %v1545 = vadd.f32 0.0, %v1544
      %v1546 = vpop.f32.mrb[0].mxu0
      %1547 = vmatprep.mubr.bf16.mxu0 0
      %1548 = vmatmul.mubr.bf16.gmra.mrb[0].mxu0 %v1423
      %v1549 = vpop.f32.mrb[0].mxu0
      %v1550 = vadd.f32 0.0, %v1549
      %v1551 = vpop.f32.mrb[0].mxu0
      %v1552 = vpop.f32.mrb[0].mxu0
      %v1553 = vadd.f32 0.0, %v1552
      %v1554 = vpop.f32.mrb[0].mxu0
      %1555 = vmatprep.mubr.bf16.mxu0 0
      %1556 = vmatmul.mubr.bf16.gmra.mrb[0].mxu0 %v1426
      %v1557 = vpop.f32.mrb[0].mxu0
      %v1558 = vadd.f32 0.0, %v1557
      %v1559 = vpop.f32.mrb[0].mxu0
      %v1560 = vpop.f32.mrb[0].mxu0
      %v1561 = vadd.f32 0.0, %v1560
      %v1562 = vpop.f32.mrb[0].mxu0
      %1563 = vmatprep.mubr.bf16.mxu0 0
      %1564 = vmatmul.mubr.bf16.gmra.mrb[0].mxu0 %v1429
      %v1565 = vpop.f32.mrb[0].mxu0
      %v1566 = vadd.f32 0.0, %v1565
      %v1567 = vpop.f32.mrb[0].mxu0
      %v1568 = vpop.f32.mrb[0].mxu0
      %v1569 = vadd.f32 0.0, %v1568
      %v1570 = vpop.f32.mrb[0].mxu0
      %1571 = vmatprep.mubr.bf16.mxu0 0
      %1572 = vmatmul.mubr.bf16.gmra.mrb[0].mxu0 %v1432
      %v1573 = vpop.f32.mrb[0].mxu0
      %v1574 = vadd.f32 0.0, %v1573
      %v1575 = vpop.f32.mrb[0].mxu0
      %v1576 = vpop.f32.mrb[0].mxu0
      %v1577 = vadd.f32 0.0, %v1576
      %v1578 = vpop.f32.mrb[0].mxu0
      %1579 = vmatprep.mubr.bf16.mxu0 0
      %1580 = vmatmul.mubr.bf16.gmra.mrb[0].mxu0 %v1435
      %v1581 = vpop.f32.mrb[0].mxu0
      %v1582 = vadd.f32 0.0, %v1581
      %v1583 = vpop.f32.mrb[0].mxu0
      %v1584 = vpop.f32.mrb[0].mxu0
      %v1585 = vadd.f32 0.0, %v1584
      %v1586 = vpop.f32.mrb[0].mxu0
      %1587 = vmatprep.mubr.bf16.mxu0 0
      %1588 = vmatmul.mubr.bf16.gmra.mrb[0].mxu0 %v1438
      %v1589 = vpop.f32.mrb[0].mxu0
      %v1590 = vadd.f32 0.0, %v1589
      %v1591 = vpop.f32.mrb[0].mxu0
      %v1592 = vpop.f32.mrb[0].mxu0
      %v1593 = vadd.f32 0.0, %v1592
      %v1594 = vpop.f32.mrb[0].mxu0
      %1595 = vdwg.mxu0
      %v1596 = vadd.f32 %v1124, %v1478
      %v1597 = vadd.f32 %v1125, %v1481
      %v1598 = vadd.f32 %v1126, %v1486
      %v1599 = vadd.f32 %v1127, %v1489
      %v1600 = vadd.f32 %v1128, %v1494
      %v1601 = vadd.f32 %v1129, %v1497
      %v1602 = vadd.f32 %v1130, %v1502
      %v1603 = vadd.f32 %v1131, %v1505
      %v1604 = vadd.f32 %v1132, %v1510
      %v1605 = vadd.f32 %v1133, %v1513
      %v1606 = vadd.f32 %v1134, %v1518
      %v1607 = vadd.f32 %v1135, %v1521
      %v1608 = vadd.f32 %v1136, %v1526
      %v1609 = vadd.f32 %v1137, %v1529
      %v1610 = vadd.f32 %v1138, %v1534
      %v1611 = vadd.f32 %v1139, %v1537
      %v1612 = vadd.f32 %v1140, %v1542
      %v1613 = vadd.f32 %v1141, %v1545
      %v1614 = vadd.f32 %v1142, %v1550
      %v1615 = vadd.f32 %v1143, %v1553
      %v1616 = vadd.f32 %v1144, %v1558
      %v1617 = vadd.f32 %v1145, %v1561
      %v1618 = vadd.f32 %v1146, %v1566
      %v1619 = vadd.f32 %v1147, %v1569
      %v1620 = vadd.f32 %v1148, %v1574
      %v1621 = vadd.f32 %v1149, %v1577
      %v1622 = vadd.f32 %v1150, %v1582
      %v1623 = vadd.f32 %v1151, %v1585
      %v1624 = vadd.f32 %v1152, %v1590
      %v1625 = vadd.f32 %v1153, %v1593
      %1656 = vrot.lane.b32.xlu0 %v1596, 96
      %v1657 = vpop.permute.xlu0 %1656
      %1658 = vrot.lane.b32.xlu0 %v1597, 96
      %v1659 = vpop.permute.xlu0 %1658
      %1660 = vrot.lane.b32.xlu0 %v1598, 96
      %v1661 = vpop.permute.xlu0 %1660
      %1662 = vrot.lane.b32.xlu0 %v1599, 96
      %v1663 = vpop.permute.xlu0 %1662
      %1664 = vrot.lane.b32.xlu0 %v1600, 96
      %v1665 = vpop.permute.xlu0 %1664
      %1666 = vrot.lane.b32.xlu0 %v1601, 96
      %v1667 = vpop.permute.xlu0 %1666
      %1668 = vrot.lane.b32.xlu0 %v1602, 96
      %v1669 = vpop.permute.xlu0 %1668
      %1670 = vrot.lane.b32.xlu0 %v1603, 96
      %v1671 = vpop.permute.xlu0 %1670
      %1672 = vrot.lane.b32.xlu0 %v1604, 96
      %v1673 = vpop.permute.xlu0 %1672
      %1674 = vrot.lane.b32.xlu0 %v1605, 96
      %v1675 = vpop.permute.xlu0 %1674
      %1676 = vrot.lane.b32.xlu0 %v1606, 96
      %v1677 = vpop.permute.xlu0 %1676
      %1678 = vrot.lane.b32.xlu0 %v1607, 96
      %v1679 = vpop.permute.xlu0 %1678
      %1680 = vrot.lane.b32.xlu0 %v1608, 96
      %v1681 = vpop.permute.xlu0 %1680
      %1682 = vrot.lane.b32.xlu0 %v1609, 96
      %v1683 = vpop.permute.xlu0 %1682
      %1684 = vrot.lane.b32.xlu0 %v1610, 96
      %v1685 = vpop.permute.xlu0 %1684
      %1686 = vrot.lane.b32.xlu0 %v1611, 96
      %v1687 = vpop.permute.xlu0 %1686
      %1688 = vrot.lane.b32.xlu0 %v1612, 96
      %v1689 = vpop.permute.xlu0 %1688
      %1690 = vrot.lane.b32.xlu0 %v1613, 96
      %v1691 = vpop.permute.xlu0 %1690
      %1692 = vrot.lane.b32.xlu0 %v1614, 96
      %v1693 = vpop.permute.xlu0 %1692
      %1694 = vrot.lane.b32.xlu0 %v1615, 96
      %v1695 = vpop.permute.xlu0 %1694
      %1696 = vrot.lane.b32.xlu0 %v1616, 96
      %v1697 = vpop.permute.xlu0 %1696
      %1698 = vrot.lane.b32.xlu0 %v1617, 96
      %v1699 = vpop.permute.xlu0 %1698
      %1700 = vrot.lane.b32.xlu0 %v1618, 96
      %v1701 = vpop.permute.xlu0 %1700
      %1702 = vrot.lane.b32.xlu0 %v1619, 96
      %v1703 = vpop.permute.xlu0 %1702
      %1704 = vrot.lane.b32.xlu0 %v1620, 96
      %v1705 = vpop.permute.xlu0 %1704
      %1706 = vrot.lane.b32.xlu0 %v1621, 96
      %v1707 = vpop.permute.xlu0 %1706
      %1708 = vrot.lane.b32.xlu0 %v1622, 96
      %v1709 = vpop.permute.xlu0 %1708
      %1710 = vrot.lane.b32.xlu0 %v1623, 96
      %v1711 = vpop.permute.xlu0 %1710
      %1712 = vrot.lane.b32.xlu0 %v1624, 96
      %v1713 = vpop.permute.xlu0 %1712
      %1714 = vrot.lane.b32.xlu0 %v1625, 96
      %v1715 = vpop.permute.xlu0 %1714
      %v1746 = vmax.f32 %v1596, %v1657
      %v1747 = vmax.f32 %v1597, %v1659
      %v1748 = vmax.f32 %v1598, %v1661
      %v1749 = vmax.f32 %v1599, %v1663
      %v1750 = vmax.f32 %v1600, %v1665
      %v1751 = vmax.f32 %v1601, %v1667
      %v1752 = vmax.f32 %v1602, %v1669
      %v1753 = vmax.f32 %v1603, %v1671
      %v1754 = vmax.f32 %v1604, %v1673
      %v1755 = vmax.f32 %v1605, %v1675
      %v1756 = vmax.f32 %v1606, %v1677
      %v1757 = vmax.f32 %v1607, %v1679
      %v1758 = vmax.f32 %v1608, %v1681
      %v1759 = vmax.f32 %v1609, %v1683
      %v1760 = vmax.f32 %v1610, %v1685
      %v1761 = vmax.f32 %v1611, %v1687
      %v1762 = vmax.f32 %v1612, %v1689
      %v1763 = vmax.f32 %v1613, %v1691
      %v1764 = vmax.f32 %v1614, %v1693
      %v1765 = vmax.f32 %v1615, %v1695
      %v1766 = vmax.f32 %v1616, %v1697
      %v1767 = vmax.f32 %v1617, %v1699
      %v1768 = vmax.f32 %v1618, %v1701
      %v1769 = vmax.f32 %v1619, %v1703
      %v1770 = vmax.f32 %v1620, %v1705
      %v1771 = vmax.f32 %v1621, %v1707
      %v1772 = vmax.f32 %v1622, %v1709
      %v1773 = vmax.f32 %v1623, %v1711
      %v1774 = vmax.f32 %v1624, %v1713
      %v1775 = vmax.f32 %v1625, %v1715
      %1806 = vrot.lane.b32.xlu0 %v1746, 64
      %v1807 = vpop.permute.xlu0 %1806
      %1808 = vrot.lane.b32.xlu0 %v1747, 64
      %v1809 = vpop.permute.xlu0 %1808
      %1810 = vrot.lane.b32.xlu0 %v1748, 64
      %v1811 = vpop.permute.xlu0 %1810
      %1812 = vrot.lane.b32.xlu0 %v1749, 64
      %v1813 = vpop.permute.xlu0 %1812
      %1814 = vrot.lane.b32.xlu0 %v1750, 64
      %v1815 = vpop.permute.xlu0 %1814
      %1816 = vrot.lane.b32.xlu0 %v1751, 64
      %v1817 = vpop.permute.xlu0 %1816
      %1818 = vrot.lane.b32.xlu0 %v1752, 64
      %v1819 = vpop.permute.xlu0 %1818
      %1820 = vrot.lane.b32.xlu0 %v1753, 64
      %v1821 = vpop.permute.xlu0 %1820
      %1822 = vrot.lane.b32.xlu0 %v1754, 64
      %v1823 = vpop.permute.xlu0 %1822
      %1824 = vrot.lane.b32.xlu0 %v1755, 64
      %v1825 = vpop.permute.xlu0 %1824
      %1826 = vrot.lane.b32.xlu0 %v1756, 64
      %v1827 = vpop.permute.xlu0 %1826
      %1828 = vrot.lane.b32.xlu0 %v1757, 64
      %v1829 = vpop.permute.xlu0 %1828
      %1830 = vrot.lane.b32.xlu0 %v1758, 64
      %v1831 = vpop.permute.xlu0 %1830
      %1832 = vrot.lane.b32.xlu0 %v1759, 64
      %v1833 = vpop.permute.xlu0 %1832
      %1834 = vrot.lane.b32.xlu0 %v1760, 64
      %v1835 = vpop.permute.xlu0 %1834
      %1836 = vrot.lane.b32.xlu0 %v1761, 64
      %v1837 = vpop.permute.xlu0 %1836
      %1838 = vrot.lane.b32.xlu0 %v1762, 64
      %v1839 = vpop.permute.xlu0 %1838
      %1840 = vrot.lane.b32.xlu0 %v1763, 64
      %v1841 = vpop.permute.xlu0 %1840
      %1842 = vrot.lane.b32.xlu0 %v1764, 64
      %v1843 = vpop.permute.xlu0 %1842
      %1844 = vrot.lane.b32.xlu0 %v1765, 64
      %v1845 = vpop.permute.xlu0 %1844
      %1846 = vrot.lane.b32.xlu0 %v1766, 64
      %v1847 = vpop.permute.xlu0 %1846
      %1848 = vrot.lane.b32.xlu0 %v1767, 64
      %v1849 = vpop.permute.xlu0 %1848
      %1850 = vrot.lane.b32.xlu0 %v1768, 64
      %v1851 = vpop.permute.xlu0 %1850
      %1852 = vrot.lane.b32.xlu0 %v1769, 64
      %v1853 = vpop.permute.xlu0 %1852
      %1854 = vrot.lane.b32.xlu0 %v1770, 64
      %v1855 = vpop.permute.xlu0 %1854
      %1856 = vrot.lane.b32.xlu0 %v1771, 64
      %v1857 = vpop.permute.xlu0 %1856
      %1858 = vrot.lane.b32.xlu0 %v1772, 64
      %v1859 = vpop.permute.xlu0 %1858
      %1860 = vrot.lane.b32.xlu0 %v1773, 64
      %v1861 = vpop.permute.xlu0 %1860
      %1862 = vrot.lane.b32.xlu0 %v1774, 64
      %v1863 = vpop.permute.xlu0 %1862
      %1864 = vrot.lane.b32.xlu0 %v1775, 64
      %v1865 = vpop.permute.xlu0 %1864
      %v1896 = vmax.f32 %v1746, %v1807
      %v1897 = vmax.f32 %v1747, %v1809
      %v1898 = vmax.f32 %v1748, %v1811
      %v1899 = vmax.f32 %v1749, %v1813
      %v1900 = vmax.f32 %v1750, %v1815
      %v1901 = vmax.f32 %v1751, %v1817
      %v1902 = vmax.f32 %v1752, %v1819
      %v1903 = vmax.f32 %v1753, %v1821
      %v1904 = vmax.f32 %v1754, %v1823
      %v1905 = vmax.f32 %v1755, %v1825
      %v1906 = vmax.f32 %v1756, %v1827
      %v1907 = vmax.f32 %v1757, %v1829
      %v1908 = vmax.f32 %v1758, %v1831
      %v1909 = vmax.f32 %v1759, %v1833
      %v1910 = vmax.f32 %v1760, %v1835
      %v1911 = vmax.f32 %v1761, %v1837
      %v1912 = vmax.f32 %v1762, %v1839
      %v1913 = vmax.f32 %v1763, %v1841
      %v1914 = vmax.f32 %v1764, %v1843
      %v1915 = vmax.f32 %v1765, %v1845
      %v1916 = vmax.f32 %v1766, %v1847
      %v1917 = vmax.f32 %v1767, %v1849
      %v1918 = vmax.f32 %v1768, %v1851
      %v1919 = vmax.f32 %v1769, %v1853
      %v1920 = vmax.f32 %v1770, %v1855
      %v1921 = vmax.f32 %v1771, %v1857
      %v1922 = vmax.f32 %v1772, %v1859
      %v1923 = vmax.f32 %v1773, %v1861
      %v1924 = vmax.f32 %v1774, %v1863
      %v1925 = vmax.f32 %v1775, %v1865
      %v1926 = vld [vmem:[%s2] sm:$0x1]
      %v1928 = vlaneseq
      %v1929 = vshrl.u32 %v1928, 7
      %v1930 = vsub.s32 0, %v1929
      %v1931 = vrot.slane %v1926, %v1930
      %v1933 = vadd.f32 %v1896, %v1931
      %v1934 = vadd.f32 %v1897, %v1931
      %v1935 = vadd.f32 %v1898, %v1931
      %v1936 = vadd.f32 %v1899, %v1931
      %v1937 = vadd.f32 %v1900, %v1931
      %v1938 = vadd.f32 %v1901, %v1931
      %v1939 = vadd.f32 %v1902, %v1931
      %v1940 = vadd.f32 %v1903, %v1931
      %v1941 = vadd.f32 %v1904, %v1931
      %v1942 = vadd.f32 %v1905, %v1931
      %v1943 = vadd.f32 %v1906, %v1931
      %v1944 = vadd.f32 %v1907, %v1931
      %v1945 = vadd.f32 %v1908, %v1931
      %v1946 = vadd.f32 %v1909, %v1931
      %v1947 = vadd.f32 %v1910, %v1931
      %v1948 = vadd.f32 %v1911, %v1931
      %v1949 = vadd.f32 %v1912, %v1931
      %v1950 = vadd.f32 %v1913, %v1931
      %v1951 = vadd.f32 %v1914, %v1931
      %v1952 = vadd.f32 %v1915, %v1931
      %v1953 = vadd.f32 %v1916, %v1931
      %v1954 = vadd.f32 %v1917, %v1931
      %v1955 = vadd.f32 %v1918, %v1931
      %v1956 = vadd.f32 %v1919, %v1931
      %v1957 = vadd.f32 %v1920, %v1931
      %v1958 = vadd.f32 %v1921, %v1931
      %v1959 = vadd.f32 %v1922, %v1931
      %v1960 = vadd.f32 %v1923, %v1931
      %v1961 = vadd.f32 %v1924, %v1931
      %v1962 = vadd.f32 %v1925, %v1931
      %v1963 = vmax.f32 %v1933, 0.0
      %v1964 = vmax.f32 %v1934, 0.0
      %v1965 = vmax.f32 %v1935, 0.0
      %v1966 = vmax.f32 %v1936, 0.0
      %v1967 = vmax.f32 %v1937, 0.0
      %v1968 = vmax.f32 %v1938, 0.0
      %v1969 = vmax.f32 %v1939, 0.0
      %v1970 = vmax.f32 %v1940, 0.0
      %v1971 = vmax.f32 %v1941, 0.0
      %v1972 = vmax.f32 %v1942, 0.0
      %v1973 = vmax.f32 %v1943, 0.0
      %v1974 = vmax.f32 %v1944, 0.0
      %v1975 = vmax.f32 %v1945, 0.0
      %v1976 = vmax.f32 %v1946, 0.0
      %v1977 = vmax.f32 %v1947, 0.0
      %v1978 = vmax.f32 %v1948, 0.0
      %v1979 = vmax.f32 %v1949, 0.0
      %v1980 = vmax.f32 %v1950, 0.0
      %v1981 = vmax.f32 %v1951, 0.0
      %v1982 = vmax.f32 %v1952, 0.0
      %v1983 = vmax.f32 %v1953, 0.0
      %v1984 = vmax.f32 %v1954, 0.0
      %v1985 = vmax.f32 %v1955, 0.0
      %v1986 = vmax.f32 %v1956, 0.0
      %v1987 = vmax.f32 %v1957, 0.0
      %v1988 = vmax.f32 %v1958, 0.0
      %v1989 = vmax.f32 %v1959, 0.0
      %v1990 = vmax.f32 %v1960, 0.0
      %v1991 = vmax.f32 %v1961, 0.0
      %v1992 = vmax.f32 %v1962, 0.0
      %v1993 = vpack.c.bf16 %v1964, %v1963
      %v1994 = vpack.c.bf16 %v1966, %v1965
      %v1995 = vpack.c.bf16 %v1968, %v1967
      %v1996 = vpack.c.bf16 %v1970, %v1969
      %v1997 = vpack.c.bf16 %v1972, %v1971
      %v1998 = vpack.c.bf16 %v1974, %v1973
      %v1999 = vpack.c.bf16 %v1976, %v1975
      %v2000 = vpack.c.bf16 %v1978, %v1977
      %v2001 = vpack.c.bf16 %v1980, %v1979
      %v2002 = vpack.c.bf16 %v1982, %v1981
      %v2003 = vpack.c.bf16 %v1984, %v1983
      %v2004 = vpack.c.bf16 %v1986, %v1985
      %v2005 = vpack.c.bf16 %v1988, %v1987
      %v2006 = vpack.c.bf16 %v1990, %v1989
      %v2007 = vpack.c.bf16 %v1992, %v1991
      %v2023 = vunpack.c.l.b16 %v1993
      %v2024 = vunpack.c.h.b16 %v1993
      %v2025 = vunpack.c.l.b16 %v1994
      %v2026 = vunpack.c.h.b16 %v1994
      %v2027 = vunpack.c.l.b16 %v1995
      %v2028 = vunpack.c.h.b16 %v1995
      %v2029 = vunpack.c.l.b16 %v1996
      %v2030 = vunpack.c.h.b16 %v1996
      %v2031 = vunpack.c.l.b16 %v1997
      %v2032 = vunpack.c.h.b16 %v1997
      %v2033 = vunpack.c.l.b16 %v1998
      %v2034 = vunpack.c.h.b16 %v1998
      %v2035 = vunpack.c.l.b16 %v1999
      %v2036 = vunpack.c.h.b16 %v1999
      %v2037 = vunpack.c.l.b16 %v2000
      %v2038 = vunpack.c.h.b16 %v2000
      %v2039 = vunpack.c.l.b16 %v2001
      %v2040 = vunpack.c.h.b16 %v2001
      %v2041 = vunpack.c.l.b16 %v2002
      %v2042 = vunpack.c.h.b16 %v2002
      %v2043 = vunpack.c.l.b16 %v2003
      %v2044 = vunpack.c.h.b16 %v2003
      %v2045 = vunpack.c.l.b16 %v2004
      %v2046 = vunpack.c.h.b16 %v2004
      %v2047 = vunpack.c.l.b16 %v2005
      %v2048 = vunpack.c.h.b16 %v2005
      %v2049 = vunpack.c.l.b16 %v2006
      %v2050 = vunpack.c.h.b16 %v2006
      %v2051 = vunpack.c.l.b16 %v2007
      %v2052 = vunpack.c.h.b16 %v2007
      %v2053 = vpack.c.b16 %v2023, %v2023
      %v2054 = vpack.c.b16 %v2024, %v2024
      %v2055 = vpack.c.b16 %v2025, %v2025
      %v2056 = vpack.c.b16 %v2026, %v2026
      %v2057 = vpack.c.b16 %v2027, %v2027
      %v2058 = vpack.c.b16 %v2028, %v2028
      %v2059 = vpack.c.b16 %v2029, %v2029
      %v2060 = vpack.c.b16 %v2030, %v2030
      %v2061 = vpack.c.b16 %v2031, %v2031
      %v2062 = vpack.c.b16 %v2032, %v2032
      %v2063 = vpack.c.b16 %v2033, %v2033
      %v2064 = vpack.c.b16 %v2034, %v2034
      %v2065 = vpack.c.b16 %v2035, %v2035
      %v2066 = vpack.c.b16 %v2036, %v2036
      %v2067 = vpack.c.b16 %v2037, %v2037
      %v2068 = vpack.c.b16 %v2038, %v2038
      %v2069 = vpack.c.b16 %v2039, %v2039
      %v2070 = vpack.c.b16 %v2040, %v2040
      %v2071 = vpack.c.b16 %v2041, %v2041
      %v2072 = vpack.c.b16 %v2042, %v2042
      %v2073 = vpack.c.b16 %v2043, %v2043
      %v2074 = vpack.c.b16 %v2044, %v2044
      %v2075 = vpack.c.b16 %v2045, %v2045
      %v2076 = vpack.c.b16 %v2046, %v2046
      %v2077 = vpack.c.b16 %v2047, %v2047
      %v2078 = vpack.c.b16 %v2048, %v2048
      %v2079 = vpack.c.b16 %v2049, %v2049
      %v2080 = vpack.c.b16 %v2050, %v2050
      %v2081 = vpack.c.b16 %v2051, %v2051
      %v2082 = vpack.c.b16 %v2052, %v2052
      %vm2113 = vcmask 257024
      %2114 = vst.msk [vmem:[%s170] sm:$0xf] %vm2113, %v2053
      %2115 = vst.msk [vmem:[%s170 + $0x4] sm:$0xf] %vm2113, %v2054
      %2116 = vst.msk [vmem:[%s170 + $0x8] sm:$0xf] %vm2113, %v2055
      %2117 = vst.msk [vmem:[%s170 + $0xc] sm:$0xf] %vm2113, %v2056
      %2118 = vst.msk [vmem:[%s170 + $0x10] sm:$0xf] %vm2113, %v2057
      %2119 = vst.msk [vmem:[%s170 + $0x14] sm:$0xf] %vm2113, %v2058
      %2120 = vst.msk [vmem:[%s170 + $0x18] sm:$0xf] %vm2113, %v2059
      %2121 = vst.msk [vmem:[%s170 + $0x1c] sm:$0xf] %vm2113, %v2060
      %2122 = vst.msk [vmem:[%s170 + $0x20] sm:$0xf] %vm2113, %v2061
      %2123 = vst.msk [vmem:[%s170 + $0x24] sm:$0xf] %vm2113, %v2062
      %2124 = vst.msk [vmem:[%s170 + $0x28] sm:$0xf] %vm2113, %v2063
      %2125 = vst.msk [vmem:[%s170 + $0x2c] sm:$0xf] %vm2113, %v2064
      %2126 = vst.msk [vmem:[%s170 + $0x30] sm:$0xf] %vm2113, %v2065
      %2127 = vst.msk [vmem:[%s170 + $0x34] sm:$0xf] %vm2113, %v2066
      %2128 = vst.msk [vmem:[%s170 + $0x38] sm:$0xf] %vm2113, %v2067
      %2129 = vst.msk [vmem:[%s170 + $0x3c] sm:$0xf] %vm2113, %v2068
      %2130 = vst.msk [vmem:[%s170 + $0x40] sm:$0xf] %vm2113, %v2069
      %2131 = vst.msk [vmem:[%s170 + $0x44] sm:$0xf] %vm2113, %v2070
      %2132 = vst.msk [vmem:[%s170 + $0x48] sm:$0xf] %vm2113, %v2071
      %2133 = vst.msk [vmem:[%s170 + $0x4c] sm:$0xf] %vm2113, %v2072
      %2134 = vst.msk [vmem:[%s170 + $0x50] sm:$0xf] %vm2113, %v2073
      %2135 = vst.msk [vmem:[%s170 + $0x54] sm:$0xf] %vm2113, %v2074
      %2136 = vst.msk [vmem:[%s170 + $0x58] sm:$0xf] %vm2113, %v2075
      %2137 = vst.msk [vmem:[%s170 + $0x5c] sm:$0xf] %vm2113, %v2076
      %2138 = vst.msk [vmem:[%s170 + $0x60] sm:$0xf] %vm2113, %v2077
      %2139 = vst.msk [vmem:[%s170 + $0x64] sm:$0xf] %vm2113, %v2078
      %2140 = vst.msk [vmem:[%s170 + $0x68] sm:$0xf] %vm2113, %v2079
      %2141 = vst.msk [vmem:[%s170 + $0x6c] sm:$0xf] %vm2113, %v2080
      %2142 = vst.msk [vmem:[%s170 + $0x70] sm:$0xf] %vm2113, %v2081
      %2143 = vst.msk [vmem:[%s170 + $0x74] sm:$0xf] %vm2113, %v2082
      %p2144 = scmp.lt.s32.totalorder %s14, 1
      %s2145 = scalar_select %p2144, %s14, 1
      %s2146 = smul.addr %s2145, 30
      %s2147 = smul.addr %s2146, 4
      %s2148 = scalar_lea.vmem %s3, %s2147
      // Predicated region
      $region33: #{svhn_cnn_forward.3} parent=31 // pred_check
        %p2149 = pneg %p100
      $region34: #{svhn_cnn_forward.3} parent=31 // pred_check_branch
        %2151 = sbr.rel (%p2149) target = $region36
      $region35: #{svhn_cnn_forward.3} parent=31 // pred_region
        _
      $region36: #{svhn_cnn_forward.3} parent=31 // pred_fallthru
        _
    $region32: #{svhn_cnn_forward.3} parent=5 // pred_fallthru
      _
    %p2152 = scmp.le.s32.totalorder 2, %s9
    // Predicated region
    $region37: #{svhn_cnn_forward.3} parent=5 // pred_check
      %p2153 = pneg %p2152
    $region38: #{svhn_cnn_forward.3} parent=5 // pred_check_branch
      %2155 = sbr.rel (%p2153) target = $region40
    $region39: #{svhn_cnn_forward.3} parent=5 // pred_region
      %s2156 = ssub.s32 %s9, 2
      // Predicated region
      $region41: #{svhn_cnn_forward.3} parent=39 // pred_check
        %p2157 = pneg %p106
      $region42: #{svhn_cnn_forward.3} parent=39 // pred_check_branch
        %2159 = sbr.rel (%p2157) target = $region44
      $region43: #{svhn_cnn_forward.3} parent=39 // pred_region
        %p2160 = scmp.lt.s32.totalorder %s15, 1
        %s2161 = scalar_select %p2160, %s15, 1
        %s2162 = smul.addr %s2161, 30
        %s2163 = smul.addr %s2162, 4
        %s2164 = scalar_lea.vmem %s3, %s2163
      $region44: #{svhn_cnn_forward.3} parent=39 // pred_fallthru
        _
    $region40: #{svhn_cnn_forward.3} parent=5 // pred_fallthru
      _
  $region6: #{svhn_cnn_forward.3} parent=0 // loop_footer
    %s13 = sadd.s32 1, %s9
  $region7: #{svhn_cnn_forward.3} parent=0 // loop_footer_branch
    %8 = sbr.rel target = $region3
  $region8: #{svhn_cnn_forward.3} parent=0 // loop_exit
    _

// kernel: svhn_cnn_forward.4
$region0: #{svhn_cnn_forward.4}
  #allocation0 [shape = 'u32[]', space=smem, size = 0x4, offset = 0x4, fixed_abs, tag = 'smem constant byte address 0x4 - core index']
  #allocation1 [shape = 'u32[144,128]{1,0:T(1,128)}', space=vmem, size = 0x12000, scoped, tag = 'internal scratch']
  %s0 = inlined_call_operand.vmem [shape: bf16[2,72,128], index: 0, kind: input, shape index: {}]
  %s1 = inlined_call_operand.vmem [shape: bf16[4,128,256], index: 1, kind: input, shape index: {}]
  %s2 = inlined_call_operand.vmem [shape: f32[1,64], index: 2, kind: input, shape index: {}]
  %s3 = inlined_call_operand.vmem [shape: bf16[2,48,64], index: 3, kind: output, shape index: {}]
  %s4 = sld [smem:[#allocation0]]
  $region45: #{svhn_cnn_forward.4} parent=0
    _
  %s6 = ssub.s32 1, %s4
  %s7 = scalar_select 0, %s6, %s4
  loop: start=0, step=1, limit=4
  $region2: #{svhn_cnn_forward.4} parent=0 // loop_pre_header
    _
  $region3: #{svhn_cnn_forward.4} parent=0 // loop_header
    %s9 = sphi 0, %s13
    %p10 = scmp.ge.s32.totalorder %s9, 4
    %s19 = sphi 0, %s21
    %s22 = sphi 0, %s19
    %s23 = sphi 0, %s22
    %s39 = sphi 0, %s23
    %s43 = sphi 0, %s43
    %s45 = sphi 0, %s43
    %s46 = sphi 0, %s45
    %s60 = sphi 0, %s46
    %s64 = sphi 0, %s64
    %s66 = sphi 0, %s64
    %s67 = sphi 0, %s66
    %s81 = sphi 0, %s67
    %s87 = sphi 0, %s89
    %s90 = sphi 0, %s87
    %s91 = sphi 0, %s90
    %s107 = sphi 0, %s91
  $region4: #{svhn_cnn_forward.4} parent=0 // loop_header_branch
    %12 = sbr.rel (%p10) target = $region8
  $region5: #{svhn_cnn_forward.4} parent=0 // loop_body
    %s14 = ssub.s32 %s9, 1
    %s15 = ssub.s32 %s9, 2
    %s16 = sadd.s32 %s9, 1
    %s17 = ssub.s32 %s9, %s16
    %p18 = scmp.eq.s32.totalorder %s17, 0
    %s20 = sadd.s32 %s19, 1
    %s21 = scalar_select %p18, %s19, %s20
    %p24 = pneg %p18
    %p25 = scmp.eq.s32.totalorder %s9, 1
    %p26 = por %p24, %p25
    %p27 = scmp.ne.s32.totalorder %s19, %s22
    %p28 = scmp.eq.s32.totalorder %s9, 0
    %p29 = por %p27, %p28
    %p30 = scmp.ne.s32.totalorder %s19, %s22
    %p31 = scmp.eq.s32.totalorder %s14, 1
    %p32 = por %p30, %p31
    %p33 = scmp.ne.s32.totalorder %s22, %s23
    %p34 = scmp.eq.s32.totalorder %s14, 0
    %p35 = por %p33, %p34
    %p36 = scmp.ne.s32.totalorder %s22, %s23
    %p37 = scmp.eq.s32.totalorder %s15, 1
    %p38 = por %p36, %p37
    %p40 = scmp.ne.s32.totalorder %s23, %s39
    %p41 = scmp.eq.s32.totalorder %s15, 0
    %p42 = por %p40, %p41
    %s44 = sadd.s32 %s43, 1
    %p47 = scmp.eq.s32.totalorder %s9, 1
    %p48 = scmp.ne.s32.totalorder %s43, %s45
    %p49 = scmp.eq.s32.totalorder %s9, 0
    %p50 = por %p48, %p49
    %p51 = scmp.ne.s32.totalorder %s43, %s45
    %p52 = scmp.eq.s32.totalorder %s14, 1
    %p53 = por %p51, %p52
    %p54 = scmp.ne.s32.totalorder %s45, %s46
    %p55 = scmp.eq.s32.totalorder %s14, 0
    %p56 = por %p54, %p55
    %p57 = scmp.ne.s32.totalorder %s45, %s46
    %p58 = scmp.eq.s32.totalorder %s15, 1
    %p59 = por %p57, %p58
    %p61 = scmp.ne.s32.totalorder %s46, %s60
    %p62 = scmp.eq.s32.totalorder %s15, 0
    %p63 = por %p61, %p62
    %s65 = sadd.s32 %s64, 1
    %p68 = scmp.eq.s32.totalorder %s9, 1
    %p69 = scmp.ne.s32.totalorder %s64, %s66
    %p70 = scmp.eq.s32.totalorder %s9, 0
    %p71 = por %p69, %p70
    %p72 = scmp.ne.s32.totalorder %s64, %s66
    %p73 = scmp.eq.s32.totalorder %s14, 1
    %p74 = por %p72, %p73
    %p75 = scmp.ne.s32.totalorder %s66, %s67
    %p76 = scmp.eq.s32.totalorder %s14, 0
    %p77 = por %p75, %p76
    %p78 = scmp.ne.s32.totalorder %s66, %s67
    %p79 = scmp.eq.s32.totalorder %s15, 1
    %p80 = por %p78, %p79
    %p82 = scmp.ne.s32.totalorder %s67, %s81
    %p83 = scmp.eq.s32.totalorder %s15, 0
    %p84 = por %p82, %p83
    %s85 = ssub.s32 %s9, %s16
    %p86 = scmp.eq.s32.totalorder %s85, 0
    %s88 = sadd.s32 %s87, 1
    %s89 = scalar_select %p86, %s87, %s88
    %p92 = pneg %p86
    %p93 = scmp.eq.s32.totalorder %s9, 1
    %p94 = por %p92, %p93
    %p95 = scmp.ne.s32.totalorder %s87, %s90
    %p96 = scmp.eq.s32.totalorder %s9, 0
    %p97 = por %p95, %p96
    %p98 = scmp.ne.s32.totalorder %s87, %s90
    %p99 = scmp.eq.s32.totalorder %s14, 1
    %p100 = por %p98, %p99
    %p101 = scmp.ne.s32.totalorder %s90, %s91
    %p102 = scmp.eq.s32.totalorder %s14, 0
    %p103 = por %p101, %p102
    %p104 = scmp.ne.s32.totalorder %s90, %s91
    %p105 = scmp.eq.s32.totalorder %s15, 1
    %p106 = por %p104, %p105
    %p108 = scmp.ne.s32.totalorder %s91, %s107
    %p109 = scmp.eq.s32.totalorder %s15, 0
    %p110 = por %p108, %p109
    %p111 = scmp.le.s32.totalorder 1, %s9
    %p112 = scmp.lt.s32.totalorder %s9, 3
    %p113 = pnand %p111, %p112
    %p114 = pneg %p113
    // Predicated region
    $region9: #{svhn_cnn_forward.4} parent=5 // pred_check
      _
    $region10: #{svhn_cnn_forward.4} parent=5 // pred_check_branch
      %116 = sbr.rel (%p113) target = $region12
    $region11: #{svhn_cnn_forward.4} parent=5 // pred_region
      %s117 = ssub.s32 %s9, 1
      // Predicated region
      $region13: #{svhn_cnn_forward.4} parent=11 // pred_check
        %p118 = pneg %p56
      $region14: #{svhn_cnn_forward.4} parent=11 // pred_check_branch
        %120 = sbr.rel (%p118) target = $region16
      $region15: #{svhn_cnn_forward.4} parent=11 // pred_region
        _
      $region16: #{svhn_cnn_forward.4} parent=11 // pred_fallthru
        _
      // Predicated region
      $region17: #{svhn_cnn_forward.4} parent=11 // pred_check
        %p121 = pneg %p77
      $region18: #{svhn_cnn_forward.4} parent=11 // pred_check_branch
        %123 = sbr.rel (%p121) target = $region20
      $region19: #{svhn_cnn_forward.4} parent=11 // pred_region
        _
      $region20: #{svhn_cnn_forward.4} parent=11 // pred_fallthru
        _
    $region12: #{svhn_cnn_forward.4} parent=5 // pred_fallthru
      _
    %p124 = scmp.lt.s32.totalorder %s9, 2
    // Predicated region
    $region21: #{svhn_cnn_forward.4} parent=5 // pred_check
      %p125 = pneg %p124
    $region22: #{svhn_cnn_forward.4} parent=5 // pred_check_branch
      %127 = sbr.rel (%p125) target = $region24
    $region23: #{svhn_cnn_forward.4} parent=5 // pred_region
      // Predicated region
      $region25: #{svhn_cnn_forward.4} parent=23 // pred_check
        %p128 = pneg %p29
      $region26: #{svhn_cnn_forward.4} parent=23 // pred_check_branch
        %130 = sbr.rel (%p128) target = $region28
      $region27: #{svhn_cnn_forward.4} parent=23 // pred_region
        %p131 = scmp.lt.s32.totalorder %s9, 1
        %s132 = scalar_select %p131, %s9, 1
        %s133 = smul.addr %s132, 9
        %s134 = smul.addr %s133, 4
        %s135 = scalar_lea.vmem %s0, %s134
      $region28: #{svhn_cnn_forward.4} parent=23 // pred_fallthru
        _
    $region24: #{svhn_cnn_forward.4} parent=5 // pred_fallthru
      _
    %p136 = scmp.le.s32.totalorder 1, %s9
    %p137 = scmp.lt.s32.totalorder %s9, 3
    %p138 = pnand %p136, %p137
    %p139 = pneg %p138
    // Predicated region
    $region29: #{svhn_cnn_forward.4} parent=5 // pred_check
      _
    $region30: #{svhn_cnn_forward.4} parent=5 // pred_check_branch
      %141 = sbr.rel (%p138) target = $region32
    $region31: #{svhn_cnn_forward.4} parent=5 // pred_region
      %s142 = ssub.s32 %s9, 1
      %p143 = scmp.lt.s32.totalorder %s14, 1
      %s144 = scalar_select %p143, %s14, 1
      %s145 = smul.addr %s144, 9
      %s146 = smul.addr %s145, 4
      %s147 = scalar_lea.vmem %s0, %s146
      %p148 = pneg %p35
      %p149 = pneg %p32
      %p150 = pneg %p56
      %p151 = pneg %p53
      %p152 = pneg %p77
      %p153 = pneg %p74
      %p154 = pneg %p103
      %p155 = pneg %p100
      %p156 = scmp.lt.s32.totalorder %s14, 1
      %s157 = scalar_select %p156, %s14, 1
      %s158 = smul.addr %s157, 6
      %s159 = smul.addr %s158, 4
      %s160 = scalar_lea.vmem %s3, %s159
      %p161 = scmp.lt.s32.totalorder %s14, 1
      %s162 = scalar_select %p161, %s14, 1
      %s163 = smul.addr %s162, 9
      %s164 = smul.addr %s163, 4
      %s165 = scalar_lea.vmem %s0, %s164
      %p166 = scmp.lt.s32.totalorder %s14, 1
      %s167 = scalar_select %p166, %s14, 1
      %s168 = smul.addr %s167, 6
      %s169 = smul.addr %s168, 4
      %s170 = scalar_lea.vmem %s3, %s169
      %v172 = vld [vmem:[%s165] sm:$0xf]
      %v173 = vld [vmem:[%s165 + $0x4] sm:$0xf]
      %v174 = vld [vmem:[%s165 + $0x8] sm:$0xf]
      %v175 = vld [vmem:[%s165 + $0xc] sm:$0xf]
      %v176 = vld [vmem:[%s165 + $0x10] sm:$0xf]
      %v177 = vld [vmem:[%s165 + $0x14] sm:$0xf]
      %v178 = vld [vmem:[%s1] sm:$0xff]
      %v179 = vld [vmem:[%s1 + $0x8] sm:$0xff]
      %v180 = vld [vmem:[%s1 + $0x10] sm:$0xff]
      %v181 = vld [vmem:[%s1 + $0x18] sm:$0xff]
      %v182 = vld [vmem:[%s1 + $0x20] sm:$0xff]
      %v183 = vld [vmem:[%s1 + $0x28] sm:$0xff]
      %v184 = vld [vmem:[%s1 + $0x30] sm:$0xff]
      %v185 = vld [vmem:[%s1 + $0x38] sm:$0xff]
      %v186 = vld [vmem:[%s1 + $0x40] sm:$0xff]
      %v187 = vld [vmem:[%s1 + $0x48] sm:$0xff]
      %v188 = vld [vmem:[%s1 + $0x50] sm:$0xff]
      %v189 = vld [vmem:[%s1 + $0x58] sm:$0xff]
      %v190 = vld [vmem:[%s1 + $0x60] sm:$0xff]
      %v191 = vld [vmem:[%s1 + $0x68] sm:$0xff]
      %v192 = vld [vmem:[%s1 + $0x70] sm:$0xff]
      %v193 = vld [vmem:[%s1 + $0x78] sm:$0xff]
      %v194 = vld [vmem:[%s165 + $0x18] sm:$0x1]
      %s195 = scalar_lea.vmem %s1, 128
      %v196 = vld [vmem:[%s195] sm:$0xff]
      %v197 = vld [vmem:[%s195 + $0x8] sm:$0xff]
      %v198 = vld [vmem:[%s195 + $0x10] sm:$0xff]
      %v199 = vld [vmem:[%s195 + $0x18] sm:$0xff]
      %v200 = vld [vmem:[%s195 + $0x20] sm:$0xff]
      %v201 = vld [vmem:[%s195 + $0x28] sm:$0xff]
      %v202 = vld [vmem:[%s195 + $0x30] sm:$0xff]
      %v203 = vld [vmem:[%s195 + $0x38] sm:$0xff]
      %v204 = vld [vmem:[%s195 + $0x40] sm:$0xff]
      %v205 = vld [vmem:[%s195 + $0x48] sm:$0xff]
      %v206 = vld [vmem:[%s195 + $0x50] sm:$0xff]
      %v207 = vld [vmem:[%s195 + $0x58] sm:$0xff]
      %v208 = vld [vmem:[%s195 + $0x60] sm:$0xff]
      %v209 = vld [vmem:[%s195 + $0x68] sm:$0xff]
      %v210 = vld [vmem:[%s195 + $0x70] sm:$0xff]
      %v211 = vld [vmem:[%s195 + $0x78] sm:$0xff]
      %v219 = vunpack.c.l.b16 %v172
      %v220 = vunpack.c.l.b16 %v173
      %v221 = vunpack.c.l.b16 %v174
      %v222 = vunpack.c.l.b16 %v175
      %v223 = vunpack.c.l.b16 %v176
      %v224 = vunpack.c.l.b16 %v177
      %v225 = vunpack.c.l.b16 %v194
      %v226 = vpack.c.b16 %v220, %v219
      %v227 = vpack.c.b16 %v222, %v221
      %v228 = vpack.c.b16 %v224, %v223
      %v229 = vpack.c.b16 %v225, %v225
      %vm230 = vsmask.f32 7424
      %v232 = vshrl.u32 %v226, 16
      %v234 = vshll.u32 %v226, 16
      %v236 = vrot.slane %v234, 1
      %v237 = vor.u32 %v232, %v236
      %v239 = vshll.u32 %v227, 16
      %v241 = vrot.slane %v239, 1
      %v242 = vsel %vm230, %v237, %v241
      %v243 = vshrl.u32 %v227, 16
      %v245 = vor.u32 %v243, %v241
      %v247 = vshll.u32 %v228, 16
      %v249 = vrot.slane %v247, 1
      %v250 = vsel %vm230, %v245, %v249
      %v251 = vshrl.u32 %v228, 16
      %v253 = vor.u32 %v251, %v249
      %v255 = vshll.u32 %v229, 16
      %v257 = vrot.slane %v255, 1
      %v258 = vsel %vm230, %v253, %v257
      %v278 = vunpack.c.l.b16 %v196
      %v279 = vunpack.c.h.b16 %v196
      %v280 = vunpack.c.l.b16 %v197
      %v281 = vunpack.c.h.b16 %v197
      %v282 = vunpack.c.l.b16 %v198
      %v283 = vunpack.c.h.b16 %v198
      %v284 = vunpack.c.l.b16 %v199
      %v285 = vunpack.c.h.b16 %v199
      %v286 = vunpack.c.l.b16 %v200
      %v287 = vunpack.c.h.b16 %v200
      %v288 = vunpack.c.l.b16 %v201
      %v289 = vunpack.c.h.b16 %v201
      %v290 = vunpack.c.l.b16 %v202
      %v291 = vunpack.c.h.b16 %v202
      %v292 = vunpack.c.l.b16 %v203
      %v293 = vunpack.c.h.b16 %v203
      %v294 = vunpack.c.l.b16 %v204
      %v295 = vunpack.c.h.b16 %v204
      %v296 = vunpack.c.l.b16 %v205
      %v297 = vunpack.c.h.b16 %v205
      %v298 = vunpack.c.l.b16 %v206
      %v299 = vunpack.c.h.b16 %v206
      %v300 = vunpack.c.l.b16 %v207
      %v301 = vunpack.c.h.b16 %v207
      %v302 = vunpack.c.l.b16 %v208
      %v303 = vunpack.c.h.b16 %v208
      %v304 = vunpack.c.l.b16 %v209
      %v305 = vunpack.c.h.b16 %v209
      %v306 = vunpack.c.l.b16 %v210
      %v307 = vunpack.c.h.b16 %v210
      %v308 = vunpack.c.l.b16 %v211
      %v309 = vunpack.c.h.b16 %v211
      %v310 = vpack.c.b16 %v280, %v278
      %v311 = vpack.c.b16 %v281, %v279
      %v312 = vpack.c.b16 %v284, %v282
      %v313 = vpack.c.b16 %v285, %v283
      %v314 = vpack.c.b16 %v288, %v286
      %v315 = vpack.c.b16 %v289, %v287
      %v316 = vpack.c.b16 %v292, %v290
      %v317 = vpack.c.b16 %v293, %v291
      %v318 = vpack.c.b16 %v296, %v294
      %v319 = vpack.c.b16 %v297, %v295
      %v320 = vpack.c.b16 %v300, %v298
      %v321 = vpack.c.b16 %v301, %v299
      %v322 = vpack.c.b16 %v304, %v302
      %v323 = vpack.c.b16 %v305, %v303
      %v324 = vpack.c.b16 %v308, %v306
      %v325 = vpack.c.b16 %v309, %v307
      %342 = vmatprep.subr.bf16.mxu0 %v311
      %343 = vmatpush1.bf16.msra.mxu0 %v310
      %344 = vmatprep.subr.bf16.mxu0 %v313
      %345 = vmatpush1.bf16.msra.mxu0 %v312
      %346 = vmatprep.subr.bf16.mxu0 %v315
      %347 = vmatpush1.bf16.msra.mxu0 %v314
      %348 = vmatprep.subr.bf16.mxu0 %v317
      %349 = vmatpush1.bf16.msra.mxu0 %v316
      %350 = vmatprep.subr.bf16.mxu0 %v319
      %351 = vmatpush1.bf16.msra.mxu0 %v318
      %352 = vmatprep.subr.bf16.mxu0 %v321
      %353 = vmatpush1.bf16.msra.mxu0 %v320
      %354 = vmatprep.subr.bf16.mxu0 %v323
      %355 = vmatpush1.bf16.msra.mxu0 %v322
      %356 = vmatprep.subr.bf16.mxu0 %v325
      %357 = vmatpush1.bf16.msra.mxu0 %v324
      %358 = vmatprep.subr.bf16.mxu0 0
      %359 = vmatpush1.bf16.msra.mxu0 0
      %360 = vmatprep.subr.bf16.mxu0 0
      %361 = vmatpush1.bf16.msra.mxu0 0
      %362 = vmatprep.subr.bf16.mxu0 0
      %363 = vmatpush1.bf16.msra.mxu0 0
      %364 = vmatprep.subr.bf16.mxu0 0
      %365 = vmatpush1.bf16.msra.mxu0 0
      %366 = vmatprep.subr.bf16.mxu0 0
      %367 = vmatpush1.bf16.msra.mxu0 0
      %368 = vmatprep.subr.bf16.mxu0 0
      %369 = vmatpush1.bf16.msra.mxu0 0
      %370 = vmatprep.subr.bf16.mxu0 0
      %371 = vmatpush1.bf16.msra.mxu0 0
      %372 = vmatprep.subr.bf16.mxu0 0
      %373 = vmatpush1.bf16.msra.mxu0 0
      %374 = vmatprep.mubr.bf16.mxu0 0
      %375 = vmatmul.mubr.bf16.gmra.mrb[0].mxu0 %v242
      %v376 = vpop.f32.mrb[0].mxu0
      %v377 = vadd.f32 0.0, %v376
      %v378 = vpop.f32.mrb[0].mxu0
      %v379 = vadd.f32 0.0, %v378
      %v380 = vpop.f32.mrb[0].mxu0
      %v381 = vadd.f32 0.0, %v380
      %v382 = vpop.f32.mrb[0].mxu0
      %v383 = vadd.f32 0.0, %v382
      %384 = vmatprep.mubr.bf16.mxu0 0
      %385 = vmatmul.mubr.bf16.gmra.mrb[0].mxu0 %v250
      %v386 = vpop.f32.mrb[0].mxu0
      %v387 = vadd.f32 0.0, %v386
      %v388 = vpop.f32.mrb[0].mxu0
      %v389 = vadd.f32 0.0, %v388
      %v390 = vpop.f32.mrb[0].mxu0
      %v391 = vadd.f32 0.0, %v390
      %v392 = vpop.f32.mrb[0].mxu0
      %v393 = vadd.f32 0.0, %v392
      %394 = vmatprep.mubr.bf16.mxu0 0
      %395 = vmatmul.mubr.bf16.gmra.mrb[0].mxu0 %v258
      %v396 = vpop.f32.mrb[0].mxu0
      %v397 = vadd.f32 0.0, %v396
      %v398 = vpop.f32.mrb[0].mxu0
      %v399 = vadd.f32 0.0, %v398
      %v400 = vpop.f32.mrb[0].mxu0
      %v401 = vadd.f32 0.0, %v400
      %v402 = vpop.f32.mrb[0].mxu0
      %v403 = vadd.f32 0.0, %v402
      %404 = vdwg.mxu0
      %v424 = vunpack.c.l.b16 %v178
      %v425 = vunpack.c.h.b16 %v178
      %v426 = vunpack.c.l.b16 %v179
      %v427 = vunpack.c.h.b16 %v179
      %v428 = vunpack.c.l.b16 %v180
      %v429 = vunpack.c.h.b16 %v180
      %v430 = vunpack.c.l.b16 %v181
      %v431 = vunpack.c.h.b16 %v181
      %v432 = vunpack.c.l.b16 %v182
      %v433 = vunpack.c.h.b16 %v182
      %v434 = vunpack.c.l.b16 %v183
      %v435 = vunpack.c.h.b16 %v183
      %v436 = vunpack.c.l.b16 %v184
      %v437 = vunpack.c.h.b16 %v184
      %v438 = vunpack.c.l.b16 %v185
      %v439 = vunpack.c.h.b16 %v185
      %v440 = vunpack.c.l.b16 %v186
      %v441 = vunpack.c.h.b16 %v186
      %v442 = vunpack.c.l.b16 %v187
      %v443 = vunpack.c.h.b16 %v187
      %v444 = vunpack.c.l.b16 %v188
      %v445 = vunpack.c.h.b16 %v188
      %v446 = vunpack.c.l.b16 %v189
      %v447 = vunpack.c.h.b16 %v189
      %v448 = vunpack.c.l.b16 %v190
      %v449 = vunpack.c.h.b16 %v190
      %v450 = vunpack.c.l.b16 %v191
      %v451 = vunpack.c.h.b16 %v191
      %v452 = vunpack.c.l.b16 %v192
      %v453 = vunpack.c.h.b16 %v192
      %v454 = vunpack.c.l.b16 %v193
      %v455 = vunpack.c.h.b16 %v193
      %v456 = vpack.c.b16 %v426, %v424
      %v457 = vpack.c.b16 %v427, %v425
      %v458 = vpack.c.b16 %v430, %v428
      %v459 = vpack.c.b16 %v431, %v429
      %v460 = vpack.c.b16 %v434, %v432
      %v461 = vpack.c.b16 %v435, %v433
      %v462 = vpack.c.b16 %v438, %v436
      %v463 = vpack.c.b16 %v439, %v437
      %v464 = vpack.c.b16 %v442, %v440
      %v465 = vpack.c.b16 %v443, %v441
      %v466 = vpack.c.b16 %v446, %v444
      %v467 = vpack.c.b16 %v447, %v445
      %v468 = vpack.c.b16 %v450, %v448
      %v469 = vpack.c.b16 %v451, %v449
      %v470 = vpack.c.b16 %v454, %v452
      %v471 = vpack.c.b16 %v455, %v453
      %488 = vmatprep.subr.bf16.mxu0 %v457
      %489 = vmatpush1.bf16.msra.mxu0 %v456
      %490 = vmatprep.subr.bf16.mxu0 %v459
      %491 = vmatpush1.bf16.msra.mxu0 %v458
      %492 = vmatprep.subr.bf16.mxu0 %v461
      %493 = vmatpush1.bf16.msra.mxu0 %v460
      %494 = vmatprep.subr.bf16.mxu0 %v463
      %495 = vmatpush1.bf16.msra.mxu0 %v462
      %496 = vmatprep.subr.bf16.mxu0 %v465
      %497 = vmatpush1.bf16.msra.mxu0 %v464
      %498 = vmatprep.subr.bf16.mxu0 %v467
      %499 = vmatpush1.bf16.msra.mxu0 %v466
      %500 = vmatprep.subr.bf16.mxu0 %v469
      %501 = vmatpush1.bf16.msra.mxu0 %v468
      %502 = vmatprep.subr.bf16.mxu0 %v471
      %503 = vmatpush1.bf16.msra.mxu0 %v470
      %504 = vmatprep.subr.bf16.mxu0 0
      %505 = vmatpush1.bf16.msra.mxu0 0
      %506 = vmatprep.subr.bf16.mxu0 0
      %507 = vmatpush1.bf16.msra.mxu0 0
      %508 = vmatprep.subr.bf16.mxu0 0
      %509 = vmatpush1.bf16.msra.mxu0 0
      %510 = vmatprep.subr.bf16.mxu0 0
      %511 = vmatpush1.bf16.msra.mxu0 0
      %512 = vmatprep.subr.bf16.mxu0 0
      %513 = vmatpush1.bf16.msra.mxu0 0
      %514 = vmatprep.subr.bf16.mxu0 0
      %515 = vmatpush1.bf16.msra.mxu0 0
      %516 = vmatprep.subr.bf16.mxu0 0
      %517 = vmatpush1.bf16.msra.mxu0 0
      %518 = vmatprep.subr.bf16.mxu0 0
      %519 = vmatpush1.bf16.msra.mxu0 0
      %520 = vmatprep.mubr.bf16.mxu0 0
      %521 = vmatmul.mubr.bf16.gmra.mrb[0].mxu0 %v226
      %v522 = vpop.f32.mrb[0].mxu0
      %v523 = vadd.f32 %v377, %v522
      %v524 = vpop.f32.mrb[0].mxu0
      %v525 = vadd.f32 %v379, %v524
      %v526 = vpop.f32.mrb[0].mxu0
      %v527 = vadd.f32 %v381, %v526
      %v528 = vpop.f32.mrb[0].mxu0
      %v529 = vadd.f32 %v383, %v528
      %530 = vmatprep.mubr.bf16.mxu0 0
      %531 = vmatmul.mubr.bf16.gmra.mrb[0].mxu0 %v227
      %v532 = vpop.f32.mrb[0].mxu0
      %v533 = vadd.f32 %v387, %v532
      %v534 = vpop.f32.mrb[0].mxu0
      %v535 = vadd.f32 %v389, %v534
      %v536 = vpop.f32.mrb[0].mxu0
      %v537 = vadd.f32 %v391, %v536
      %v538 = vpop.f32.mrb[0].mxu0
      %v539 = vadd.f32 %v393, %v538
      %540 = vmatprep.mubr.bf16.mxu0 0
      %541 = vmatmul.mubr.bf16.gmra.mrb[0].mxu0 %v228
      %v542 = vpop.f32.mrb[0].mxu0
      %v543 = vadd.f32 %v397, %v542
      %v544 = vpop.f32.mrb[0].mxu0
      %v545 = vadd.f32 %v399, %v544
      %v546 = vpop.f32.mrb[0].mxu0
      %v547 = vadd.f32 %v401, %v546
      %v548 = vpop.f32.mrb[0].mxu0
      %v549 = vadd.f32 %v403, %v548
      %550 = vdwg.mxu0
      %v551 = vld [vmem:[%s165 + $0x18] sm:$0xf]
      %s552 = scalar_lea.vmem %s1, 256
      %v553 = vld [vmem:[%s552] sm:$0xff]
      %v554 = vld [vmem:[%s552 + $0x8] sm:$0xff]
      %v555 = vld [vmem:[%s552 + $0x10] sm:$0xff]
      %v556 = vld [vmem:[%s552 + $0x18] sm:$0xff]
      %v557 = vld [vmem:[%s552 + $0x20] sm:$0xff]
      %v558 = vld [vmem:[%s552 + $0x28] sm:$0xff]
      %v559 = vld [vmem:[%s552 + $0x30] sm:$0xff]
      %v560 = vld [vmem:[%s552 + $0x38] sm:$0xff]
      %v561 = vld [vmem:[%s552 + $0x40] sm:$0xff]
      %v562 = vld [vmem:[%s552 + $0x48] sm:$0xff]
      %v563 = vld [vmem:[%s552 + $0x50] sm:$0xff]
      %v564 = vld [vmem:[%s552 + $0x58] sm:$0xff]
      %v565 = vld [vmem:[%s552 + $0x60] sm:$0xff]
      %v566 = vld [vmem:[%s552 + $0x68] sm:$0xff]
      %v567 = vld [vmem:[%s552 + $0x70] sm:$0xff]
      %v568 = vld [vmem:[%s552 + $0x78] sm:$0xff]
      %v570 = vunpack.c.l.b16 %v551
      %v571 = vpack.c.b16 %v221, %v220
      %v572 = vpack.c.b16 %v223, %v222
      %v573 = vpack.c.b16 %v570, %v224
      %v593 = vunpack.c.l.b16 %v553
      %v594 = vunpack.c.h.b16 %v553
      %v595 = vunpack.c.l.b16 %v554
      %v596 = vunpack.c.h.b16 %v554
      %v597 = vunpack.c.l.b16 %v555
      %v598 = vunpack.c.h.b16 %v555
      %v599 = vunpack.c.l.b16 %v556
      %v600 = vunpack.c.h.b16 %v556
      %v601 = vunpack.c.l.b16 %v557
      %v602 = vunpack.c.h.b16 %v557
      %v603 = vunpack.c.l.b16 %v558
      %v604 = vunpack.c.h.b16 %v558
      %v605 = vunpack.c.l.b16 %v559
      %v606 = vunpack.c.h.b16 %v559
      %v607 = vunpack.c.l.b16 %v560
      %v608 = vunpack.c.h.b16 %v560
      %v609 = vunpack.c.l.b16 %v561
      %v610 = vunpack.c.h.b16 %v561
      %v611 = vunpack.c.l.b16 %v562
      %v612 = vunpack.c.h.b16 %v562
      %v613 = vunpack.c.l.b16 %v563
      %v614 = vunpack.c.h.b16 %v563
      %v615 = vunpack.c.l.b16 %v564
      %v616 = vunpack.c.h.b16 %v564
      %v617 = vunpack.c.l.b16 %v565
      %v618 = vunpack.c.h.b16 %v565
      %v619 = vunpack.c.l.b16 %v566
      %v620 = vunpack.c.h.b16 %v566
      %v621 = vunpack.c.l.b16 %v567
      %v622 = vunpack.c.h.b16 %v567
      %v623 = vunpack.c.l.b16 %v568
      %v624 = vunpack.c.h.b16 %v568
      %v625 = vpack.c.b16 %v595, %v593
      %v626 = vpack.c.b16 %v596, %v594
      %v627 = vpack.c.b16 %v599, %v597
      %v628 = vpack.c.b16 %v600, %v598
      %v629 = vpack.c.b16 %v603, %v601
      %v630 = vpack.c.b16 %v604, %v602
      %v631 = vpack.c.b16 %v607, %v605
      %v632 = vpack.c.b16 %v608, %v606
      %v633 = vpack.c.b16 %v611, %v609
      %v634 = vpack.c.b16 %v612, %v610
      %v635 = vpack.c.b16 %v615, %v613
      %v636 = vpack.c.b16 %v616, %v614
      %v637 = vpack.c.b16 %v619, %v617
      %v638 = vpack.c.b16 %v620, %v618
      %v639 = vpack.c.b16 %v623, %v621
      %v640 = vpack.c.b16 %v624, %v622
      %657 = vmatprep.subr.bf16.mxu0 %v626
      %658 = vmatpush1.bf16.msra.mxu0 %v625
      %659 = vmatprep.subr.bf16.mxu0 %v628
      %660 = vmatpush1.bf16.msra.mxu0 %v627
      %661 = vmatprep.subr.bf16.mxu0 %v630
      %662 = vmatpush1.bf16.msra.mxu0 %v629
      %663 = vmatprep.subr.bf16.mxu0 %v632
      %664 = vmatpush1.bf16.msra.mxu0 %v631
      %665 = vmatprep.subr.bf16.mxu0 %v634
      %666 = vmatpush1.bf16.msra.mxu0 %v633
      %667 = vmatprep.subr.bf16.mxu0 %v636
      %668 = vmatpush1.bf16.msra.mxu0 %v635
      %669 = vmatprep.subr.bf16.mxu0 %v638
      %670 = vmatpush1.bf16.msra.mxu0 %v637
      %671 = vmatprep.subr.bf16.mxu0 %v640
      %672 = vmatpush1.bf16.msra.mxu0 %v639
      %673 = vmatprep.subr.bf16.mxu0 0
      %674 = vmatpush1.bf16.msra.mxu0 0
      %675 = vmatprep.subr.bf16.mxu0 0
      %676 = vmatpush1.bf16.msra.mxu0 0
      %677 = vmatprep.subr.bf16.mxu0 0
      %678 = vmatpush1.bf16.msra.mxu0 0
      %679 = vmatprep.subr.bf16.mxu0 0
      %680 = vmatpush1.bf16.msra.mxu0 0
      %681 = vmatprep.subr.bf16.mxu0 0
      %682 = vmatpush1.bf16.msra.mxu0 0
      %683 = vmatprep.subr.bf16.mxu0 0
      %684 = vmatpush1.bf16.msra.mxu0 0
      %685 = vmatprep.subr.bf16.mxu0 0
      %686 = vmatpush1.bf16.msra.mxu0 0
      %687 = vmatprep.subr.bf16.mxu0 0
      %688 = vmatpush1.bf16.msra.mxu0 0
      %689 = vmatprep.mubr.bf16.mxu0 0
      %690 = vmatmul.mubr.bf16.gmra.mrb[0].mxu0 %v571
      %v691 = vpop.f32.mrb[0].mxu0
      %v692 = vadd.f32 0.0, %v691
      %v693 = vpop.f32.mrb[0].mxu0
      %v694 = vadd.f32 0.0, %v693
      %v695 = vpop.f32.mrb[0].mxu0
      %v696 = vadd.f32 0.0, %v695
      %v697 = vpop.f32.mrb[0].mxu0
      %v698 = vadd.f32 0.0, %v697
      %699 = vmatprep.mubr.bf16.mxu0 0
      %700 = vmatmul.mubr.bf16.gmra.mrb[0].mxu0 %v572
      %v701 = vpop.f32.mrb[0].mxu0
      %v702 = vadd.f32 0.0, %v701
      %v703 = vpop.f32.mrb[0].mxu0
      %v704 = vadd.f32 0.0, %v703
      %v705 = vpop.f32.mrb[0].mxu0
      %v706 = vadd.f32 0.0, %v705
      %v707 = vpop.f32.mrb[0].mxu0
      %v708 = vadd.f32 0.0, %v707
      %709 = vmatprep.mubr.bf16.mxu0 0
      %710 = vmatmul.mubr.bf16.gmra.mrb[0].mxu0 %v573
      %v711 = vpop.f32.mrb[0].mxu0
      %v712 = vadd.f32 0.0, %v711
      %v713 = vpop.f32.mrb[0].mxu0
      %v714 = vadd.f32 0.0, %v713
      %v715 = vpop.f32.mrb[0].mxu0
      %v716 = vadd.f32 0.0, %v715
      %v717 = vpop.f32.mrb[0].mxu0
      %v718 = vadd.f32 0.0, %v717
      %719 = vdwg.mxu0
      %v720 = vadd.f32 %v523, %v692
      %v721 = vadd.f32 %v525, %v694
      %v722 = vadd.f32 %v527, %v696
      %v723 = vadd.f32 %v529, %v698
      %v724 = vadd.f32 %v533, %v702
      %v725 = vadd.f32 %v535, %v704
      %v726 = vadd.f32 %v537, %v706
      %v727 = vadd.f32 %v539, %v708
      %v728 = vadd.f32 %v543, %v712
      %v729 = vadd.f32 %v545, %v714
      %v730 = vadd.f32 %v547, %v716
      %v731 = vadd.f32 %v549, %v718
      %v732 = vld [vmem:[%s165 + $0x4] sm:$0xf]
      %v733 = vld [vmem:[%s165 + $0x8] sm:$0xf]
      %v734 = vld [vmem:[%s165 + $0xc] sm:$0xf]
      %v735 = vld [vmem:[%s165 + $0x10] sm:$0xf]
      %v736 = vld [vmem:[%s165 + $0x14] sm:$0xf]
      %v737 = vld [vmem:[%s165 + $0x18] sm:$0xf]
      %v738 = vld [vmem:[%s165 + $0x1c] sm:$0x1]
      %s739 = scalar_lea.vmem %s1, 384
      %v740 = vld [vmem:[%s739] sm:$0xff]
      %v741 = vld [vmem:[%s739 + $0x8] sm:$0xff]
      %v742 = vld [vmem:[%s739 + $0x10] sm:$0xff]
      %v743 = vld [vmem:[%s739 + $0x18] sm:$0xff]
      %v744 = vld [vmem:[%s739 + $0x20] sm:$0xff]
      %v745 = vld [vmem:[%s739 + $0x28] sm:$0xff]
      %v746 = vld [vmem:[%s739 + $0x30] sm:$0xff]
      %v747 = vld [vmem:[%s739 + $0x38] sm:$0xff]
      %v748 = vld [vmem:[%s739 + $0x40] sm:$0xff]
      %v749 = vld [vmem:[%s739 + $0x48] sm:$0xff]
      %v750 = vld [vmem:[%s739 + $0x50] sm:$0xff]
      %v751 = vld [vmem:[%s739 + $0x58] sm:$0xff]
      %v752 = vld [vmem:[%s739 + $0x60] sm:$0xff]
      %v753 = vld [vmem:[%s739 + $0x68] sm:$0xff]
      %v754 = vld [vmem:[%s739 + $0x70] sm:$0xff]
      %v755 = vld [vmem:[%s739 + $0x78] sm:$0xff]
      %v763 = vunpack.c.l.b16 %v732
      %v764 = vunpack.c.l.b16 %v733
      %v765 = vunpack.c.l.b16 %v734
      %v766 = vunpack.c.l.b16 %v735
      %v767 = vunpack.c.l.b16 %v736
      %v768 = vunpack.c.l.b16 %v737
      %v769 = vunpack.c.l.b16 %v738
      %v770 = vpack.c.b16 %v764, %v763
      %v771 = vpack.c.b16 %v766, %v765
      %v772 = vpack.c.b16 %v768, %v767
      %v773 = vpack.c.b16 %v769, %v769
      %v775 = vshrl.u32 %v770, 16
      %v777 = vshll.u32 %v770, 16
      %v779 = vrot.slane %v777, 1
      %v780 = vor.u32 %v775, %v779
      %v782 = vshll.u32 %v771, 16
      %v784 = vrot.slane %v782, 1
      %v785 = vsel %vm230, %v780, %v784
      %v786 = vshrl.u32 %v771, 16
      %v788 = vor.u32 %v786, %v784
      %v790 = vshll.u32 %v772, 16
      %v792 = vrot.slane %v790, 1
      %v793 = vsel %vm230, %v788, %v792
      %v794 = vshrl.u32 %v772, 16
      %v796 = vor.u32 %v794, %v792
      %v798 = vshll.u32 %v773, 16
      %v800 = vrot.slane %v798, 1
      %v801 = vsel %vm230, %v796, %v800
      %v821 = vunpack.c.l.b16 %v740
      %v822 = vunpack.c.h.b16 %v740
      %v823 = vunpack.c.l.b16 %v741
      %v824 = vunpack.c.h.b16 %v741
      %v825 = vunpack.c.l.b16 %v742
      %v826 = vunpack.c.h.b16 %v742
      %v827 = vunpack.c.l.b16 %v743
      %v828 = vunpack.c.h.b16 %v743
      %v829 = vunpack.c.l.b16 %v744
      %v830 = vunpack.c.h.b16 %v744
      %v831 = vunpack.c.l.b16 %v745
      %v832 = vunpack.c.h.b16 %v745
      %v833 = vunpack.c.l.b16 %v746
      %v834 = vunpack.c.h.b16 %v746
      %v835 = vunpack.c.l.b16 %v747
      %v836 = vunpack.c.h.b16 %v747
      %v837 = vunpack.c.l.b16 %v748
      %v838 = vunpack.c.h.b16 %v748
      %v839 = vunpack.c.l.b16 %v749
      %v840 = vunpack.c.h.b16 %v749
      %v841 = vunpack.c.l.b16 %v750
      %v842 = vunpack.c.h.b16 %v750
      %v843 = vunpack.c.l.b16 %v751
      %v844 = vunpack.c.h.b16 %v751
      %v845 = vunpack.c.l.b16 %v752
      %v846 = vunpack.c.h.b16 %v752
      %v847 = vunpack.c.l.b16 %v753
      %v848 = vunpack.c.h.b16 %v753
      %v849 = vunpack.c.l.b16 %v754
      %v850 = vunpack.c.h.b16 %v754
      %v851 = vunpack.c.l.b16 %v755
      %v852 = vunpack.c.h.b16 %v755
      %v853 = vpack.c.b16 %v823, %v821
      %v854 = vpack.c.b16 %v824, %v822
      %v855 = vpack.c.b16 %v827, %v825
      %v856 = vpack.c.b16 %v828, %v826
      %v857 = vpack.c.b16 %v831, %v829
      %v858 = vpack.c.b16 %v832, %v830
      %v859 = vpack.c.b16 %v835, %v833
      %v860 = vpack.c.b16 %v836, %v834
      %v861 = vpack.c.b16 %v839, %v837
      %v862 = vpack.c.b16 %v840, %v838
      %v863 = vpack.c.b16 %v843, %v841
      %v864 = vpack.c.b16 %v844, %v842
      %v865 = vpack.c.b16 %v847, %v845
      %v866 = vpack.c.b16 %v848, %v846
      %v867 = vpack.c.b16 %v851, %v849
      %v868 = vpack.c.b16 %v852, %v850
      %885 = vmatprep.subr.bf16.mxu0 %v854
      %886 = vmatpush1.bf16.msra.mxu0 %v853
      %887 = vmatprep.subr.bf16.mxu0 %v856
      %888 = vmatpush1.bf16.msra.mxu0 %v855
      %889 = vmatprep.subr.bf16.mxu0 %v858
      %890 = vmatpush1.bf16.msra.mxu0 %v857
      %891 = vmatprep.subr.bf16.mxu0 %v860
      %892 = vmatpush1.bf16.msra.mxu0 %v859
      %893 = vmatprep.subr.bf16.mxu0 %v862
      %894 = vmatpush1.bf16.msra.mxu0 %v861
      %895 = vmatprep.subr.bf16.mxu0 %v864
      %896 = vmatpush1.bf16.msra.mxu0 %v863
      %897 = vmatprep.subr.bf16.mxu0 %v866
      %898 = vmatpush1.bf16.msra.mxu0 %v865
      %899 = vmatprep.subr.bf16.mxu0 %v868
      %900 = vmatpush1.bf16.msra.mxu0 %v867
      %901 = vmatprep.subr.bf16.mxu0 0
      %902 = vmatpush1.bf16.msra.mxu0 0
      %903 = vmatprep.subr.bf16.mxu0 0
      %904 = vmatpush1.bf16.msra.mxu0 0
      %905 = vmatprep.subr.bf16.mxu0 0
      %906 = vmatpush1.bf16.msra.mxu0 0
      %907 = vmatprep.subr.bf16.mxu0 0
      %908 = vmatpush1.bf16.msra.mxu0 0
      %909 = vmatprep.subr.bf16.mxu0 0
      %910 = vmatpush1.bf16.msra.mxu0 0
      %911 = vmatprep.subr.bf16.mxu0 0
      %912 = vmatpush1.bf16.msra.mxu0 0
      %913 = vmatprep.subr.bf16.mxu0 0
      %914 = vmatpush1.bf16.msra.mxu0 0
      %915 = vmatprep.subr.bf16.mxu0 0
      %916 = vmatpush1.bf16.msra.mxu0 0
      %917 = vmatprep.mubr.bf16.mxu0 0
      %918 = vmatmul.mubr.bf16.gmra.mrb[0].mxu0 %v785
      %v919 = vpop.f32.mrb[0].mxu0
      %v920 = vadd.f32 0.0, %v919
      %v921 = vpop.f32.mrb[0].mxu0
      %v922 = vadd.f32 0.0, %v921
      %v923 = vpop.f32.mrb[0].mxu0
      %v924 = vadd.f32 0.0, %v923
      %v925 = vpop.f32.mrb[0].mxu0
      %v926 = vadd.f32 0.0, %v925
      %927 = vmatprep.mubr.bf16.mxu0 0
      %928 = vmatmul.mubr.bf16.gmra.mrb[0].mxu0 %v793
      %v929 = vpop.f32.mrb[0].mxu0
      %v930 = vadd.f32 0.0, %v929
      %v931 = vpop.f32.mrb[0].mxu0
      %v932 = vadd.f32 0.0, %v931
      %v933 = vpop.f32.mrb[0].mxu0
      %v934 = vadd.f32 0.0, %v933
      %v935 = vpop.f32.mrb[0].mxu0
      %v936 = vadd.f32 0.0, %v935
      %937 = vmatprep.mubr.bf16.mxu0 0
      %938 = vmatmul.mubr.bf16.gmra.mrb[0].mxu0 %v801
      %v939 = vpop.f32.mrb[0].mxu0
      %v940 = vadd.f32 0.0, %v939
      %v941 = vpop.f32.mrb[0].mxu0
      %v942 = vadd.f32 0.0, %v941
      %v943 = vpop.f32.mrb[0].mxu0
      %v944 = vadd.f32 0.0, %v943
      %v945 = vpop.f32.mrb[0].mxu0
      %v946 = vadd.f32 0.0, %v945
      %947 = vdwg.mxu0
      %v948 = vadd.f32 %v720, %v920
      %v949 = vadd.f32 %v721, %v922
      %v950 = vadd.f32 %v722, %v924
      %v951 = vadd.f32 %v723, %v926
      %v952 = vadd.f32 %v724, %v930
      %v953 = vadd.f32 %v725, %v932
      %v954 = vadd.f32 %v726, %v934
      %v955 = vadd.f32 %v727, %v936
      %v956 = vadd.f32 %v728, %v940
      %v957 = vadd.f32 %v729, %v942
      %v958 = vadd.f32 %v730, %v944
      %v959 = vadd.f32 %v731, %v946
      %966 = vrot.lane.b32.xlu0 %v948, 64
      %v967 = vpop.permute.xlu0 %966
      %968 = vrot.lane.b32.xlu0 %v950, 64
      %v969 = vpop.permute.xlu0 %968
      %970 = vrot.lane.b32.xlu0 %v952, 64
      %v971 = vpop.permute.xlu0 %970
      %972 = vrot.lane.b32.xlu0 %v954, 64
      %v973 = vpop.permute.xlu0 %972
      %974 = vrot.lane.b32.xlu0 %v956, 64
      %v975 = vpop.permute.xlu0 %974
      %976 = vrot.lane.b32.xlu0 %v958, 64
      %v977 = vpop.permute.xlu0 %976
      %v984 = vmax.f32 %v948, %v967
      %v985 = vmax.f32 %v950, %v969
      %v986 = vmax.f32 %v952, %v971
      %v987 = vmax.f32 %v954, %v973
      %v988 = vmax.f32 %v956, %v975
      %v989 = vmax.f32 %v958, %v977
      %996 = vrot.lane.b32.xlu0 %v949, 64
      %v997 = vpop.permute.xlu0 %996
      %998 = vrot.lane.b32.xlu0 %v951, 64
      %v999 = vpop.permute.xlu0 %998
      %1000 = vrot.lane.b32.xlu0 %v953, 64
      %v1001 = vpop.permute.xlu0 %1000
      %1002 = vrot.lane.b32.xlu0 %v955, 64
      %v1003 = vpop.permute.xlu0 %1002
      %1004 = vrot.lane.b32.xlu0 %v957, 64
      %v1005 = vpop.permute.xlu0 %1004
      %1006 = vrot.lane.b32.xlu0 %v959, 64
      %v1007 = vpop.permute.xlu0 %1006
      %v1014 = vmax.f32 %v949, %v997
      %v1015 = vmax.f32 %v951, %v999
      %v1016 = vmax.f32 %v953, %v1001
      %v1017 = vmax.f32 %v955, %v1003
      %v1018 = vmax.f32 %v957, %v1005
      %v1019 = vmax.f32 %v959, %v1007
      %v1020 = vmax.f32 %v984, %v1014
      %v1021 = vmax.f32 %v985, %v1015
      %v1022 = vmax.f32 %v986, %v1016
      %v1023 = vmax.f32 %v987, %v1017
      %v1024 = vmax.f32 %v988, %v1018
      %v1025 = vmax.f32 %v989, %v1019
      %v1026 = vld [vmem:[%s2] sm:$0x1]
      %v1028 = vlaneseq
      %v1029 = vshrl.u32 %v1028, 7
      %v1030 = vsub.s32 0, %v1029
      %v1031 = vrot.slane %v1026, %v1030
      %v1033 = vadd.f32 %v1020, %v1031
      %v1034 = vadd.f32 %v1021, %v1031
      %v1035 = vadd.f32 %v1022, %v1031
      %v1036 = vadd.f32 %v1023, %v1031
      %v1037 = vadd.f32 %v1024, %v1031
      %v1038 = vadd.f32 %v1025, %v1031
      %v1039 = vmax.f32 %v1033, 0.0
      %v1040 = vmax.f32 %v1034, 0.0
      %v1041 = vmax.f32 %v1035, 0.0
      %v1042 = vmax.f32 %v1036, 0.0
      %v1043 = vmax.f32 %v1037, 0.0
      %v1044 = vmax.f32 %v1038, 0.0
      %v1045 = vpack.c.bf16 %v1040, %v1039
      %v1046 = vpack.c.bf16 %v1042, %v1041
      %v1047 = vpack.c.bf16 %v1044, %v1043
      %v1051 = vunpack.c.l.b16 %v1045
      %v1052 = vunpack.c.h.b16 %v1045
      %v1053 = vunpack.c.l.b16 %v1046
      %v1054 = vunpack.c.h.b16 %v1046
      %v1055 = vunpack.c.l.b16 %v1047
      %v1056 = vunpack.c.h.b16 %v1047
      %v1057 = vpack.c.b16 %v1051, %v1051
      %v1058 = vpack.c.b16 %v1052, %v1052
      %v1059 = vpack.c.b16 %v1053, %v1053
      %v1060 = vpack.c.b16 %v1054, %v1054
      %v1061 = vpack.c.b16 %v1055, %v1055
      %v1062 = vpack.c.b16 %v1056, %v1056
      %vm1069 = vcmask 519168
      %1070 = vst.msk [vmem:[%s170] sm:$0xf] %vm1069, %v1057
      %1071 = vst.msk [vmem:[%s170 + $0x4] sm:$0xf] %vm1069, %v1058
      %1072 = vst.msk [vmem:[%s170 + $0x8] sm:$0xf] %vm1069, %v1059
      %1073 = vst.msk [vmem:[%s170 + $0xc] sm:$0xf] %vm1069, %v1060
      %1074 = vst.msk [vmem:[%s170 + $0x10] sm:$0xf] %vm1069, %v1061
      %1075 = vst.msk [vmem:[%s170 + $0x14] sm:$0xf] %vm1069, %v1062
      %p1076 = scmp.lt.s32.totalorder %s14, 1
      %s1077 = scalar_select %p1076, %s14, 1
      %s1078 = smul.addr %s1077, 6
      %s1079 = smul.addr %s1078, 4
      %s1080 = scalar_lea.vmem %s3, %s1079
      // Predicated region
      $region33: #{svhn_cnn_forward.4} parent=31 // pred_check
        %p1081 = pneg %p100
      $region34: #{svhn_cnn_forward.4} parent=31 // pred_check_branch
        %1083 = sbr.rel (%p1081) target = $region36
      $region35: #{svhn_cnn_forward.4} parent=31 // pred_region
        _
      $region36: #{svhn_cnn_forward.4} parent=31 // pred_fallthru
        _
    $region32: #{svhn_cnn_forward.4} parent=5 // pred_fallthru
      _
    %p1084 = scmp.le.s32.totalorder 2, %s9
    // Predicated region
    $region37: #{svhn_cnn_forward.4} parent=5 // pred_check
      %p1085 = pneg %p1084
    $region38: #{svhn_cnn_forward.4} parent=5 // pred_check_branch
      %1087 = sbr.rel (%p1085) target = $region40
    $region39: #{svhn_cnn_forward.4} parent=5 // pred_region
      %s1088 = ssub.s32 %s9, 2
      // Predicated region
      $region41: #{svhn_cnn_forward.4} parent=39 // pred_check
        %p1089 = pneg %p106
      $region42: #{svhn_cnn_forward.4} parent=39 // pred_check_branch
        %1091 = sbr.rel (%p1089) target = $region44
      $region43: #{svhn_cnn_forward.4} parent=39 // pred_region
        %p1092 = scmp.lt.s32.totalorder %s15, 1
        %s1093 = scalar_select %p1092, %s15, 1
        %s1094 = smul.addr %s1093, 6
        %s1095 = smul.addr %s1094, 4
        %s1096 = scalar_lea.vmem %s3, %s1095
      $region44: #{svhn_cnn_forward.4} parent=39 // pred_fallthru
        _
    $region40: #{svhn_cnn_forward.4} parent=5 // pred_fallthru
      _
  $region6: #{svhn_cnn_forward.4} parent=0 // loop_footer
    %s13 = sadd.s32 1, %s9
  $region7: #{svhn_cnn_forward.4} parent=0 // loop_footer_branch
    %8 = sbr.rel target = $region3
  $region8: #{svhn_cnn_forward.4} parent=0 // loop_exit
    _

// kernel: svhn_cnn_forward.5
$region0: #{svhn_cnn_forward.5}
  #allocation0 [shape = 'u32[]', space=smem, size = 0x4, offset = 0x4, fixed_abs, tag = 'smem constant byte address 0x4 - core index']
  #allocation1 [shape = 'u32[144,128]{1,0:T(1,128)}', space=vmem, size = 0x12000, scoped, tag = 'internal scratch']
  %s0 = inlined_call_operand.vmem [shape: bf16[8,2304], index: 0, kind: input, shape index: {}]
  %s1 = inlined_call_operand.vmem [shape: bf16[2304,128], index: 1, kind: input, shape index: {}]
  %s2 = inlined_call_operand.vmem [shape: f32[1,128], index: 2, kind: input, shape index: {}]
  %s3 = inlined_call_operand.vmem [shape: f32[128,84], index: 3, kind: input, shape index: {}]
  %s4 = inlined_call_operand.vmem [shape: f32[1,84], index: 4, kind: input, shape index: {}]
  %s5 = inlined_call_operand.vmem [shape: f32[84,10], index: 5, kind: input, shape index: {}]
  %s6 = inlined_call_operand.vmem [shape: f32[1,10], index: 6, kind: input, shape index: {}]
  %s7 = inlined_call_operand.vmem [shape: f32[8,84], index: 7, kind: output, shape index: {0}]
  %s8 = inlined_call_operand.vmem [shape: f32[8,10], index: 8, kind: output, shape index: {1}]
  %9 = xla_tuple %s7, %s8
  %s10 = sld [smem:[#allocation0]]
  $region46: #{svhn_cnn_forward.5} parent=0
    _
  %s12 = ssub.s32 1, %s10
  %s13 = scalar_select 0, %s12, %s10
  // Predicated region
  $region2: #{svhn_cnn_forward.5} parent=0 // pred_check
    _
  $region3: #{svhn_cnn_forward.5} parent=0 // pred_check_branch
    %15 = sbr.rel (0) target = $region5
  $region4: #{svhn_cnn_forward.5} parent=0 // pred_region
    _
  $region5: #{svhn_cnn_forward.5} parent=0 // pred_fallthru
    _
  // Predicated region
  $region6: #{svhn_cnn_forward.5} parent=0 // pred_check
    _
  $region7: #{svhn_cnn_forward.5} parent=0 // pred_check_branch
    %17 = sbr.rel (0) target = $region9
  $region8: #{svhn_cnn_forward.5} parent=0 // pred_region
    _
  $region9: #{svhn_cnn_forward.5} parent=0 // pred_fallthru
    _
  // Predicated region
  $region10: #{svhn_cnn_forward.5} parent=0 // pred_check
    _
  $region11: #{svhn_cnn_forward.5} parent=0 // pred_check_branch
    %19 = sbr.rel (0) target = $region13
  $region12: #{svhn_cnn_forward.5} parent=0 // pred_region
    _
  $region13: #{svhn_cnn_forward.5} parent=0 // pred_fallthru
    _
  // Predicated region
  $region14: #{svhn_cnn_forward.5} parent=0 // pred_check
    _
  $region15: #{svhn_cnn_forward.5} parent=0 // pred_check_branch
    %21 = sbr.rel (0) target = $region17
  $region16: #{svhn_cnn_forward.5} parent=0 // pred_region
    _
  $region17: #{svhn_cnn_forward.5} parent=0 // pred_fallthru
    _
  // Predicated region
  $region18: #{svhn_cnn_forward.5} parent=0 // pred_check
    _
  $region19: #{svhn_cnn_forward.5} parent=0 // pred_check_branch
    %23 = sbr.rel (0) target = $region21
  $region20: #{svhn_cnn_forward.5} parent=0 // pred_region
    _
  $region21: #{svhn_cnn_forward.5} parent=0 // pred_fallthru
    _
  // Predicated region
  $region22: #{svhn_cnn_forward.5} parent=0 // pred_check
    _
  $region23: #{svhn_cnn_forward.5} parent=0 // pred_check_branch
    %25 = sbr.rel (0) target = $region25
  $region24: #{svhn_cnn_forward.5} parent=0 // pred_region
    _
  $region25: #{svhn_cnn_forward.5} parent=0 // pred_fallthru
    _
  // Predicated region
  $region26: #{svhn_cnn_forward.5} parent=0 // pred_check
    _
  $region27: #{svhn_cnn_forward.5} parent=0 // pred_check_branch
    %27 = sbr.rel (0) target = $region29
  $region28: #{svhn_cnn_forward.5} parent=0 // pred_region
    _
  $region29: #{svhn_cnn_forward.5} parent=0 // pred_fallthru
    _
  %v29 = vld [vmem:[%s0] sm:$0xff]
  %v30 = vld [vmem:[%s0 + $0x8] sm:$0xff]
  %v31 = vld [vmem:[%s0 + $0x10] sm:$0xff]
  %v32 = vld [vmem:[%s0 + $0x18] sm:$0xff]
  %v33 = vld [vmem:[%s0 + $0x20] sm:$0xff]
  %v34 = vld [vmem:[%s0 + $0x28] sm:$0xff]
  %v35 = vld [vmem:[%s0 + $0x30] sm:$0xff]
  %v36 = vld [vmem:[%s0 + $0x38] sm:$0xff]
  %v37 = vld [vmem:[%s0 + $0x40] sm:$0xff]
  %v38 = vld [vmem:[%s1] sm:$0xf]
  %v39 = vld [vmem:[%s1 + $0x4] sm:$0xf]
  %v40 = vld [vmem:[%s1 + $0x8] sm:$0xf]
  %v41 = vld [vmem:[%s1 + $0xc] sm:$0xf]
  %v42 = vld [vmem:[%s1 + $0x10] sm:$0xf]
  %v43 = vld [vmem:[%s1 + $0x14] sm:$0xf]
  %v44 = vld [vmem:[%s1 + $0x18] sm:$0xf]
  %v45 = vld [vmem:[%s1 + $0x1c] sm:$0xf]
  %v46 = vld [vmem:[%s1 + $0x20] sm:$0xf]
  %v47 = vld [vmem:[%s1 + $0x24] sm:$0xf]
  %v48 = vld [vmem:[%s1 + $0x28] sm:$0xf]
  %v49 = vld [vmem:[%s1 + $0x2c] sm:$0xf]
  %v50 = vld [vmem:[%s1 + $0x30] sm:$0xf]
  %v51 = vld [vmem:[%s1 + $0x34] sm:$0xf]
  %v52 = vld [vmem:[%s1 + $0x38] sm:$0xf]
  %v53 = vld [vmem:[%s1 + $0x3c] sm:$0xf]
  %v54 = vld [vmem:[%s1 + $0x40] sm:$0xf]
  %v55 = vld [vmem:[%s1 + $0x44] sm:$0xf]
  %v56 = vld [vmem:[%s1 + $0x48] sm:$0xf]
  %v57 = vld [vmem:[%s1 + $0x4c] sm:$0xf]
  %v58 = vld [vmem:[%s1 + $0x50] sm:$0xf]
  %v59 = vld [vmem:[%s1 + $0x54] sm:$0xf]
  %v60 = vld [vmem:[%s1 + $0x58] sm:$0xf]
  %v61 = vld [vmem:[%s1 + $0x5c] sm:$0xf]
  %v62 = vld [vmem:[%s1 + $0x60] sm:$0xf]
  %v63 = vld [vmem:[%s1 + $0x64] sm:$0xf]
  %v64 = vld [vmem:[%s1 + $0x68] sm:$0xf]
  %v65 = vld [vmem:[%s1 + $0x6c] sm:$0xf]
  %v66 = vld [vmem:[%s1 + $0x70] sm:$0xf]
  %v67 = vld [vmem:[%s1 + $0x74] sm:$0xf]
  %v68 = vld [vmem:[%s1 + $0x78] sm:$0xf]
  %v69 = vld [vmem:[%s1 + $0x7c] sm:$0xf]
  %v70 = vld [vmem:[%s1 + $0x80] sm:$0xf]
  %v71 = vld [vmem:[%s1 + $0x84] sm:$0xf]
  %v72 = vld [vmem:[%s1 + $0x88] sm:$0xf]
  %v73 = vld [vmem:[%s1 + $0x8c] sm:$0xf]
  %v74 = vld [vmem:[%s1 + $0x90] sm:$0xf]
  %v75 = vld [vmem:[%s1 + $0x94] sm:$0xf]
  %v76 = vld [vmem:[%s1 + $0x98] sm:$0xf]
  %v77 = vld [vmem:[%s1 + $0x9c] sm:$0xf]
  %v78 = vld [vmem:[%s1 + $0xa0] sm:$0xf]
  %v79 = vld [vmem:[%s1 + $0xa4] sm:$0xf]
  %v80 = vld [vmem:[%s1 + $0xa8] sm:$0xf]
  %v81 = vld [vmem:[%s1 + $0xac] sm:$0xf]
  %v82 = vld [vmem:[%s1 + $0xb0] sm:$0xf]
  %v83 = vld [vmem:[%s1 + $0xb4] sm:$0xf]
  %v84 = vld [vmem:[%s1 + $0xb8] sm:$0xf]
  %v85 = vld [vmem:[%s1 + $0xbc] sm:$0xf]
  %v86 = vld [vmem:[%s1 + $0xc0] sm:$0xf]
  %v87 = vld [vmem:[%s1 + $0xc4] sm:$0xf]
  %v88 = vld [vmem:[%s1 + $0xc8] sm:$0xf]
  %v89 = vld [vmem:[%s1 + $0xcc] sm:$0xf]
  %v90 = vld [vmem:[%s1 + $0xd0] sm:$0xf]
  %v91 = vld [vmem:[%s1 + $0xd4] sm:$0xf]
  %v92 = vld [vmem:[%s1 + $0xd8] sm:$0xf]
  %v93 = vld [vmem:[%s1 + $0xdc] sm:$0xf]
  %v94 = vld [vmem:[%s1 + $0xe0] sm:$0xf]
  %v95 = vld [vmem:[%s1 + $0xe4] sm:$0xf]
  %v96 = vld [vmem:[%s1 + $0xe8] sm:$0xf]
  %v97 = vld [vmem:[%s1 + $0xec] sm:$0xf]
  %v98 = vld [vmem:[%s1 + $0xf0] sm:$0xf]
  %v99 = vld [vmem:[%s1 + $0xf4] sm:$0xf]
  %v100 = vld [vmem:[%s1 + $0xf8] sm:$0xf]
  %v101 = vld [vmem:[%s1 + $0xfc] sm:$0xf]
  %v102 = vld [vmem:[%s1 + $0x100] sm:$0xf]
  %v103 = vld [vmem:[%s1 + $0x104] sm:$0xf]
  %v104 = vld [vmem:[%s1 + $0x108] sm:$0xf]
  %v105 = vld [vmem:[%s1 + $0x10c] sm:$0xf]
  %v106 = vld [vmem:[%s1 + $0x110] sm:$0xf]
  %v107 = vld [vmem:[%s1 + $0x114] sm:$0xf]
  %v108 = vld [vmem:[%s1 + $0x118] sm:$0xf]
  %v109 = vld [vmem:[%s1 + $0x11c] sm:$0xf]
  %v110 = vld [vmem:[%s1 + $0x120] sm:$0xf]
  %v111 = vld [vmem:[%s1 + $0x124] sm:$0xf]
  %v112 = vld [vmem:[%s1 + $0x128] sm:$0xf]
  %v113 = vld [vmem:[%s1 + $0x12c] sm:$0xf]
  %v114 = vld [vmem:[%s1 + $0x130] sm:$0xf]
  %v115 = vld [vmem:[%s1 + $0x134] sm:$0xf]
  %v116 = vld [vmem:[%s1 + $0x138] sm:$0xf]
  %v117 = vld [vmem:[%s1 + $0x13c] sm:$0xf]
  %v118 = vld [vmem:[%s1 + $0x140] sm:$0xf]
  %v119 = vld [vmem:[%s1 + $0x144] sm:$0xf]
  %v120 = vld [vmem:[%s1 + $0x148] sm:$0xf]
  %v121 = vld [vmem:[%s1 + $0x14c] sm:$0xf]
  %v122 = vld [vmem:[%s1 + $0x150] sm:$0xf]
  %v123 = vld [vmem:[%s1 + $0x154] sm:$0xf]
  %v124 = vld [vmem:[%s1 + $0x158] sm:$0xf]
  %v125 = vld [vmem:[%s1 + $0x15c] sm:$0xf]
  %v126 = vld [vmem:[%s1 + $0x160] sm:$0xf]
  %v127 = vld [vmem:[%s1 + $0x164] sm:$0xf]
  %v128 = vld [vmem:[%s1 + $0x168] sm:$0xf]
  %v129 = vld [vmem:[%s1 + $0x16c] sm:$0xf]
  %v130 = vld [vmem:[%s1 + $0x170] sm:$0xf]
  %v131 = vld [vmem:[%s1 + $0x174] sm:$0xf]
  %v132 = vld [vmem:[%s1 + $0x178] sm:$0xf]
  %v133 = vld [vmem:[%s1 + $0x17c] sm:$0xf]
  %v134 = vld [vmem:[%s1 + $0x180] sm:$0xf]
  %v135 = vld [vmem:[%s1 + $0x184] sm:$0xf]
  %v136 = vld [vmem:[%s1 + $0x188] sm:$0xf]
  %v137 = vld [vmem:[%s1 + $0x18c] sm:$0xf]
  %v138 = vld [vmem:[%s1 + $0x190] sm:$0xf]
  %v139 = vld [vmem:[%s1 + $0x194] sm:$0xf]
  %v140 = vld [vmem:[%s1 + $0x198] sm:$0xf]
  %v141 = vld [vmem:[%s1 + $0x19c] sm:$0xf]
  %v142 = vld [vmem:[%s1 + $0x1a0] sm:$0xf]
  %v143 = vld [vmem:[%s1 + $0x1a4] sm:$0xf]
  %v144 = vld [vmem:[%s1 + $0x1a8] sm:$0xf]
  %v145 = vld [vmem:[%s1 + $0x1ac] sm:$0xf]
  %v146 = vld [vmem:[%s1 + $0x1b0] sm:$0xf]
  %v147 = vld [vmem:[%s1 + $0x1b4] sm:$0xf]
  %v148 = vld [vmem:[%s1 + $0x1b8] sm:$0xf]
  %v149 = vld [vmem:[%s1 + $0x1bc] sm:$0xf]
  %v150 = vld [vmem:[%s1 + $0x1c0] sm:$0xf]
  %v151 = vld [vmem:[%s1 + $0x1c4] sm:$0xf]
  %v152 = vld [vmem:[%s1 + $0x1c8] sm:$0xf]
  %v153 = vld [vmem:[%s1 + $0x1cc] sm:$0xf]
  %v154 = vld [vmem:[%s1 + $0x1d0] sm:$0xf]
  %v155 = vld [vmem:[%s1 + $0x1d4] sm:$0xf]
  %v156 = vld [vmem:[%s1 + $0x1d8] sm:$0xf]
  %v157 = vld [vmem:[%s1 + $0x1dc] sm:$0xf]
  %v158 = vld [vmem:[%s1 + $0x1e0] sm:$0xf]
  %v159 = vld [vmem:[%s1 + $0x1e4] sm:$0xf]
  %v160 = vld [vmem:[%s1 + $0x1e8] sm:$0xf]
  %v161 = vld [vmem:[%s1 + $0x1ec] sm:$0xf]
  %v162 = vld [vmem:[%s1 + $0x1f0] sm:$0xf]
  %v163 = vld [vmem:[%s1 + $0x1f4] sm:$0xf]
  %v164 = vld [vmem:[%s1 + $0x1f8] sm:$0xf]
  %v165 = vld [vmem:[%s1 + $0x1fc] sm:$0xf]
  %v166 = vld [vmem:[%s1 + $0x200] sm:$0xf]
  %v167 = vld [vmem:[%s1 + $0x204] sm:$0xf]
  %v168 = vld [vmem:[%s1 + $0x208] sm:$0xf]
  %v169 = vld [vmem:[%s1 + $0x20c] sm:$0xf]
  %v170 = vld [vmem:[%s1 + $0x210] sm:$0xf]
  %v171 = vld [vmem:[%s1 + $0x214] sm:$0xf]
  %v172 = vld [vmem:[%s1 + $0x218] sm:$0xf]
  %v173 = vld [vmem:[%s1 + $0x21c] sm:$0xf]
  %v174 = vld [vmem:[%s1 + $0x220] sm:$0xf]
  %v175 = vld [vmem:[%s1 + $0x224] sm:$0xf]
  %v176 = vld [vmem:[%s1 + $0x228] sm:$0xf]
  %v177 = vld [vmem:[%s1 + $0x22c] sm:$0xf]
  %v178 = vld [vmem:[%s1 + $0x230] sm:$0xf]
  %v179 = vld [vmem:[%s1 + $0x234] sm:$0xf]
  %v180 = vld [vmem:[%s1 + $0x238] sm:$0xf]
  %v181 = vld [vmem:[%s1 + $0x23c] sm:$0xf]
  %v182 = vld [vmem:[%s1 + $0x240] sm:$0xf]
  %v183 = vld [vmem:[%s1 + $0x244] sm:$0xf]
  %v184 = vld [vmem:[%s1 + $0x248] sm:$0xf]
  %v185 = vld [vmem:[%s1 + $0x24c] sm:$0xf]
  %v186 = vld [vmem:[%s1 + $0x250] sm:$0xf]
  %v187 = vld [vmem:[%s1 + $0x254] sm:$0xf]
  %v188 = vld [vmem:[%s1 + $0x258] sm:$0xf]
  %v189 = vld [vmem:[%s1 + $0x25c] sm:$0xf]
  %v190 = vld [vmem:[%s1 + $0x260] sm:$0xf]
  %v191 = vld [vmem:[%s1 + $0x264] sm:$0xf]
  %v192 = vld [vmem:[%s1 + $0x268] sm:$0xf]
  %v193 = vld [vmem:[%s1 + $0x26c] sm:$0xf]
  %v194 = vld [vmem:[%s1 + $0x270] sm:$0xf]
  %v195 = vld [vmem:[%s1 + $0x274] sm:$0xf]
  %v196 = vld [vmem:[%s1 + $0x278] sm:$0xf]
  %v197 = vld [vmem:[%s1 + $0x27c] sm:$0xf]
  %v198 = vld [vmem:[%s1 + $0x280] sm:$0xf]
  %v199 = vld [vmem:[%s1 + $0x284] sm:$0xf]
  %v200 = vld [vmem:[%s1 + $0x288] sm:$0xf]
  %v201 = vld [vmem:[%s1 + $0x28c] sm:$0xf]
  %v202 = vld [vmem:[%s1 + $0x290] sm:$0xf]
  %v203 = vld [vmem:[%s1 + $0x294] sm:$0xf]
  %v204 = vld [vmem:[%s1 + $0x298] sm:$0xf]
  %v205 = vld [vmem:[%s1 + $0x29c] sm:$0xf]
  %v206 = vld [vmem:[%s1 + $0x2a0] sm:$0xf]
  %v207 = vld [vmem:[%s1 + $0x2a4] sm:$0xf]
  %v208 = vld [vmem:[%s1 + $0x2a8] sm:$0xf]
  %v209 = vld [vmem:[%s1 + $0x2ac] sm:$0xf]
  %v210 = vld [vmem:[%s1 + $0x2b0] sm:$0xf]
  %v211 = vld [vmem:[%s1 + $0x2b4] sm:$0xf]
  %v212 = vld [vmem:[%s1 + $0x2b8] sm:$0xf]
  %v213 = vld [vmem:[%s1 + $0x2bc] sm:$0xf]
  %v214 = vld [vmem:[%s1 + $0x2c0] sm:$0xf]
  %v215 = vld [vmem:[%s1 + $0x2c4] sm:$0xf]
  %v216 = vld [vmem:[%s1 + $0x2c8] sm:$0xf]
  %v217 = vld [vmem:[%s1 + $0x2cc] sm:$0xf]
  %v218 = vld [vmem:[%s1 + $0x2d0] sm:$0xf]
  %v219 = vld [vmem:[%s1 + $0x2d4] sm:$0xf]
  %v220 = vld [vmem:[%s1 + $0x2d8] sm:$0xf]
  %v221 = vld [vmem:[%s1 + $0x2dc] sm:$0xf]
  %v222 = vld [vmem:[%s1 + $0x2e0] sm:$0xf]
  %v223 = vld [vmem:[%s1 + $0x2e4] sm:$0xf]
  %v224 = vld [vmem:[%s1 + $0x2e8] sm:$0xf]
  %v225 = vld [vmem:[%s1 + $0x2ec] sm:$0xf]
  %v226 = vld [vmem:[%s1 + $0x2f0] sm:$0xf]
  %v227 = vld [vmem:[%s1 + $0x2f4] sm:$0xf]
  %v228 = vld [vmem:[%s1 + $0x2f8] sm:$0xf]
  %v229 = vld [vmem:[%s1 + $0x2fc] sm:$0xf]
  %v230 = vld [vmem:[%s1 + $0x300] sm:$0xf]
  %v231 = vld [vmem:[%s1 + $0x304] sm:$0xf]
  %v232 = vld [vmem:[%s1 + $0x308] sm:$0xf]
  %v233 = vld [vmem:[%s1 + $0x30c] sm:$0xf]
  %v234 = vld [vmem:[%s1 + $0x310] sm:$0xf]
  %v235 = vld [vmem:[%s1 + $0x314] sm:$0xf]
  %v236 = vld [vmem:[%s1 + $0x318] sm:$0xf]
  %v237 = vld [vmem:[%s1 + $0x31c] sm:$0xf]
  %v238 = vld [vmem:[%s1 + $0x320] sm:$0xf]
  %v239 = vld [vmem:[%s1 + $0x324] sm:$0xf]
  %v240 = vld [vmem:[%s1 + $0x328] sm:$0xf]
  %v241 = vld [vmem:[%s1 + $0x32c] sm:$0xf]
  %v242 = vld [vmem:[%s1 + $0x330] sm:$0xf]
  %v243 = vld [vmem:[%s1 + $0x334] sm:$0xf]
  %v244 = vld [vmem:[%s1 + $0x338] sm:$0xf]
  %v245 = vld [vmem:[%s1 + $0x33c] sm:$0xf]
  %v246 = vld [vmem:[%s1 + $0x340] sm:$0xf]
  %v247 = vld [vmem:[%s1 + $0x344] sm:$0xf]
  %v248 = vld [vmem:[%s1 + $0x348] sm:$0xf]
  %v249 = vld [vmem:[%s1 + $0x34c] sm:$0xf]
  %v250 = vld [vmem:[%s1 + $0x350] sm:$0xf]
  %v251 = vld [vmem:[%s1 + $0x354] sm:$0xf]
  %v252 = vld [vmem:[%s1 + $0x358] sm:$0xf]
  %v253 = vld [vmem:[%s1 + $0x35c] sm:$0xf]
  %v254 = vld [vmem:[%s1 + $0x360] sm:$0xf]
  %v255 = vld [vmem:[%s1 + $0x364] sm:$0xf]
  %v256 = vld [vmem:[%s1 + $0x368] sm:$0xf]
  %v257 = vld [vmem:[%s1 + $0x36c] sm:$0xf]
  %v258 = vld [vmem:[%s1 + $0x370] sm:$0xf]
  %v259 = vld [vmem:[%s1 + $0x374] sm:$0xf]
  %v260 = vld [vmem:[%s1 + $0x378] sm:$0xf]
  %v261 = vld [vmem:[%s1 + $0x37c] sm:$0xf]
  %v262 = vld [vmem:[%s1 + $0x380] sm:$0xf]
  %v263 = vld [vmem:[%s1 + $0x384] sm:$0xf]
  %v264 = vld [vmem:[%s1 + $0x388] sm:$0xf]
  %v265 = vld [vmem:[%s1 + $0x38c] sm:$0xf]
  %v266 = vld [vmem:[%s1 + $0x390] sm:$0xf]
  %v267 = vld [vmem:[%s1 + $0x394] sm:$0xf]
  %v268 = vld [vmem:[%s1 + $0x398] sm:$0xf]
  %v269 = vld [vmem:[%s1 + $0x39c] sm:$0xf]
  %v270 = vld [vmem:[%s1 + $0x3a0] sm:$0xf]
  %v271 = vld [vmem:[%s1 + $0x3a4] sm:$0xf]
  %v272 = vld [vmem:[%s1 + $0x3a8] sm:$0xf]
  %v273 = vld [vmem:[%s1 + $0x3ac] sm:$0xf]
  %v274 = vld [vmem:[%s1 + $0x3b0] sm:$0xf]
  %v275 = vld [vmem:[%s1 + $0x3b4] sm:$0xf]
  %v276 = vld [vmem:[%s1 + $0x3b8] sm:$0xf]
  %v277 = vld [vmem:[%s1 + $0x3bc] sm:$0xf]
  %v278 = vld [vmem:[%s1 + $0x3c0] sm:$0xf]
  %v279 = vld [vmem:[%s1 + $0x3c4] sm:$0xf]
  %v280 = vld [vmem:[%s1 + $0x3c8] sm:$0xf]
  %v281 = vld [vmem:[%s1 + $0x3cc] sm:$0xf]
  %v282 = vld [vmem:[%s1 + $0x3d0] sm:$0xf]
  %v283 = vld [vmem:[%s1 + $0x3d4] sm:$0xf]
  %v284 = vld [vmem:[%s1 + $0x3d8] sm:$0xf]
  %v285 = vld [vmem:[%s1 + $0x3dc] sm:$0xf]
  %v286 = vld [vmem:[%s1 + $0x3e0] sm:$0xf]
  %v287 = vld [vmem:[%s1 + $0x3e4] sm:$0xf]
  %v288 = vld [vmem:[%s1 + $0x3e8] sm:$0xf]
  %v289 = vld [vmem:[%s1 + $0x3ec] sm:$0xf]
  %v290 = vld [vmem:[%s1 + $0x3f0] sm:$0xf]
  %v291 = vld [vmem:[%s1 + $0x3f4] sm:$0xf]
  %v292 = vld [vmem:[%s1 + $0x3f8] sm:$0xf]
  %v293 = vld [vmem:[%s1 + $0x3fc] sm:$0xf]
  %v294 = vld [vmem:[%s1 + $0x400] sm:$0xf]
  %v295 = vld [vmem:[%s1 + $0x404] sm:$0xf]
  %v296 = vld [vmem:[%s1 + $0x408] sm:$0xf]
  %v297 = vld [vmem:[%s1 + $0x40c] sm:$0xf]
  %v298 = vld [vmem:[%s1 + $0x410] sm:$0xf]
  %v299 = vld [vmem:[%s1 + $0x414] sm:$0xf]
  %v300 = vld [vmem:[%s1 + $0x418] sm:$0xf]
  %v301 = vld [vmem:[%s1 + $0x41c] sm:$0xf]
  %v302 = vld [vmem:[%s1 + $0x420] sm:$0xf]
  %v303 = vld [vmem:[%s1 + $0x424] sm:$0xf]
  %v304 = vld [vmem:[%s1 + $0x428] sm:$0xf]
  %v305 = vld [vmem:[%s1 + $0x42c] sm:$0xf]
  %v306 = vld [vmem:[%s1 + $0x430] sm:$0xf]
  %v307 = vld [vmem:[%s1 + $0x434] sm:$0xf]
  %v308 = vld [vmem:[%s1 + $0x438] sm:$0xf]
  %v309 = vld [vmem:[%s1 + $0x43c] sm:$0xf]
  %v310 = vld [vmem:[%s1 + $0x440] sm:$0xf]
  %v311 = vld [vmem:[%s1 + $0x444] sm:$0xf]
  %v312 = vld [vmem:[%s1 + $0x448] sm:$0xf]
  %v313 = vld [vmem:[%s1 + $0x44c] sm:$0xf]
  %v314 = vld [vmem:[%s1 + $0x450] sm:$0xf]
  %v315 = vld [vmem:[%s1 + $0x454] sm:$0xf]
  %v316 = vld [vmem:[%s1 + $0x458] sm:$0xf]
  %v317 = vld [vmem:[%s1 + $0x45c] sm:$0xf]
  %v318 = vld [vmem:[%s1 + $0x460] sm:$0xf]
  %v319 = vld [vmem:[%s1 + $0x464] sm:$0xf]
  %v320 = vld [vmem:[%s1 + $0x468] sm:$0xf]
  %v321 = vld [vmem:[%s1 + $0x46c] sm:$0xf]
  %v322 = vld [vmem:[%s1 + $0x470] sm:$0xf]
  %v323 = vld [vmem:[%s1 + $0x474] sm:$0xf]
  %v324 = vld [vmem:[%s1 + $0x478] sm:$0xf]
  %v325 = vld [vmem:[%s1 + $0x47c] sm:$0xf]
  %v326 = vld [vmem:[%s2] sm:$0x1]
  %v328 = vlaneseq
  %v329 = vshrl.u32 %v328, 7
  %v330 = vsub.s32 0, %v329
  %v331 = vrot.slane %v326, %v330
  %v342 = vunpack.c.l.b16 %v29
  %v343 = vunpack.c.h.b16 %v29
  %v344 = vunpack.c.l.b16 %v30
  %v345 = vunpack.c.h.b16 %v30
  %v346 = vunpack.c.l.b16 %v31
  %v347 = vunpack.c.h.b16 %v31
  %v348 = vunpack.c.l.b16 %v32
  %v349 = vunpack.c.h.b16 %v32
  %v350 = vunpack.c.l.b16 %v33
  %v351 = vunpack.c.h.b16 %v33
  %v352 = vunpack.c.l.b16 %v34
  %v353 = vunpack.c.h.b16 %v34
  %v354 = vunpack.c.l.b16 %v35
  %v355 = vunpack.c.h.b16 %v35
  %v356 = vunpack.c.l.b16 %v36
  %v357 = vunpack.c.h.b16 %v36
  %v358 = vunpack.c.l.b16 %v37
  %v359 = vunpack.c.h.b16 %v37
  %v360 = vpack.c.b16 %v342, %v342
  %v361 = vpack.c.b16 %v343, %v343
  %v362 = vpack.c.b16 %v344, %v344
  %v363 = vpack.c.b16 %v345, %v345
  %v364 = vpack.c.b16 %v346, %v346
  %v365 = vpack.c.b16 %v347, %v347
  %v366 = vpack.c.b16 %v348, %v348
  %v367 = vpack.c.b16 %v349, %v349
  %v368 = vpack.c.b16 %v350, %v350
  %v369 = vpack.c.b16 %v351, %v351
  %v370 = vpack.c.b16 %v352, %v352
  %v371 = vpack.c.b16 %v353, %v353
  %v372 = vpack.c.b16 %v354, %v354
  %v373 = vpack.c.b16 %v355, %v355
  %v374 = vpack.c.b16 %v356, %v356
  %v375 = vpack.c.b16 %v357, %v357
  %v376 = vpack.c.b16 %v358, %v358
  %v377 = vpack.c.b16 %v359, %v359
  %v684 = vunpack.c.l.b16 %v38
  %v685 = vunpack.c.l.b16 %v39
  %v686 = vunpack.c.l.b16 %v40
  %v687 = vunpack.c.l.b16 %v41
  %v688 = vunpack.c.l.b16 %v42
  %v689 = vunpack.c.l.b16 %v43
  %v690 = vunpack.c.l.b16 %v44
  %v691 = vunpack.c.l.b16 %v45
  %v692 = vunpack.c.l.b16 %v46
  %v693 = vunpack.c.l.b16 %v47
  %v694 = vunpack.c.l.b16 %v48
  %v695 = vunpack.c.l.b16 %v49
  %v696 = vunpack.c.l.b16 %v50
  %v697 = vunpack.c.l.b16 %v51
  %v698 = vunpack.c.l.b16 %v52
  %v699 = vunpack.c.l.b16 %v53
  %v700 = vunpack.c.l.b16 %v54
  %v701 = vunpack.c.l.b16 %v55
  %v702 = vunpack.c.l.b16 %v56
  %v703 = vunpack.c.l.b16 %v57
  %v704 = vunpack.c.l.b16 %v58
  %v705 = vunpack.c.l.b16 %v59
  %v706 = vunpack.c.l.b16 %v60
  %v707 = vunpack.c.l.b16 %v61
  %v708 = vunpack.c.l.b16 %v62
  %v709 = vunpack.c.l.b16 %v63
  %v710 = vunpack.c.l.b16 %v64
  %v711 = vunpack.c.l.b16 %v65
  %v712 = vunpack.c.l.b16 %v66
  %v713 = vunpack.c.l.b16 %v67
  %v714 = vunpack.c.l.b16 %v68
  %v715 = vunpack.c.l.b16 %v69
  %v716 = vunpack.c.l.b16 %v70
  %v717 = vunpack.c.l.b16 %v71
  %v718 = vunpack.c.l.b16 %v72
  %v719 = vunpack.c.l.b16 %v73
  %v720 = vunpack.c.l.b16 %v74
  %v721 = vunpack.c.l.b16 %v75
  %v722 = vunpack.c.l.b16 %v76
  %v723 = vunpack.c.l.b16 %v77
  %v724 = vunpack.c.l.b16 %v78
  %v725 = vunpack.c.l.b16 %v79
  %v726 = vunpack.c.l.b16 %v80
  %v727 = vunpack.c.l.b16 %v81
  %v728 = vunpack.c.l.b16 %v82
  %v729 = vunpack.c.l.b16 %v83
  %v730 = vunpack.c.l.b16 %v84
  %v731 = vunpack.c.l.b16 %v85
  %v732 = vunpack.c.l.b16 %v86
  %v733 = vunpack.c.l.b16 %v87
  %v734 = vunpack.c.l.b16 %v88
  %v735 = vunpack.c.l.b16 %v89
  %v736 = vunpack.c.l.b16 %v90
  %v737 = vunpack.c.l.b16 %v91
  %v738 = vunpack.c.l.b16 %v92
  %v739 = vunpack.c.l.b16 %v93
  %v740 = vunpack.c.l.b16 %v94
  %v741 = vunpack.c.l.b16 %v95
  %v742 = vunpack.c.l.b16 %v96
  %v743 = vunpack.c.l.b16 %v97
  %v744 = vunpack.c.l.b16 %v98
  %v745 = vunpack.c.l.b16 %v99
  %v746 = vunpack.c.l.b16 %v100
  %v747 = vunpack.c.l.b16 %v101
  %v748 = vunpack.c.l.b16 %v102
  %v749 = vunpack.c.l.b16 %v103
  %v750 = vunpack.c.l.b16 %v104
  %v751 = vunpack.c.l.b16 %v105
  %v752 = vunpack.c.l.b16 %v106
  %v753 = vunpack.c.l.b16 %v107
  %v754 = vunpack.c.l.b16 %v108
  %v755 = vunpack.c.l.b16 %v109
  %v756 = vunpack.c.l.b16 %v110
  %v757 = vunpack.c.l.b16 %v111
  %v758 = vunpack.c.l.b16 %v112
  %v759 = vunpack.c.l.b16 %v113
  %v760 = vunpack.c.l.b16 %v114
  %v761 = vunpack.c.l.b16 %v115
  %v762 = vunpack.c.l.b16 %v116
  %v763 = vunpack.c.l.b16 %v117
  %v764 = vunpack.c.l.b16 %v118
  %v765 = vunpack.c.l.b16 %v119
  %v766 = vunpack.c.l.b16 %v120
  %v767 = vunpack.c.l.b16 %v121
  %v768 = vunpack.c.l.b16 %v122
  %v769 = vunpack.c.l.b16 %v123
  %v770 = vunpack.c.l.b16 %v124
  %v771 = vunpack.c.l.b16 %v125
  %v772 = vunpack.c.l.b16 %v126
  %v773 = vunpack.c.l.b16 %v127
  %v774 = vunpack.c.l.b16 %v128
  %v775 = vunpack.c.l.b16 %v129
  %v776 = vunpack.c.l.b16 %v130
  %v777 = vunpack.c.l.b16 %v131
  %v778 = vunpack.c.l.b16 %v132
  %v779 = vunpack.c.l.b16 %v133
  %v780 = vunpack.c.l.b16 %v134
  %v781 = vunpack.c.l.b16 %v135
  %v782 = vunpack.c.l.b16 %v136
  %v783 = vunpack.c.l.b16 %v137
  %v784 = vunpack.c.l.b16 %v138
  %v785 = vunpack.c.l.b16 %v139
  %v786 = vunpack.c.l.b16 %v140
  %v787 = vunpack.c.l.b16 %v141
  %v788 = vunpack.c.l.b16 %v142
  %v789 = vunpack.c.l.b16 %v143
  %v790 = vunpack.c.l.b16 %v144
  %v791 = vunpack.c.l.b16 %v145
  %v792 = vunpack.c.l.b16 %v146
  %v793 = vunpack.c.l.b16 %v147
  %v794 = vunpack.c.l.b16 %v148
  %v795 = vunpack.c.l.b16 %v149
  %v796 = vunpack.c.l.b16 %v150
  %v797 = vunpack.c.l.b16 %v151
  %v798 = vunpack.c.l.b16 %v152
  %v799 = vunpack.c.l.b16 %v153
  %v800 = vunpack.c.l.b16 %v154
  %v801 = vunpack.c.l.b16 %v155
  %v802 = vunpack.c.l.b16 %v156
  %v803 = vunpack.c.l.b16 %v157
  %v804 = vunpack.c.l.b16 %v158
  %v805 = vunpack.c.l.b16 %v159
  %v806 = vunpack.c.l.b16 %v160
  %v807 = vunpack.c.l.b16 %v161
  %v808 = vunpack.c.l.b16 %v162
  %v809 = vunpack.c.l.b16 %v163
  %v810 = vunpack.c.l.b16 %v164
  %v811 = vunpack.c.l.b16 %v165
  %v812 = vunpack.c.l.b16 %v166
  %v813 = vunpack.c.l.b16 %v167
  %v814 = vunpack.c.l.b16 %v168
  %v815 = vunpack.c.l.b16 %v169
  %v816 = vunpack.c.l.b16 %v170
  %v817 = vunpack.c.l.b16 %v171
  %v818 = vunpack.c.l.b16 %v172
  %v819 = vunpack.c.l.b16 %v173
  %v820 = vunpack.c.l.b16 %v174
  %v821 = vunpack.c.l.b16 %v175
  %v822 = vunpack.c.l.b16 %v176
  %v823 = vunpack.c.l.b16 %v177
  %v824 = vunpack.c.l.b16 %v178
  %v825 = vunpack.c.l.b16 %v179
  %v826 = vunpack.c.l.b16 %v180
  %v827 = vunpack.c.l.b16 %v181
  %v828 = vunpack.c.l.b16 %v182
  %v829 = vunpack.c.l.b16 %v183
  %v830 = vunpack.c.l.b16 %v184
  %v831 = vunpack.c.l.b16 %v185
  %v832 = vunpack.c.l.b16 %v186
  %v833 = vunpack.c.l.b16 %v187
  %v834 = vunpack.c.l.b16 %v188
  %v835 = vunpack.c.l.b16 %v189
  %v836 = vunpack.c.l.b16 %v190
  %v837 = vunpack.c.l.b16 %v191
  %v838 = vunpack.c.l.b16 %v192
  %v839 = vunpack.c.l.b16 %v193
  %v840 = vunpack.c.l.b16 %v194
  %v841 = vunpack.c.l.b16 %v195
  %v842 = vunpack.c.l.b16 %v196
  %v843 = vunpack.c.l.b16 %v197
  %v844 = vunpack.c.l.b16 %v198
  %v845 = vunpack.c.l.b16 %v199
  %v846 = vunpack.c.l.b16 %v200
  %v847 = vunpack.c.l.b16 %v201
  %v848 = vunpack.c.l.b16 %v202
  %v849 = vunpack.c.l.b16 %v203
  %v850 = vunpack.c.l.b16 %v204
  %v851 = vunpack.c.l.b16 %v205
  %v852 = vunpack.c.l.b16 %v206
  %v853 = vunpack.c.l.b16 %v207
  %v854 = vunpack.c.l.b16 %v208
  %v855 = vunpack.c.l.b16 %v209
  %v856 = vunpack.c.l.b16 %v210
  %v857 = vunpack.c.l.b16 %v211
  %v858 = vunpack.c.l.b16 %v212
  %v859 = vunpack.c.l.b16 %v213
  %v860 = vunpack.c.l.b16 %v214
  %v861 = vunpack.c.l.b16 %v215
  %v862 = vunpack.c.l.b16 %v216
  %v863 = vunpack.c.l.b16 %v217
  %v864 = vunpack.c.l.b16 %v218
  %v865 = vunpack.c.l.b16 %v219
  %v866 = vunpack.c.l.b16 %v220
  %v867 = vunpack.c.l.b16 %v221
  %v868 = vunpack.c.l.b16 %v222
  %v869 = vunpack.c.l.b16 %v223
  %v870 = vunpack.c.l.b16 %v224
  %v871 = vunpack.c.l.b16 %v225
  %v872 = vunpack.c.l.b16 %v226
  %v873 = vunpack.c.l.b16 %v227
  %v874 = vunpack.c.l.b16 %v228
  %v875 = vunpack.c.l.b16 %v229
  %v876 = vunpack.c.l.b16 %v230
  %v877 = vunpack.c.l.b16 %v231
  %v878 = vunpack.c.l.b16 %v232
  %v879 = vunpack.c.l.b16 %v233
  %v880 = vunpack.c.l.b16 %v234
  %v881 = vunpack.c.l.b16 %v235
  %v882 = vunpack.c.l.b16 %v236
  %v883 = vunpack.c.l.b16 %v237
  %v884 = vunpack.c.l.b16 %v238
  %v885 = vunpack.c.l.b16 %v239
  %v886 = vunpack.c.l.b16 %v240
  %v887 = vunpack.c.l.b16 %v241
  %v888 = vunpack.c.l.b16 %v242
  %v889 = vunpack.c.l.b16 %v243
  %v890 = vunpack.c.l.b16 %v244
  %v891 = vunpack.c.l.b16 %v245
  %v892 = vunpack.c.l.b16 %v246
  %v893 = vunpack.c.l.b16 %v247
  %v894 = vunpack.c.l.b16 %v248
  %v895 = vunpack.c.l.b16 %v249
  %v896 = vunpack.c.l.b16 %v250
  %v897 = vunpack.c.l.b16 %v251
  %v898 = vunpack.c.l.b16 %v252
  %v899 = vunpack.c.l.b16 %v253
  %v900 = vunpack.c.l.b16 %v254
  %v901 = vunpack.c.l.b16 %v255
  %v902 = vunpack.c.l.b16 %v256
  %v903 = vunpack.c.l.b16 %v257
  %v904 = vunpack.c.l.b16 %v258
  %v905 = vunpack.c.l.b16 %v259
  %v906 = vunpack.c.l.b16 %v260
  %v907 = vunpack.c.l.b16 %v261
  %v908 = vunpack.c.l.b16 %v262
  %v909 = vunpack.c.l.b16 %v263
  %v910 = vunpack.c.l.b16 %v264
  %v911 = vunpack.c.l.b16 %v265
  %v912 = vunpack.c.l.b16 %v266
  %v913 = vunpack.c.l.b16 %v267
  %v914 = vunpack.c.l.b16 %v268
  %v915 = vunpack.c.l.b16 %v269
  %v916 = vunpack.c.l.b16 %v270
  %v917 = vunpack.c.l.b16 %v271
  %v918 = vunpack.c.l.b16 %v272
  %v919 = vunpack.c.l.b16 %v273
  %v920 = vunpack.c.l.b16 %v274
  %v921 = vunpack.c.l.b16 %v275
  %v922 = vunpack.c.l.b16 %v276
  %v923 = vunpack.c.l.b16 %v277
  %v924 = vunpack.c.l.b16 %v278
  %v925 = vunpack.c.l.b16 %v279
  %v926 = vunpack.c.l.b16 %v280
  %v927 = vunpack.c.l.b16 %v281
  %v928 = vunpack.c.l.b16 %v282
  %v929 = vunpack.c.l.b16 %v283
  %v930 = vunpack.c.l.b16 %v284
  %v931 = vunpack.c.l.b16 %v285
  %v932 = vunpack.c.l.b16 %v286
  %v933 = vunpack.c.l.b16 %v287
  %v934 = vunpack.c.l.b16 %v288
  %v935 = vunpack.c.l.b16 %v289
  %v936 = vunpack.c.l.b16 %v290
  %v937 = vunpack.c.l.b16 %v291
  %v938 = vunpack.c.l.b16 %v292
  %v939 = vunpack.c.l.b16 %v293
  %v940 = vunpack.c.l.b16 %v294
  %v941 = vunpack.c.l.b16 %v295
  %v942 = vunpack.c.l.b16 %v296
  %v943 = vunpack.c.l.b16 %v297
  %v944 = vunpack.c.l.b16 %v298
  %v945 = vunpack.c.l.b16 %v299
  %v946 = vunpack.c.l.b16 %v300
  %v947 = vunpack.c.l.b16 %v301
  %v948 = vunpack.c.l.b16 %v302
  %v949 = vunpack.c.l.b16 %v303
  %v950 = vunpack.c.l.b16 %v304
  %v951 = vunpack.c.l.b16 %v305
  %v952 = vunpack.c.l.b16 %v306
  %v953 = vunpack.c.l.b16 %v307
  %v954 = vunpack.c.l.b16 %v308
  %v955 = vunpack.c.l.b16 %v309
  %v956 = vunpack.c.l.b16 %v310
  %v957 = vunpack.c.l.b16 %v311
  %v958 = vunpack.c.l.b16 %v312
  %v959 = vunpack.c.l.b16 %v313
  %v960 = vunpack.c.l.b16 %v314
  %v961 = vunpack.c.l.b16 %v315
  %v962 = vunpack.c.l.b16 %v316
  %v963 = vunpack.c.l.b16 %v317
  %v964 = vunpack.c.l.b16 %v318
  %v965 = vunpack.c.l.b16 %v319
  %v966 = vunpack.c.l.b16 %v320
  %v967 = vunpack.c.l.b16 %v321
  %v968 = vunpack.c.l.b16 %v322
  %v969 = vunpack.c.l.b16 %v323
  %v970 = vunpack.c.l.b16 %v324
  %v971 = vunpack.c.l.b16 %v325
  %v972 = vpack.c.b16 %v685, %v684
  %v973 = vpack.c.b16 %v687, %v686
  %v974 = vpack.c.b16 %v689, %v688
  %v975 = vpack.c.b16 %v691, %v690
  %v976 = vpack.c.b16 %v693, %v692
  %v977 = vpack.c.b16 %v695, %v694
  %v978 = vpack.c.b16 %v697, %v696
  %v979 = vpack.c.b16 %v699, %v698
  %v980 = vpack.c.b16 %v701, %v700
  %v981 = vpack.c.b16 %v703, %v702
  %v982 = vpack.c.b16 %v705, %v704
  %v983 = vpack.c.b16 %v707, %v706
  %v984 = vpack.c.b16 %v709, %v708
  %v985 = vpack.c.b16 %v711, %v710
  %v986 = vpack.c.b16 %v713, %v712
  %v987 = vpack.c.b16 %v715, %v714
  %v988 = vpack.c.b16 %v717, %v716
  %v989 = vpack.c.b16 %v719, %v718
  %v990 = vpack.c.b16 %v721, %v720
  %v991 = vpack.c.b16 %v723, %v722
  %v992 = vpack.c.b16 %v725, %v724
  %v993 = vpack.c.b16 %v727, %v726
  %v994 = vpack.c.b16 %v729, %v728
  %v995 = vpack.c.b16 %v731, %v730
  %v996 = vpack.c.b16 %v733, %v732
  %v997 = vpack.c.b16 %v735, %v734
  %v998 = vpack.c.b16 %v737, %v736
  %v999 = vpack.c.b16 %v739, %v738
  %v1000 = vpack.c.b16 %v741, %v740
  %v1001 = vpack.c.b16 %v743, %v742
  %v1002 = vpack.c.b16 %v745, %v744
  %v1003 = vpack.c.b16 %v747, %v746
  %v1004 = vpack.c.b16 %v749, %v748
  %v1005 = vpack.c.b16 %v751, %v750
  %v1006 = vpack.c.b16 %v753, %v752
  %v1007 = vpack.c.b16 %v755, %v754
  %v1008 = vpack.c.b16 %v757, %v756
  %v1009 = vpack.c.b16 %v759, %v758
  %v1010 = vpack.c.b16 %v761, %v760
  %v1011 = vpack.c.b16 %v763, %v762
  %v1012 = vpack.c.b16 %v765, %v764
  %v1013 = vpack.c.b16 %v767, %v766
  %v1014 = vpack.c.b16 %v769, %v768
  %v1015 = vpack.c.b16 %v771, %v770
  %v1016 = vpack.c.b16 %v773, %v772
  %v1017 = vpack.c.b16 %v775, %v774
  %v1018 = vpack.c.b16 %v777, %v776
  %v1019 = vpack.c.b16 %v779, %v778
  %v1020 = vpack.c.b16 %v781, %v780
  %v1021 = vpack.c.b16 %v783, %v782
  %v1022 = vpack.c.b16 %v785, %v784
  %v1023 = vpack.c.b16 %v787, %v786
  %v1024 = vpack.c.b16 %v789, %v788
  %v1025 = vpack.c.b16 %v791, %v790
  %v1026 = vpack.c.b16 %v793, %v792
  %v1027 = vpack.c.b16 %v795, %v794
  %v1028 = vpack.c.b16 %v797, %v796
  %v1029 = vpack.c.b16 %v799, %v798
  %v1030 = vpack.c.b16 %v801, %v800
  %v1031 = vpack.c.b16 %v803, %v802
  %v1032 = vpack.c.b16 %v805, %v804
  %v1033 = vpack.c.b16 %v807, %v806
  %v1034 = vpack.c.b16 %v809, %v808
  %v1035 = vpack.c.b16 %v811, %v810
  %v1036 = vpack.c.b16 %v813, %v812
  %v1037 = vpack.c.b16 %v815, %v814
  %v1038 = vpack.c.b16 %v817, %v816
  %v1039 = vpack.c.b16 %v819, %v818
  %v1040 = vpack.c.b16 %v821, %v820
  %v1041 = vpack.c.b16 %v823, %v822
  %v1042 = vpack.c.b16 %v825, %v824
  %v1043 = vpack.c.b16 %v827, %v826
  %v1044 = vpack.c.b16 %v829, %v828
  %v1045 = vpack.c.b16 %v831, %v830
  %v1046 = vpack.c.b16 %v833, %v832
  %v1047 = vpack.c.b16 %v835, %v834
  %v1048 = vpack.c.b16 %v837, %v836
  %v1049 = vpack.c.b16 %v839, %v838
  %v1050 = vpack.c.b16 %v841, %v840
  %v1051 = vpack.c.b16 %v843, %v842
  %v1052 = vpack.c.b16 %v845, %v844
  %v1053 = vpack.c.b16 %v847, %v846
  %v1054 = vpack.c.b16 %v849, %v848
  %v1055 = vpack.c.b16 %v851, %v850
  %v1056 = vpack.c.b16 %v853, %v852
  %v1057 = vpack.c.b16 %v855, %v854
  %v1058 = vpack.c.b16 %v857, %v856
  %v1059 = vpack.c.b16 %v859, %v858
  %v1060 = vpack.c.b16 %v861, %v860
  %v1061 = vpack.c.b16 %v863, %v862
  %v1062 = vpack.c.b16 %v865, %v864
  %v1063 = vpack.c.b16 %v867, %v866
  %v1064 = vpack.c.b16 %v869, %v868
  %v1065 = vpack.c.b16 %v871, %v870
  %v1066 = vpack.c.b16 %v873, %v872
  %v1067 = vpack.c.b16 %v875, %v874
  %v1068 = vpack.c.b16 %v877, %v876
  %v1069 = vpack.c.b16 %v879, %v878
  %v1070 = vpack.c.b16 %v881, %v880
  %v1071 = vpack.c.b16 %v883, %v882
  %v1072 = vpack.c.b16 %v885, %v884
  %v1073 = vpack.c.b16 %v887, %v886
  %v1074 = vpack.c.b16 %v889, %v888
  %v1075 = vpack.c.b16 %v891, %v890
  %v1076 = vpack.c.b16 %v893, %v892
  %v1077 = vpack.c.b16 %v895, %v894
  %v1078 = vpack.c.b16 %v897, %v896
  %v1079 = vpack.c.b16 %v899, %v898
  %v1080 = vpack.c.b16 %v901, %v900
  %v1081 = vpack.c.b16 %v903, %v902
  %v1082 = vpack.c.b16 %v905, %v904
  %v1083 = vpack.c.b16 %v907, %v906
  %v1084 = vpack.c.b16 %v909, %v908
  %v1085 = vpack.c.b16 %v911, %v910
  %v1086 = vpack.c.b16 %v913, %v912
  %v1087 = vpack.c.b16 %v915, %v914
  %v1088 = vpack.c.b16 %v917, %v916
  %v1089 = vpack.c.b16 %v919, %v918
  %v1090 = vpack.c.b16 %v921, %v920
  %v1091 = vpack.c.b16 %v923, %v922
  %v1092 = vpack.c.b16 %v925, %v924
  %v1093 = vpack.c.b16 %v927, %v926
  %v1094 = vpack.c.b16 %v929, %v928
  %v1095 = vpack.c.b16 %v931, %v930
  %v1096 = vpack.c.b16 %v933, %v932
  %v1097 = vpack.c.b16 %v935, %v934
  %v1098 = vpack.c.b16 %v937, %v936
  %v1099 = vpack.c.b16 %v939, %v938
  %v1100 = vpack.c.b16 %v941, %v940
  %v1101 = vpack.c.b16 %v943, %v942
  %v1102 = vpack.c.b16 %v945, %v944
  %v1103 = vpack.c.b16 %v947, %v946
  %v1104 = vpack.c.b16 %v949, %v948
  %v1105 = vpack.c.b16 %v951, %v950
  %v1106 = vpack.c.b16 %v953, %v952
  %v1107 = vpack.c.b16 %v955, %v954
  %v1108 = vpack.c.b16 %v957, %v956
  %v1109 = vpack.c.b16 %v959, %v958
  %v1110 = vpack.c.b16 %v961, %v960
  %v1111 = vpack.c.b16 %v963, %v962
  %v1112 = vpack.c.b16 %v965, %v964
  %v1113 = vpack.c.b16 %v967, %v966
  %v1114 = vpack.c.b16 %v969, %v968
  %v1115 = vpack.c.b16 %v971, %v970
  %1260 = vmatprep.subr.bf16.mxu0 0
  %1261 = vmatpush1.bf16.msra.mxu0 %v972
  %1262 = vmatprep.subr.bf16.mxu0 0
  %1263 = vmatpush1.bf16.msra.mxu0 %v973
  %1264 = vmatprep.subr.bf16.mxu0 0
  %1265 = vmatpush1.bf16.msra.mxu0 %v974
  %1266 = vmatprep.subr.bf16.mxu0 0
  %1267 = vmatpush1.bf16.msra.mxu0 %v975
  %1268 = vmatprep.subr.bf16.mxu0 0
  %1269 = vmatpush1.bf16.msra.mxu0 %v976
  %1270 = vmatprep.subr.bf16.mxu0 0
  %1271 = vmatpush1.bf16.msra.mxu0 %v977
  %1272 = vmatprep.subr.bf16.mxu0 0
  %1273 = vmatpush1.bf16.msra.mxu0 %v978
  %1274 = vmatprep.subr.bf16.mxu0 0
  %1275 = vmatpush1.bf16.msra.mxu0 %v979
  %1276 = vmatprep.subr.bf16.mxu0 0
  %1277 = vmatpush1.bf16.msra.mxu0 %v980
  %1278 = vmatprep.subr.bf16.mxu0 0
  %1279 = vmatpush1.bf16.msra.mxu0 %v981
  %1280 = vmatprep.subr.bf16.mxu0 0
  %1281 = vmatpush1.bf16.msra.mxu0 %v982
  %1282 = vmatprep.subr.bf16.mxu0 0
  %1283 = vmatpush1.bf16.msra.mxu0 %v983
  %1284 = vmatprep.subr.bf16.mxu0 0
  %1285 = vmatpush1.bf16.msra.mxu0 %v984
  %1286 = vmatprep.subr.bf16.mxu0 0
  %1287 = vmatpush1.bf16.msra.mxu0 %v985
  %1288 = vmatprep.subr.bf16.mxu0 0
  %1289 = vmatpush1.bf16.msra.mxu0 %v986
  %1290 = vmatprep.subr.bf16.mxu0 0
  %1291 = vmatpush1.bf16.msra.mxu0 %v987
  %1292 = vmatprep.mubr.bf16.mxu0 %v361
  %1293 = vmatmul.mubr.bf16.gmra.mrb[0].mxu0 %v360
  %v1294 = vpop.f32.mrb[0].mxu0
  %v1295 = vadd.f32 %v331, %v1294
  %v1296 = vpop.f32.mrb[0].mxu0
  %v1297 = vpop.f32.mrb[0].mxu0
  %v1298 = vpop.f32.mrb[0].mxu0
  %1299 = vdwg.mxu0
  %1300 = vmatprep.subr.bf16.mxu0 0
  %1301 = vmatpush1.bf16.msra.mxu0 %v988
  %1302 = vmatprep.subr.bf16.mxu0 0
  %1303 = vmatpush1.bf16.msra.mxu0 %v989
  %1304 = vmatprep.subr.bf16.mxu0 0
  %1305 = vmatpush1.bf16.msra.mxu0 %v990
  %1306 = vmatprep.subr.bf16.mxu0 0
  %1307 = vmatpush1.bf16.msra.mxu0 %v991
  %1308 = vmatprep.subr.bf16.mxu0 0
  %1309 = vmatpush1.bf16.msra.mxu0 %v992
  %1310 = vmatprep.subr.bf16.mxu0 0
  %1311 = vmatpush1.bf16.msra.mxu0 %v993
  %1312 = vmatprep.subr.bf16.mxu0 0
  %1313 = vmatpush1.bf16.msra.mxu0 %v994
  %1314 = vmatprep.subr.bf16.mxu0 0
  %1315 = vmatpush1.bf16.msra.mxu0 %v995
  %1316 = vmatprep.subr.bf16.mxu0 0
  %1317 = vmatpush1.bf16.msra.mxu0 %v996
  %1318 = vmatprep.subr.bf16.mxu0 0
  %1319 = vmatpush1.bf16.msra.mxu0 %v997
  %1320 = vmatprep.subr.bf16.mxu0 0
  %1321 = vmatpush1.bf16.msra.mxu0 %v998
  %1322 = vmatprep.subr.bf16.mxu0 0
  %1323 = vmatpush1.bf16.msra.mxu0 %v999
  %1324 = vmatprep.subr.bf16.mxu0 0
  %1325 = vmatpush1.bf16.msra.mxu0 %v1000
  %1326 = vmatprep.subr.bf16.mxu0 0
  %1327 = vmatpush1.bf16.msra.mxu0 %v1001
  %1328 = vmatprep.subr.bf16.mxu0 0
  %1329 = vmatpush1.bf16.msra.mxu0 %v1002
  %1330 = vmatprep.subr.bf16.mxu0 0
  %1331 = vmatpush1.bf16.msra.mxu0 %v1003
  %1332 = vmatprep.mubr.bf16.mxu0 %v363
  %1333 = vmatmul.mubr.bf16.gmra.mrb[0].mxu0 %v362
  %v1334 = vpop.f32.mrb[0].mxu0
  %v1335 = vadd.f32 %v1295, %v1334
  %v1336 = vpop.f32.mrb[0].mxu0
  %v1337 = vpop.f32.mrb[0].mxu0
  %v1338 = vpop.f32.mrb[0].mxu0
  %1339 = vdwg.mxu0
  %1340 = vmatprep.subr.bf16.mxu0 0
  %1341 = vmatpush1.bf16.msra.mxu0 %v1004
  %1342 = vmatprep.subr.bf16.mxu0 0
  %1343 = vmatpush1.bf16.msra.mxu0 %v1005
  %1344 = vmatprep.subr.bf16.mxu0 0
  %1345 = vmatpush1.bf16.msra.mxu0 %v1006
  %1346 = vmatprep.subr.bf16.mxu0 0
  %1347 = vmatpush1.bf16.msra.mxu0 %v1007
  %1348 = vmatprep.subr.bf16.mxu0 0
  %1349 = vmatpush1.bf16.msra.mxu0 %v1008
  %1350 = vmatprep.subr.bf16.mxu0 0
  %1351 = vmatpush1.bf16.msra.mxu0 %v1009
  %1352 = vmatprep.subr.bf16.mxu0 0
  %1353 = vmatpush1.bf16.msra.mxu0 %v1010
  %1354 = vmatprep.subr.bf16.mxu0 0
  %1355 = vmatpush1.bf16.msra.mxu0 %v1011
  %1356 = vmatprep.subr.bf16.mxu0 0
  %1357 = vmatpush1.bf16.msra.mxu0 %v1012
  %1358 = vmatprep.subr.bf16.mxu0 0
  %1359 = vmatpush1.bf16.msra.mxu0 %v1013
  %1360 = vmatprep.subr.bf16.mxu0 0
  %1361 = vmatpush1.bf16.msra.mxu0 %v1014
  %1362 = vmatprep.subr.bf16.mxu0 0
  %1363 = vmatpush1.bf16.msra.mxu0 %v1015
  %1364 = vmatprep.subr.bf16.mxu0 0
  %1365 = vmatpush1.bf16.msra.mxu0 %v1016
  %1366 = vmatprep.subr.bf16.mxu0 0
  %1367 = vmatpush1.bf16.msra.mxu0 %v1017
  %1368 = vmatprep.subr.bf16.mxu0 0
  %1369 = vmatpush1.bf16.msra.mxu0 %v1018
  %1370 = vmatprep.subr.bf16.mxu0 0
  %1371 = vmatpush1.bf16.msra.mxu0 %v1019
  %1372 = vmatprep.mubr.bf16.mxu0 %v365
  %1373 = vmatmul.mubr.bf16.gmra.mrb[0].mxu0 %v364
  %v1374 = vpop.f32.mrb[0].mxu0
  %v1375 = vadd.f32 %v1335, %v1374
  %v1376 = vpop.f32.mrb[0].mxu0
  %v1377 = vpop.f32.mrb[0].mxu0
  %v1378 = vpop.f32.mrb[0].mxu0
  %1379 = vdwg.mxu0
  %1380 = vmatprep.subr.bf16.mxu0 0
  %1381 = vmatpush1.bf16.msra.mxu0 %v1020
  %1382 = vmatprep.subr.bf16.mxu0 0
  %1383 = vmatpush1.bf16.msra.mxu0 %v1021
  %1384 = vmatprep.subr.bf16.mxu0 0
  %1385 = vmatpush1.bf16.msra.mxu0 %v1022
  %1386 = vmatprep.subr.bf16.mxu0 0
  %1387 = vmatpush1.bf16.msra.mxu0 %v1023
  %1388 = vmatprep.subr.bf16.mxu0 0
  %1389 = vmatpush1.bf16.msra.mxu0 %v1024
  %1390 = vmatprep.subr.bf16.mxu0 0
  %1391 = vmatpush1.bf16.msra.mxu0 %v1025
  %1392 = vmatprep.subr.bf16.mxu0 0
  %1393 = vmatpush1.bf16.msra.mxu0 %v1026
  %1394 = vmatprep.subr.bf16.mxu0 0
  %1395 = vmatpush1.bf16.msra.mxu0 %v1027
  %1396 = vmatprep.subr.bf16.mxu0 0
  %1397 = vmatpush1.bf16.msra.mxu0 %v1028
  %1398 = vmatprep.subr.bf16.mxu0 0
  %1399 = vmatpush1.bf16.msra.mxu0 %v1029
  %1400 = vmatprep.subr.bf16.mxu0 0
  %1401 = vmatpush1.bf16.msra.mxu0 %v1030
  %1402 = vmatprep.subr.bf16.mxu0 0
  %1403 = vmatpush1.bf16.msra.mxu0 %v1031
  %1404 = vmatprep.subr.bf16.mxu0 0
  %1405 = vmatpush1.bf16.msra.mxu0 %v1032
  %1406 = vmatprep.subr.bf16.mxu0 0
  %1407 = vmatpush1.bf16.msra.mxu0 %v1033
  %1408 = vmatprep.subr.bf16.mxu0 0
  %1409 = vmatpush1.bf16.msra.mxu0 %v1034
  %1410 = vmatprep.subr.bf16.mxu0 0
  %1411 = vmatpush1.bf16.msra.mxu0 %v1035
  %1412 = vmatprep.mubr.bf16.mxu0 %v367
  %1413 = vmatmul.mubr.bf16.gmra.mrb[0].mxu0 %v366
  %v1414 = vpop.f32.mrb[0].mxu0
  %v1415 = vadd.f32 %v1375, %v1414
  %v1416 = vpop.f32.mrb[0].mxu0
  %v1417 = vpop.f32.mrb[0].mxu0
  %v1418 = vpop.f32.mrb[0].mxu0
  %1419 = vdwg.mxu0
  %1420 = vmatprep.subr.bf16.mxu0 0
  %1421 = vmatpush1.bf16.msra.mxu0 %v1036
  %1422 = vmatprep.subr.bf16.mxu0 0
  %1423 = vmatpush1.bf16.msra.mxu0 %v1037
  %1424 = vmatprep.subr.bf16.mxu0 0
  %1425 = vmatpush1.bf16.msra.mxu0 %v1038
  %1426 = vmatprep.subr.bf16.mxu0 0
  %1427 = vmatpush1.bf16.msra.mxu0 %v1039
  %1428 = vmatprep.subr.bf16.mxu0 0
  %1429 = vmatpush1.bf16.msra.mxu0 %v1040
  %1430 = vmatprep.subr.bf16.mxu0 0
  %1431 = vmatpush1.bf16.msra.mxu0 %v1041
  %1432 = vmatprep.subr.bf16.mxu0 0
  %1433 = vmatpush1.bf16.msra.mxu0 %v1042
  %1434 = vmatprep.subr.bf16.mxu0 0
  %1435 = vmatpush1.bf16.msra.mxu0 %v1043
  %1436 = vmatprep.subr.bf16.mxu0 0
  %1437 = vmatpush1.bf16.msra.mxu0 %v1044
  %1438 = vmatprep.subr.bf16.mxu0 0
  %1439 = vmatpush1.bf16.msra.mxu0 %v1045
  %1440 = vmatprep.subr.bf16.mxu0 0
  %1441 = vmatpush1.bf16.msra.mxu0 %v1046
  %1442 = vmatprep.subr.bf16.mxu0 0
  %1443 = vmatpush1.bf16.msra.mxu0 %v1047
  %1444 = vmatprep.subr.bf16.mxu0 0
  %1445 = vmatpush1.bf16.msra.mxu0 %v1048
  %1446 = vmatprep.subr.bf16.mxu0 0
  %1447 = vmatpush1.bf16.msra.mxu0 %v1049
  %1448 = vmatprep.subr.bf16.mxu0 0
  %1449 = vmatpush1.bf16.msra.mxu0 %v1050
  %1450 = vmatprep.subr.bf16.mxu0 0
  %1451 = vmatpush1.bf16.msra.mxu0 %v1051
  %1452 = vmatprep.mubr.bf16.mxu0 %v369
  %1453 = vmatmul.mubr.bf16.gmra.mrb[0].mxu0 %v368
  %v1454 = vpop.f32.mrb[0].mxu0
  %v1455 = vadd.f32 %v1415, %v1454
  %v1456 = vpop.f32.mrb[0].mxu0
  %v1457 = vpop.f32.mrb[0].mxu0
  %v1458 = vpop.f32.mrb[0].mxu0
  %1459 = vdwg.mxu0
  %1460 = vmatprep.subr.bf16.mxu0 0
  %1461 = vmatpush1.bf16.msra.mxu0 %v1052
  %1462 = vmatprep.subr.bf16.mxu0 0
  %1463 = vmatpush1.bf16.msra.mxu0 %v1053
  %1464 = vmatprep.subr.bf16.mxu0 0
  %1465 = vmatpush1.bf16.msra.mxu0 %v1054
  %1466 = vmatprep.subr.bf16.mxu0 0
  %1467 = vmatpush1.bf16.msra.mxu0 %v1055
  %1468 = vmatprep.subr.bf16.mxu0 0
  %1469 = vmatpush1.bf16.msra.mxu0 %v1056
  %1470 = vmatprep.subr.bf16.mxu0 0
  %1471 = vmatpush1.bf16.msra.mxu0 %v1057
  %1472 = vmatprep.subr.bf16.mxu0 0
  %1473 = vmatpush1.bf16.msra.mxu0 %v1058
  %1474 = vmatprep.subr.bf16.mxu0 0
  %1475 = vmatpush1.bf16.msra.mxu0 %v1059
  %1476 = vmatprep.subr.bf16.mxu0 0
  %1477 = vmatpush1.bf16.msra.mxu0 %v1060
  %1478 = vmatprep.subr.bf16.mxu0 0
  %1479 = vmatpush1.bf16.msra.mxu0 %v1061
  %1480 = vmatprep.subr.bf16.mxu0 0
  %1481 = vmatpush1.bf16.msra.mxu0 %v1062
  %1482 = vmatprep.subr.bf16.mxu0 0
  %1483 = vmatpush1.bf16.msra.mxu0 %v1063
  %1484 = vmatprep.subr.bf16.mxu0 0
  %1485 = vmatpush1.bf16.msra.mxu0 %v1064
  %1486 = vmatprep.subr.bf16.mxu0 0
  %1487 = vmatpush1.bf16.msra.mxu0 %v1065
  %1488 = vmatprep.subr.bf16.mxu0 0
  %1489 = vmatpush1.bf16.msra.mxu0 %v1066
  %1490 = vmatprep.subr.bf16.mxu0 0
  %1491 = vmatpush1.bf16.msra.mxu0 %v1067
  %1492 = vmatprep.mubr.bf16.mxu0 %v371
  %1493 = vmatmul.mubr.bf16.gmra.mrb[0].mxu0 %v370
  %v1494 = vpop.f32.mrb[0].mxu0
  %v1495 = vadd.f32 %v1455, %v1494
  %v1496 = vpop.f32.mrb[0].mxu0
  %v1497 = vpop.f32.mrb[0].mxu0
  %v1498 = vpop.f32.mrb[0].mxu0
  %1499 = vdwg.mxu0
  %1500 = vmatprep.subr.bf16.mxu0 0
  %1501 = vmatpush1.bf16.msra.mxu0 %v1068
  %1502 = vmatprep.subr.bf16.mxu0 0
  %1503 = vmatpush1.bf16.msra.mxu0 %v1069
  %1504 = vmatprep.subr.bf16.mxu0 0
  %1505 = vmatpush1.bf16.msra.mxu0 %v1070
  %1506 = vmatprep.subr.bf16.mxu0 0
  %1507 = vmatpush1.bf16.msra.mxu0 %v1071
  %1508 = vmatprep.subr.bf16.mxu0 0
  %1509 = vmatpush1.bf16.msra.mxu0 %v1072
  %1510 = vmatprep.subr.bf16.mxu0 0
  %1511 = vmatpush1.bf16.msra.mxu0 %v1073
  %1512 = vmatprep.subr.bf16.mxu0 0
  %1513 = vmatpush1.bf16.msra.mxu0 %v1074
  %1514 = vmatprep.subr.bf16.mxu0 0
  %1515 = vmatpush1.bf16.msra.mxu0 %v1075
  %1516 = vmatprep.subr.bf16.mxu0 0
  %1517 = vmatpush1.bf16.msra.mxu0 %v1076
  %1518 = vmatprep.subr.bf16.mxu0 0
  %1519 = vmatpush1.bf16.msra.mxu0 %v1077
  %1520 = vmatprep.subr.bf16.mxu0 0
  %1521 = vmatpush1.bf16.msra.mxu0 %v1078
  %1522 = vmatprep.subr.bf16.mxu0 0
  %1523 = vmatpush1.bf16.msra.mxu0 %v1079
  %1524 = vmatprep.subr.bf16.mxu0 0
  %1525 = vmatpush1.bf16.msra.mxu0 %v1080
  %1526 = vmatprep.subr.bf16.mxu0 0
  %1527 = vmatpush1.bf16.msra.mxu0 %v1081
  %1528 = vmatprep.subr.bf16.mxu0 0
  %1529 = vmatpush1.bf16.msra.mxu0 %v1082
  %1530 = vmatprep.subr.bf16.mxu0 0
  %1531 = vmatpush1.bf16.msra.mxu0 %v1083
  %1532 = vmatprep.mubr.bf16.mxu0 %v373
  %1533 = vmatmul.mubr.bf16.gmra.mrb[0].mxu0 %v372
  %v1534 = vpop.f32.mrb[0].mxu0
  %v1535 = vadd.f32 %v1495, %v1534
  %v1536 = vpop.f32.mrb[0].mxu0
  %v1537 = vpop.f32.mrb[0].mxu0
  %v1538 = vpop.f32.mrb[0].mxu0
  %1539 = vdwg.mxu0
  %1540 = vmatprep.subr.bf16.mxu0 0
  %1541 = vmatpush1.bf16.msra.mxu0 %v1084
  %1542 = vmatprep.subr.bf16.mxu0 0
  %1543 = vmatpush1.bf16.msra.mxu0 %v1085
  %1544 = vmatprep.subr.bf16.mxu0 0
  %1545 = vmatpush1.bf16.msra.mxu0 %v1086
  %1546 = vmatprep.subr.bf16.mxu0 0
  %1547 = vmatpush1.bf16.msra.mxu0 %v1087
  %1548 = vmatprep.subr.bf16.mxu0 0
  %1549 = vmatpush1.bf16.msra.mxu0 %v1088
  %1550 = vmatprep.subr.bf16.mxu0 0
  %1551 = vmatpush1.bf16.msra.mxu0 %v1089
  %1552 = vmatprep.subr.bf16.mxu0 0
  %1553 = vmatpush1.bf16.msra.mxu0 %v1090
  %1554 = vmatprep.subr.bf16.mxu0 0
  %1555 = vmatpush1.bf16.msra.mxu0 %v1091
  %1556 = vmatprep.subr.bf16.mxu0 0
  %1557 = vmatpush1.bf16.msra.mxu0 %v1092
  %1558 = vmatprep.subr.bf16.mxu0 0
  %1559 = vmatpush1.bf16.msra.mxu0 %v1093
  %1560 = vmatprep.subr.bf16.mxu0 0
  %1561 = vmatpush1.bf16.msra.mxu0 %v1094
  %1562 = vmatprep.subr.bf16.mxu0 0
  %1563 = vmatpush1.bf16.msra.mxu0 %v1095
  %1564 = vmatprep.subr.bf16.mxu0 0
  %1565 = vmatpush1.bf16.msra.mxu0 %v1096
  %1566 = vmatprep.subr.bf16.mxu0 0
  %1567 = vmatpush1.bf16.msra.mxu0 %v1097
  %1568 = vmatprep.subr.bf16.mxu0 0
  %1569 = vmatpush1.bf16.msra.mxu0 %v1098
  %1570 = vmatprep.subr.bf16.mxu0 0
  %1571 = vmatpush1.bf16.msra.mxu0 %v1099
  %1572 = vmatprep.mubr.bf16.mxu0 %v375
  %1573 = vmatmul.mubr.bf16.gmra.mrb[0].mxu0 %v374
  %v1574 = vpop.f32.mrb[0].mxu0
  %v1575 = vadd.f32 %v1535, %v1574
  %v1576 = vpop.f32.mrb[0].mxu0
  %v1577 = vpop.f32.mrb[0].mxu0
  %v1578 = vpop.f32.mrb[0].mxu0
  %1579 = vdwg.mxu0
  %1580 = vmatprep.subr.bf16.mxu0 0
  %1581 = vmatpush1.bf16.msra.mxu0 %v1100
  %1582 = vmatprep.subr.bf16.mxu0 0
  %1583 = vmatpush1.bf16.msra.mxu0 %v1101
  %1584 = vmatprep.subr.bf16.mxu0 0
  %1585 = vmatpush1.bf16.msra.mxu0 %v1102
  %1586 = vmatprep.subr.bf16.mxu0 0
  %1587 = vmatpush1.bf16.msra.mxu0 %v1103
  %1588 = vmatprep.subr.bf16.mxu0 0
  %1589 = vmatpush1.bf16.msra.mxu0 %v1104
  %1590 = vmatprep.subr.bf16.mxu0 0
  %1591 = vmatpush1.bf16.msra.mxu0 %v1105
  %1592 = vmatprep.subr.bf16.mxu0 0
  %1593 = vmatpush1.bf16.msra.mxu0 %v1106
  %1594 = vmatprep.subr.bf16.mxu0 0
  %1595 = vmatpush1.bf16.msra.mxu0 %v1107
  %1596 = vmatprep.subr.bf16.mxu0 0
  %1597 = vmatpush1.bf16.msra.mxu0 %v1108
  %1598 = vmatprep.subr.bf16.mxu0 0
  %1599 = vmatpush1.bf16.msra.mxu0 %v1109
  %1600 = vmatprep.subr.bf16.mxu0 0
  %1601 = vmatpush1.bf16.msra.mxu0 %v1110
  %1602 = vmatprep.subr.bf16.mxu0 0
  %1603 = vmatpush1.bf16.msra.mxu0 %v1111
  %1604 = vmatprep.subr.bf16.mxu0 0
  %1605 = vmatpush1.bf16.msra.mxu0 %v1112
  %1606 = vmatprep.subr.bf16.mxu0 0
  %1607 = vmatpush1.bf16.msra.mxu0 %v1113
  %1608 = vmatprep.subr.bf16.mxu0 0
  %1609 = vmatpush1.bf16.msra.mxu0 %v1114
  %1610 = vmatprep.subr.bf16.mxu0 0
  %1611 = vmatpush1.bf16.msra.mxu0 %v1115
  %1612 = vmatprep.mubr.bf16.mxu0 %v377
  %1613 = vmatmul.mubr.bf16.gmra.mrb[0].mxu0 %v376
  %v1614 = vpop.f32.mrb[0].mxu0
  %v1615 = vadd.f32 %v1575, %v1614
  %v1616 = vpop.f32.mrb[0].mxu0
  %v1617 = vpop.f32.mrb[0].mxu0
  %v1618 = vpop.f32.mrb[0].mxu0
  %1619 = vdwg.mxu0
  %v1620 = vmax.f32 %v1615, 0.0
  %v1621 = vld [vmem:[%s3] sm:$0xff]
  %v1622 = vld [vmem:[%s3 + $0x8] sm:$0xff]
  %v1623 = vld [vmem:[%s3 + $0x10] sm:$0xff]
  %v1624 = vld [vmem:[%s3 + $0x18] sm:$0xff]
  %v1625 = vld [vmem:[%s3 + $0x20] sm:$0xff]
  %v1626 = vld [vmem:[%s3 + $0x28] sm:$0xff]
  %v1627 = vld [vmem:[%s3 + $0x30] sm:$0xff]
  %v1628 = vld [vmem:[%s3 + $0x38] sm:$0xff]
  %v1629 = vld [vmem:[%s3 + $0x40] sm:$0xff]
  %v1630 = vld [vmem:[%s3 + $0x48] sm:$0xff]
  %v1631 = vld [vmem:[%s3 + $0x50] sm:$0xff]
  %v1632 = vld [vmem:[%s3 + $0x58] sm:$0xff]
  %v1633 = vld [vmem:[%s3 + $0x60] sm:$0xff]
  %v1634 = vld [vmem:[%s3 + $0x68] sm:$0xff]
  %v1635 = vld [vmem:[%s3 + $0x70] sm:$0xff]
  %v1636 = vld [vmem:[%s3 + $0x78] sm:$0xff]
  %v1637 = vld [vmem:[%s4] sm:$0x1]
  %v1639 = vlaneseq
  %v1640 = vshrl.u32 %v1639, 7
  %v1641 = vsub.s32 0, %v1640
  %v1642 = vrot.slane %v1637, %v1641
  %1644 = vmatprep.subr.mxu0 0.0
  %1645 = vmatpush1.msra.mxu0 %v1621
  %1646 = vmatprep.subr.mxu0 0.0
  %1647 = vmatpush1.msra.mxu0 %v1622
  %1648 = vmatprep.subr.mxu0 0.0
  %1649 = vmatpush1.msra.mxu0 %v1623
  %1650 = vmatprep.subr.mxu0 0.0
  %1651 = vmatpush1.msra.mxu0 %v1624
  %1652 = vmatprep.subr.mxu0 0.0
  %1653 = vmatpush1.msra.mxu0 %v1625
  %1654 = vmatprep.subr.mxu0 0.0
  %1655 = vmatpush1.msra.mxu0 %v1626
  %1656 = vmatprep.subr.mxu0 0.0
  %1657 = vmatpush1.msra.mxu0 %v1627
  %1658 = vmatprep.subr.mxu0 0.0
  %1659 = vmatpush1.msra.mxu0 %v1628
  %1660 = vmatprep.subr.mxu0 0.0
  %1661 = vmatpush1.msra.mxu0 %v1629
  %1662 = vmatprep.subr.mxu0 0.0
  %1663 = vmatpush1.msra.mxu0 %v1630
  %1664 = vmatprep.subr.mxu0 0.0
  %1665 = vmatpush1.msra.mxu0 %v1631
  %1666 = vmatprep.subr.mxu0 0.0
  %1667 = vmatpush1.msra.mxu0 %v1632
  %1668 = vmatprep.subr.mxu0 0.0
  %1669 = vmatpush1.msra.mxu0 %v1633
  %1670 = vmatprep.subr.mxu0 0.0
  %1671 = vmatpush1.msra.mxu0 %v1634
  %1672 = vmatprep.subr.mxu0 0.0
  %1673 = vmatpush1.msra.mxu0 %v1635
  %1674 = vmatprep.subr.mxu0 0.0
  %1675 = vmatpush1.msra.mxu0 %v1636
  %1676 = vmatprep.subr.mxu0 0.0
  %1677 = vmatpush1.msra.mxu0 0.0
  %1678 = vmatprep.subr.mxu0 0.0
  %1679 = vmatpush1.msra.mxu0 0.0
  %1680 = vmatprep.subr.mxu0 0.0
  %1681 = vmatpush1.msra.mxu0 0.0
  %1682 = vmatprep.subr.mxu0 0.0
  %1683 = vmatpush1.msra.mxu0 0.0
  %1684 = vmatprep.subr.mxu0 0.0
  %1685 = vmatpush1.msra.mxu0 0.0
  %1686 = vmatprep.subr.mxu0 0.0
  %1687 = vmatpush1.msra.mxu0 0.0
  %1688 = vmatprep.subr.mxu0 0.0
  %1689 = vmatpush1.msra.mxu0 0.0
  %1690 = vmatprep.subr.mxu0 0.0
  %1691 = vmatpush1.msra.mxu0 0.0
  %1692 = vmatprep.subr.mxu0 0.0
  %1693 = vmatpush1.msra.mxu0 0.0
  %1694 = vmatprep.subr.mxu0 0.0
  %1695 = vmatpush1.msra.mxu0 0.0
  %1696 = vmatprep.subr.mxu0 0.0
  %1697 = vmatpush1.msra.mxu0 0.0
  %1698 = vmatprep.subr.mxu0 0.0
  %1699 = vmatpush1.msra.mxu0 0.0
  %1700 = vmatprep.subr.mxu0 0.0
  %1701 = vmatpush1.msra.mxu0 0.0
  %1702 = vmatprep.subr.mxu0 0.0
  %1703 = vmatpush1.msra.mxu0 0.0
  %1704 = vmatprep.subr.mxu0 0.0
  %1705 = vmatpush1.msra.mxu0 0.0
  %1706 = vmatprep.subr.mxu0 0.0
  %1707 = vmatpush1.msra.mxu0 0.0
  %1708 = vmatprep.mubr.f32.mxu0 0.0
  %1709 = vmatmul.mubr.f32.gmra.mrb[0].mxu0 %v1620
  %v1710 = vpop.f32.mrb[0].mxu0
  %v1711 = vadd.f32 %v1642, %v1710
  %v1712 = vpop.f32.mrb[0].mxu0
  %1713 = vdwg.mxu0
  %v1714 = vmax.f32 %v1711, 0.0
  %v1715 = vld [vmem:[%s5] sm:$0xff]
  %v1716 = vld [vmem:[%s5 + $0x8] sm:$0xff]
  %v1717 = vld [vmem:[%s5 + $0x10] sm:$0xff]
  %v1718 = vld [vmem:[%s5 + $0x18] sm:$0xff]
  %v1719 = vld [vmem:[%s5 + $0x20] sm:$0xff]
  %v1720 = vld [vmem:[%s5 + $0x28] sm:$0xff]
  %v1721 = vld [vmem:[%s5 + $0x30] sm:$0xff]
  %v1722 = vld [vmem:[%s5 + $0x38] sm:$0xff]
  %v1723 = vld [vmem:[%s5 + $0x40] sm:$0xff]
  %v1724 = vld [vmem:[%s5 + $0x48] sm:$0xff]
  %v1725 = vld [vmem:[%s5 + $0x50] sm:$0xf]
  %v1726 = vld [vmem:[%s6] sm:$0x1]
  %v1728 = vlaneseq
  %v1729 = vshrl.u32 %v1728, 7
  %v1730 = vsub.s32 0, %v1729
  %v1731 = vrot.slane %v1726, %v1730
  %vm1733 = vcmask 687104
  %v1735 = vsel %vm1733, %v1714, 0
  %vm1737 = vcmask 1043456
  %v1739 = vsel %vm1737, %v1725, 0
  %1741 = vmatprep.subr.mxu0 0.0
  %1742 = vmatpush1.msra.mxu0 %v1715
  %1743 = vmatprep.subr.mxu0 0.0
  %1744 = vmatpush1.msra.mxu0 %v1716
  %1745 = vmatprep.subr.mxu0 0.0
  %1746 = vmatpush1.msra.mxu0 %v1717
  %1747 = vmatprep.subr.mxu0 0.0
  %1748 = vmatpush1.msra.mxu0 %v1718
  %1749 = vmatprep.subr.mxu0 0.0
  %1750 = vmatpush1.msra.mxu0 %v1719
  %1751 = vmatprep.subr.mxu0 0.0
  %1752 = vmatpush1.msra.mxu0 %v1720
  %1753 = vmatprep.subr.mxu0 0.0
  %1754 = vmatpush1.msra.mxu0 %v1721
  %1755 = vmatprep.subr.mxu0 0.0
  %1756 = vmatpush1.msra.mxu0 %v1722
  %1757 = vmatprep.subr.mxu0 0.0
  %1758 = vmatpush1.msra.mxu0 %v1723
  %1759 = vmatprep.subr.mxu0 0.0
  %1760 = vmatpush1.msra.mxu0 %v1724
  %1761 = vmatprep.subr.mxu0 0.0
  %1762 = vmatpush1.msra.mxu0 %v1739
  %1763 = vmatprep.subr.mxu0 0.0
  %1764 = vmatpush1.msra.mxu0 0.0
  %1765 = vmatprep.subr.mxu0 0.0
  %1766 = vmatpush1.msra.mxu0 0.0
  %1767 = vmatprep.subr.mxu0 0.0
  %1768 = vmatpush1.msra.mxu0 0.0
  %1769 = vmatprep.subr.mxu0 0.0
  %1770 = vmatpush1.msra.mxu0 0.0
  %1771 = vmatprep.subr.mxu0 0.0
  %1772 = vmatpush1.msra.mxu0 0.0
  %1773 = vmatprep.subr.mxu0 0.0
  %1774 = vmatpush1.msra.mxu0 0.0
  %1775 = vmatprep.subr.mxu0 0.0
  %1776 = vmatpush1.msra.mxu0 0.0
  %1777 = vmatprep.subr.mxu0 0.0
  %1778 = vmatpush1.msra.mxu0 0.0
  %1779 = vmatprep.subr.mxu0 0.0
  %1780 = vmatpush1.msra.mxu0 0.0
  %1781 = vmatprep.subr.mxu0 0.0
  %1782 = vmatpush1.msra.mxu0 0.0
  %1783 = vmatprep.subr.mxu0 0.0
  %1784 = vmatpush1.msra.mxu0 0.0
  %1785 = vmatprep.subr.mxu0 0.0
  %1786 = vmatpush1.msra.mxu0 0.0
  %1787 = vmatprep.subr.mxu0 0.0
  %1788 = vmatpush1.msra.mxu0 0.0
  %1789 = vmatprep.subr.mxu0 0.0
  %1790 = vmatpush1.msra.mxu0 0.0
  %1791 = vmatprep.subr.mxu0 0.0
  %1792 = vmatpush1.msra.mxu0 0.0
  %1793 = vmatprep.subr.mxu0 0.0
  %1794 = vmatpush1.msra.mxu0 0.0
  %1795 = vmatprep.subr.mxu0 0.0
  %1796 = vmatpush1.msra.mxu0 0.0
  %1797 = vmatprep.subr.mxu0 0.0
  %1798 = vmatpush1.msra.mxu0 0.0
  %1799 = vmatprep.subr.mxu0 0.0
  %1800 = vmatpush1.msra.mxu0 0.0
  %1801 = vmatprep.subr.mxu0 0.0
  %1802 = vmatpush1.msra.mxu0 0.0
  %1803 = vmatprep.subr.mxu0 0.0
  %1804 = vmatpush1.msra.mxu0 0.0
  %1805 = vmatprep.mubr.f32.mxu0 0.0
  %1806 = vmatmul.mubr.f32.gmra.mrb[0].mxu0 %v1735
  %v1807 = vpop.f32.mrb[0].mxu0
  %v1808 = vadd.f32 %v1731, %v1807
  %v1809 = vpop.f32.mrb[0].mxu0
  %1810 = vdwg.mxu0
  %1811 = vst.msk [vmem:[%s7] sm:$0xff] %vm1733, %v1714
  %vm1812 = vcmask 80896
  %1813 = vst.msk [vmem:[%s8] sm:$0xff] %vm1812, %v1808
  // Predicated region
  $region30: #{svhn_cnn_forward.5} parent=0 // pred_check
    _
  $region31: #{svhn_cnn_forward.5} parent=0 // pred_check_branch
    %1815 = sbr.rel (0) target = $region33
  $region32: #{svhn_cnn_forward.5} parent=0 // pred_region
    _
  $region33: #{svhn_cnn_forward.5} parent=0 // pred_fallthru
    _
  // Predicated region
  $region34: #{svhn_cnn_forward.5} parent=0 // pred_check
    _
  $region35: #{svhn_cnn_forward.5} parent=0 // pred_check_branch
    %1817 = sbr.rel (0) target = $region37
  $region36: #{svhn_cnn_forward.5} parent=0 // pred_region
    _
  $region37: #{svhn_cnn_forward.5} parent=0 // pred_fallthru
    _
  // Predicated region
  $region38: #{svhn_cnn_forward.5} parent=0 // pred_check
    _
  $region39: #{svhn_cnn_forward.5} parent=0 // pred_check_branch
    %1819 = sbr.rel (0) target = $region41
  $region40: #{svhn_cnn_forward.5} parent=0 // pred_region
    _
  $region41: #{svhn_cnn_forward.5} parent=0 // pred_fallthru
    _
  // Predicated region
  $region42: #{svhn_cnn_forward.5} parent=0 // pred_check
    _
  $region43: #{svhn_cnn_forward.5} parent=0 // pred_check_branch
    %1821 = sbr.rel (0) target = $region45
  $region44: #{svhn_cnn_forward.5} parent=0 // pred_region
    _
  $region45: #{svhn_cnn_forward.5} parent=0 // pred_fallthru
    _

</llo_original>
